<compile_context>
chip_gen: v6e
topology: v6e:2x2x1
jax: 0.10.0
libtpu: 0.0.40
codegen_flags: <defaults>
</compile_context>

<pallas_src>
import jax
import jax.numpy as jnp
from jax import lax
from jax.experimental import pallas as pl
from jax.experimental.pallas import tpu as pltpu


def _make_kernel(cin, cout, width, nb):
    """Kernel body; activations are lane-dense (H, W*C) f32 slabs."""
    WCI = width * cin
    WC = width * cout

    def kernel(x_ref, e_ref, dw1_ref, dw2_ref, pw1_ref, pw2_ref, res_ref,
               bias_ref, o_ref):
        # x_ref    : (nb, H, W*Cin)  un-expanded lane-dense input
        # e_ref    : (W*Cin, W*Cout) block-diag 0/1 channel-replication matrix
        # dw*_ref  : (9, W*Cout)     depthwise 3x3 taps, row = kh*3 + kw, tiled over W
        # pw*_ref  : (W*Cout, W*Cout) block-diag BN-folded pointwise weights
        # res_ref  : (W*Cin, W*Cout) block-diag BN-folded residual projection
        # bias_ref : (3, W*Cout)     fused biases after pw1 / pw2 / residual
        # o_ref    : (nb, H, W*Cout)
        _, H, _ = x_ref.shape

        # ---- constants hoisted once, reused by both dwconvs (no re-iota) ----
        lane = lax.broadcasted_iota(jnp.int32, (H, WC), 1)
        row = lax.broadcasted_iota(jnp.int32, (H, WC), 0)
        m_left = lane >= cout            # w-1 tap valid (not first pixel)
        m_right = lane < WC - cout       # w+1 tap valid (not last pixel)
        m_up = row >= 1                  # h-1 tap valid
        m_down = row < H - 1             # h+1 tap valid

        def dwconv(t, w_ref):
            # 'same' 3x3 depthwise conv.  Horizontal taps via 2 lane rolls (XLU)
            # + border masks; then the three horizontal partials are combined and
            # only ONE up-roll and ONE down-roll are applied (weights are
            # broadcast along H, so multiply-then-roll == roll-then-multiply).
            left = jnp.where(m_left, pltpu.roll(t, cout, axis=1), 0.0)        # w-1
            right = jnp.where(m_right, pltpu.roll(t, WC - cout, axis=1), 0.0)  # w+1
            top = left * w_ref[0, :] + t * w_ref[1, :] + right * w_ref[2, :]   # kh=0
            mid = left * w_ref[3, :] + t * w_ref[4, :] + right * w_ref[5, :]   # kh=1
            bot = left * w_ref[6, :] + t * w_ref[7, :] + right * w_ref[8, :]   # kh=2
            return (mid
                    + jnp.where(m_up, pltpu.roll(top, 1, axis=0), 0.0)
                    + jnp.where(m_down, pltpu.roll(bot, H - 1, axis=0), 0.0))

        def mm(a, w_ref):
            # block-diagonal 1x1 conv on the MXU, f32 accumulate
            return jnp.dot(a, w_ref[...], preferred_element_type=jnp.float32,
                           precision=lax.Precision.HIGHEST)

        for b in range(nb):                       # static unroll over batch-in-block
            x = x_ref[b]                          # (H, W*Cin) f32
            x_exp = mm(x, e_ref)                  # grouped-conv channel replication (MXU)
            d1 = dwconv(x_exp, dw1_ref)
            y1 = jnp.maximum(mm(d1, pw1_ref) + bias_ref[0, :], 0.0)   # conv1 + ReLU
            d2 = dwconv(y1, dw2_ref)
            y2 = jnp.maximum(mm(d2, pw2_ref) + bias_ref[1, :], 0.0)   # conv2 + ReLU
            res = mm(x, res_ref) + bias_ref[2, :]                     # long-skip projection
            o_ref[b] = jnp.maximum(y2 + res, 0.0).astype(o_ref.dtype)

    return kernel


def residual_dwsep_highway_lane(x_lane, p, *, batch_per_step=None):
    """Lane-dense entry point: (N, H, W*Cin) f32 in -> (N, H, W*Cout) f32 out."""
    cin, cout, width = p["cin"], p["cout"], p["width"]
    N, H, WCI = x_lane.shape
    WC = width * cout
    assert WCI == width * cin and WC % 128 == 0 and H % 8 == 0

    if batch_per_step is None:
        # >=2 grid steps when N allows (both v7x TCs get work) while merging
        # batch elements per step to amortize per-step overhead on v5e/v6e.
        batch_per_step = max(1, N // 2)
    nb = batch_per_step
    assert N % nb == 0
    const2d = lambda n: (0, 0)

    return pl.pallas_call(
        _make_kernel(cin, cout, width, nb),
        out_shape=jax.ShapeDtypeStruct((N, H, WC), jnp.float32),
        grid_spec=pltpu.PrefetchScalarGridSpec(
            num_scalar_prefetch=0,
            grid=(N // nb,),
            in_specs=[
                pl.BlockSpec((nb, H, WCI), lambda n: (n, 0, 0)),
                pl.BlockSpec((WCI, WC), const2d),   # e_bd   (resident)
                pl.BlockSpec((9, WC), const2d),     # dwl1   (resident)
                pl.BlockSpec((9, WC), const2d),     # dwl2   (resident)
                pl.BlockSpec((WC, WC), const2d),    # pw1_bd (resident)
                pl.BlockSpec((WC, WC), const2d),    # pw2_bd (resident)
                pl.BlockSpec((WCI, WC), const2d),   # res_bd (resident)
                pl.BlockSpec((3, WC), const2d),     # bias   (resident)
            ],
            out_specs=pl.BlockSpec((nb, H, WC), lambda n: (n, 0, 0)),
        ),
        compiler_params=pltpu.CompilerParams(
            # batch steps are independent -> v7x's 2 TensorCores shard them
            dimension_semantics=("parallel",)),
    )(x_lane, p["e_bd"], p["dwl1"], p["dwl2"], p["pw1_bd"], p["pw2_bd"],
      p["res_bd"], p["bias"])


def residual_dwsep_highway(x_nchw, p):
    """NCHW in / NCHW out convenience wrapper around the lane-dense kernel."""
    N, Cin, H, W = x_nchw.shape
    # TODO(synk): in a multi-layer network keep the lane-dense NHWC slab across
    # layers (call residual_dwsep_highway_lane directly) instead of transposing
    # per call.
    x_lane = jnp.transpose(x_nchw, (0, 2, 3, 1)).reshape(N, H, W * Cin)
    out = residual_dwsep_highway_lane(x_lane.astype(jnp.float32), p)
    return jnp.transpose(out.reshape(N, H, W, p["cout"]), (0, 3, 1, 2))


def make_params(key, cin, cout, width):
    """Deterministic synthetic parameters: PyTorch layouts + kernel-ready layouts."""
    assert cout % cin == 0, "grouped depthwise conv requires Cout % Cin == 0"
    eps = 1e-5
    m = cout // cin
    ks = jax.random.split(key, 10)

    def wgt(k, shape):
        return jax.random.normal(k, shape, jnp.float32) * 0.3

    dw1_pt = wgt(ks[0], (cout, 1, 3, 3))     # Conv2d(cin, cout, 3, groups=cin)
    pw1_pt = wgt(ks[1], (cout, cout, 1, 1))  # Conv2d(cout, cout, 1)
    dw2_pt = wgt(ks[2], (cout, 1, 3, 3))     # Conv2d(cout, cout, 3, groups=cout)
    pw2_pt = wgt(ks[3], (cout, cout, 1, 1))  # Conv2d(cout, cout, 1)
    resw_pt = wgt(ks[4], (cout, cin, 1, 1))  # residual Conv2d(cin, cout, 1)

    def bn_params(k):
        k1, k2, k3, k4 = jax.random.split(k, 4)
        gamma = jax.random.uniform(k1, (cout,), jnp.float32, 0.5, 1.5)
        beta = jax.random.normal(k2, (cout,), jnp.float32) * 0.1
        mean = jax.random.normal(k3, (cout,), jnp.float32) * 0.1
        var = jax.random.uniform(k4, (cout,), jnp.float32, 0.5, 1.5)
        scale = gamma / jnp.sqrt(var + eps)
        shift = beta - mean * scale
        return scale, shift

    bn = [bn_params(ks[5 + i]) for i in range(5)]  # dw1, pw1, dw2, pw2, res
    bns = jnp.stack([s for s, _ in bn])
    bnb = jnp.stack([b for _, b in bn])
    s0, s1, s2, s3, s4 = bns
    b0, b1, b2, b3, b4 = bnb

    # ---- kernel-side prep (host side, once) ----
    def tile_lanes(a):                     # (rows, cout) -> (rows, width*cout)
        return jnp.tile(a, (1, width))

    def block_diag(blk):                   # (a, b) -> (width*a, width*b)
        return jnp.kron(jnp.eye(width, dtype=jnp.float32), blk)

    pw1 = pw1_pt[:, :, 0, 0]               # (co, ci)
    pw2 = pw2_pt[:, :, 0, 0]
    resw = resw_pt[:, :, 0, 0]             # (co, ci), ci < cin

    # eval-mode BN folded into the pointwise weights / biases:
    # conv1 = BN1(pw1(BN0(dw1(x)))) ; conv2 analogous ; residual = BN4(resw(x))
    pw1f = pw1.T * s0[:, None] * s1[None, :]          # [ci, co]
    pw2f = pw2.T * s2[:, None] * s3[None, :]
    bias1 = (pw1 @ b0) * s1 + b1
    bias2 = (pw2 @ b2) * s3 + b3
    resf = resw.T * s4[None, :]                        # [ci, co], ci < cin

    # grouped-conv channel replication as a 0/1 block: x_exp[.., co] = x[.., co//m]
    exp_blk = (jnp.arange(cout)[None, :] // m == jnp.arange(cin)[:, None]
               ).astype(jnp.float32)                   # [ci, co]

    kparams = dict(
        cin=cin, cout=cout, width=width,
        e_bd=block_diag(exp_blk),
        dwl1=tile_lanes(jnp.transpose(dw1_pt[:, 0], (1, 2, 0)).reshape(9, cout)),
        dwl2=tile_lanes(jnp.transpose(dw2_pt[:, 0], (1, 2, 0)).reshape(9, cout)),
        pw1_bd=block_diag(pw1f),
        pw2_bd=block_diag(pw2f),
        res_bd=block_diag(resf),
        bias=tile_lanes(jnp.stack([bias1, bias2, b4])),
    )
    tparams = dict(dw1=dw1_pt, pw1=pw1_pt, dw2=dw2_pt, pw2=pw2_pt,
                   resw=resw_pt, bns=bns, bnb=bnb)
    return kparams, tparams


def ref_forward(x_nchw, tp):
    """Pure-JAX reference mirroring the PyTorch forward (NCHW, OIHW, separate BN)."""
    cin = x_nchw.shape[1]
    cout = tp["pw1"].shape[0]

    def conv(x, w, groups=1):
        return lax.conv_general_dilated(
            x, w, window_strides=(1, 1), padding="SAME",
            dimension_numbers=("NCHW", "OIHW", "NCHW"),
            feature_group_count=groups, precision=lax.Precision.HIGHEST)

    def bn(y, i):
        return y * tp["bns"][i][None, :, None, None] + tp["bnb"][i][None, :, None, None]

    res = bn(conv(x_nchw, tp["resw"]), 4)
    d1 = bn(conv(x_nchw, tp["dw1"], groups=cin), 0)
    y1 = jax.nn.relu(bn(conv(d1, tp["pw1"]), 1))
    d2 = bn(conv(y1, tp["dw2"], groups=cout), 2)
    y2 = jax.nn.relu(bn(conv(d2, tp["pw2"]), 3))
    return jax.nn.relu(y2 + res)


if __name__ == "__main__":
    key = jax.random.PRNGKey(0)
    kx, kp = jax.random.split(key)
    N, Cin, Cout, H, W = 2, 4, 8, 16, 16          # W * Cout = 128 -> lane-dense

    x = jax.random.normal(kx, (N, Cin, H, W), jnp.float32)
    kparams, tparams = make_params(kp, Cin, Cout, W)

    out = residual_dwsep_highway(x, kparams)
    out = jax.block_until_ready(out)
    assert out.shape == (N, Cout, H, W)

    ref = ref_forward(x, tparams)
    err = float(jnp.max(jnp.abs(out - ref)))
    if err < 1e-3:
        print("KERNEL_OK")
    else:
        raise SystemExit(f"mismatch: max abs err {err}")
</pallas_src>

<mosaic_0001>
module attributes {stable_mosaic.version = 11 : i64} {
  func.func @kernel(%arg0: i32, %arg1: memref<1x16x64xf32, #tpu.memory_space<vmem>>, %arg2: memref<64x128xf32, #tpu.memory_space<vmem>>, %arg3: memref<9x128xf32, #tpu.memory_space<vmem>>, %arg4: memref<9x128xf32, #tpu.memory_space<vmem>>, %arg5: memref<128x128xf32, #tpu.memory_space<vmem>>, %arg6: memref<128x128xf32, #tpu.memory_space<vmem>>, %arg7: memref<64x128xf32, #tpu.memory_space<vmem>>, %arg8: memref<3x128xf32, #tpu.memory_space<vmem>>, %arg9: memref<1x16x128xf32, #tpu.memory_space<vmem>>) attributes {dimension_semantics = [#tpu.dimension_semantics<parallel>], iteration_bounds = array<i64: 2>, scalar_prefetch = 0 : i64, scratch_operands = 0 : i64, tpu.core_type = #tpu.core_type<tc>, window_params = [{transform_indices = @transform_0, window_bounds = array<i64: 1, 16, 64>}, {pipeline_mode = #tpu.pipeline_mode<synchronous>, transform_indices = @transform_1, window_bounds = array<i64: 64, 128>}, {pipeline_mode = #tpu.pipeline_mode<synchronous>, transform_indices = @transform_2, window_bounds = array<i64: 9, 128>}, {pipeline_mode = #tpu.pipeline_mode<synchronous>, transform_indices = @transform_3, window_bounds = array<i64: 9, 128>}, {pipeline_mode = #tpu.pipeline_mode<synchronous>, transform_indices = @transform_4, window_bounds = array<i64: 128, 128>}, {pipeline_mode = #tpu.pipeline_mode<synchronous>, transform_indices = @transform_5, window_bounds = array<i64: 128, 128>}, {pipeline_mode = #tpu.pipeline_mode<synchronous>, transform_indices = @transform_6, window_bounds = array<i64: 64, 128>}, {pipeline_mode = #tpu.pipeline_mode<synchronous>, transform_indices = @transform_7, window_bounds = array<i64: 3, 128>}, {transform_indices = @transform_8, window_bounds = array<i64: 1, 16, 128>}]} {
    %0 = tpu.iota {dimensions = array<i32: 1>} : vector<16x128xi32>
    %1 = tpu.iota {dimensions = array<i32: 0>} : vector<16x128xi32>
    %c8_i32 = arith.constant 8 : i32
    %2 = vector.broadcast %c8_i32 : i32 to vector<16x128xi32>
    %3 = arith.cmpi sge, %0, %2 : vector<16x128xi32>
    %c120_i32 = arith.constant 120 : i32
    %4 = vector.broadcast %c120_i32 : i32 to vector<16x128xi32>
    %5 = arith.cmpi slt, %0, %4 : vector<16x128xi32>
    %c1_i32 = arith.constant 1 : i32
    %6 = vector.broadcast %c1_i32 : i32 to vector<16x128xi32>
    %7 = arith.cmpi sge, %1, %6 : vector<16x128xi32>
    %c15_i32 = arith.constant 15 : i32
    %8 = vector.broadcast %c15_i32 : i32 to vector<16x128xi32>
    %9 = arith.cmpi slt, %1, %8 : vector<16x128xi32>
    %c0 = arith.constant 0 : index
    %c0_0 = arith.constant 0 : index
    %c0_1 = arith.constant 0 : index
    %10 = vector.load %arg1[%c0, %c0_0, %c0_1] : memref<1x16x64xf32, #tpu.memory_space<vmem>>, vector<1x16x64xf32>
    %11 = vector.shape_cast %10 : vector<1x16x64xf32> to vector<16x64xf32>
    %c0_2 = arith.constant 0 : index
    %c0_3 = arith.constant 0 : index
    %12 = vector.load %arg2[%c0_2, %c0_3] : memref<64x128xf32, #tpu.memory_space<vmem>>, vector<64x128xf32>
    %cst = arith.constant dense<0.000000e+00> : vector<16x128xf32>
    %13 = tpu.matmul %11, %12, %cst {dimension_numbers = #tpu.dot_dimension_numbers<[1], [0], [0], [1], [0, 0, 1, 1], [], []>, precision = #tpu.contract_precision<fp32>} : vector<16x64xf32>, vector<64x128xf32>, vector<16x128xf32> -> vector<16x128xf32>
    %c8_i32_4 = arith.constant 8 : i32
    %14 = tpu.dynamic_rotate %13 by %c8_i32_4 dim 1 : vector<16x128xf32>, i32 -> vector<16x128xf32>
    %cst_5 = arith.constant 0.000000e+00 : f32
    %15 = vector.broadcast %cst_5 : f32 to vector<16x128xf32>
    %16 = arith.select %3, %14, %15 : vector<16x128xi1>, vector<16x128xf32>
    %c120_i32_6 = arith.constant 120 : i32
    %17 = tpu.dynamic_rotate %13 by %c120_i32_6 dim 1 : vector<16x128xf32>, i32 -> vector<16x128xf32>
    %cst_7 = arith.constant 0.000000e+00 : f32
    %18 = vector.broadcast %cst_7 : f32 to vector<16x128xf32>
    %19 = arith.select %5, %17, %18 : vector<16x128xi1>, vector<16x128xf32>
    %c0_8 = arith.constant 0 : index
    %c0_9 = arith.constant 0 : index
    %20 = vector.load %arg3[%c0_8, %c0_9] : memref<9x128xf32, #tpu.memory_space<vmem>>, vector<1x128xf32>
    %21 = vector.shape_cast %20 : vector<1x128xf32> to vector<128xf32>
    %22 = vector.shape_cast %21 : vector<128xf32> to vector<1x128xf32>
    %23 = vector.broadcast %22 : vector<1x128xf32> to vector<16x128xf32>
    %24 = arith.mulf %16, %23 : vector<16x128xf32>
    %c1 = arith.constant 1 : index
    %c0_10 = arith.constant 0 : index
    %25 = vector.load %arg3[%c1, %c0_10] : memref<9x128xf32, #tpu.memory_space<vmem>>, vector<1x128xf32>
    %26 = vector.shape_cast %25 : vector<1x128xf32> to vector<128xf32>
    %27 = vector.shape_cast %26 : vector<128xf32> to vector<1x128xf32>
    %28 = vector.broadcast %27 : vector<1x128xf32> to vector<16x128xf32>
    %29 = arith.mulf %13, %28 : vector<16x128xf32>
    %30 = arith.addf %24, %29 : vector<16x128xf32>
    %c2 = arith.constant 2 : index
    %c0_11 = arith.constant 0 : index
    %31 = vector.load %arg3[%c2, %c0_11] : memref<9x128xf32, #tpu.memory_space<vmem>>, vector<1x128xf32>
    %32 = vector.shape_cast %31 : vector<1x128xf32> to vector<128xf32>
    %33 = vector.shape_cast %32 : vector<128xf32> to vector<1x128xf32>
    %34 = vector.broadcast %33 : vector<1x128xf32> to vector<16x128xf32>
    %35 = arith.mulf %19, %34 : vector<16x128xf32>
    %36 = arith.addf %30, %35 : vector<16x128xf32>
    %c3 = arith.constant 3 : index
    %c0_12 = arith.constant 0 : index
    %37 = vector.load %arg3[%c3, %c0_12] : memref<9x128xf32, #tpu.memory_space<vmem>>, vector<1x128xf32>
    %38 = vector.shape_cast %37 : vector<1x128xf32> to vector<128xf32>
    %39 = vector.shape_cast %38 : vector<128xf32> to vector<1x128xf32>
    %40 = vector.broadcast %39 : vector<1x128xf32> to vector<16x128xf32>
    %41 = arith.mulf %16, %40 : vector<16x128xf32>
    %c4 = arith.constant 4 : index
    %c0_13 = arith.constant 0 : index
    %42 = vector.load %arg3[%c4, %c0_13] : memref<9x128xf32, #tpu.memory_space<vmem>>, vector<1x128xf32>
    %43 = vector.shape_cast %42 : vector<1x128xf32> to vector<128xf32>
    %44 = vector.shape_cast %43 : vector<128xf32> to vector<1x128xf32>
    %45 = vector.broadcast %44 : vector<1x128xf32> to vector<16x128xf32>
    %46 = arith.mulf %13, %45 : vector<16x128xf32>
    %47 = arith.addf %41, %46 : vector<16x128xf32>
    %c5 = arith.constant 5 : index
    %c0_14 = arith.constant 0 : index
    %48 = vector.load %arg3[%c5, %c0_14] : memref<9x128xf32, #tpu.memory_space<vmem>>, vector<1x128xf32>
    %49 = vector.shape_cast %48 : vector<1x128xf32> to vector<128xf32>
    %50 = vector.shape_cast %49 : vector<128xf32> to vector<1x128xf32>
    %51 = vector.broadcast %50 : vector<1x128xf32> to vector<16x128xf32>
    %52 = arith.mulf %19, %51 : vector<16x128xf32>
    %53 = arith.addf %47, %52 : vector<16x128xf32>
    %c6 = arith.constant 6 : index
    %c0_15 = arith.constant 0 : index
    %54 = vector.load %arg3[%c6, %c0_15] : memref<9x128xf32, #tpu.memory_space<vmem>>, vector<1x128xf32>
    %55 = vector.shape_cast %54 : vector<1x128xf32> to vector<128xf32>
    %56 = vector.shape_cast %55 : vector<128xf32> to vector<1x128xf32>
    %57 = vector.broadcast %56 : vector<1x128xf32> to vector<16x128xf32>
    %58 = arith.mulf %16, %57 : vector<16x128xf32>
    %c7 = arith.constant 7 : index
    %c0_16 = arith.constant 0 : index
    %59 = vector.load %arg3[%c7, %c0_16] : memref<9x128xf32, #tpu.memory_space<vmem>>, vector<1x128xf32>
    %60 = vector.shape_cast %59 : vector<1x128xf32> to vector<128xf32>
    %61 = vector.shape_cast %60 : vector<128xf32> to vector<1x128xf32>
    %62 = vector.broadcast %61 : vector<1x128xf32> to vector<16x128xf32>
    %63 = arith.mulf %13, %62 : vector<16x128xf32>
    %64 = arith.addf %58, %63 : vector<16x128xf32>
    %c8 = arith.constant 8 : index
    %c0_17 = arith.constant 0 : index
    %65 = vector.load %arg3[%c8, %c0_17] : memref<9x128xf32, #tpu.memory_space<vmem>>, vector<1x128xf32>
    %66 = vector.shape_cast %65 : vector<1x128xf32> to vector<128xf32>
    %67 = vector.shape_cast %66 : vector<128xf32> to vector<1x128xf32>
    %68 = vector.broadcast %67 : vector<1x128xf32> to vector<16x128xf32>
    %69 = arith.mulf %19, %68 : vector<16x128xf32>
    %70 = arith.addf %64, %69 : vector<16x128xf32>
    %c1_i32_18 = arith.constant 1 : i32
    %71 = tpu.dynamic_rotate %36 by %c1_i32_18 dim 0 : vector<16x128xf32>, i32 -> vector<16x128xf32>
    %cst_19 = arith.constant 0.000000e+00 : f32
    %72 = vector.broadcast %cst_19 : f32 to vector<16x128xf32>
    %73 = arith.select %7, %71, %72 : vector<16x128xi1>, vector<16x128xf32>
    %74 = arith.addf %53, %73 : vector<16x128xf32>
    %c15_i32_20 = arith.constant 15 : i32
    %75 = tpu.dynamic_rotate %70 by %c15_i32_20 dim 0 : vector<16x128xf32>, i32 -> vector<16x128xf32>
    %cst_21 = arith.constant 0.000000e+00 : f32
    %76 = vector.broadcast %cst_21 : f32 to vector<16x128xf32>
    %77 = arith.select %9, %75, %76 : vector<16x128xi1>, vector<16x128xf32>
    %78 = arith.addf %74, %77 : vector<16x128xf32>
    %c0_22 = arith.constant 0 : index
    %c0_23 = arith.constant 0 : index
    %79 = vector.load %arg5[%c0_22, %c0_23] : memref<128x128xf32, #tpu.memory_space<vmem>>, vector<128x128xf32>
    %cst_24 = arith.constant dense<0.000000e+00> : vector<16x128xf32>
    %80 = tpu.matmul %78, %79, %cst_24 {dimension_numbers = #tpu.dot_dimension_numbers<[1], [0], [0], [1], [0, 0, 1, 1], [], []>, precision = #tpu.contract_precision<fp32>} : vector<16x128xf32>, vector<128x128xf32>, vector<16x128xf32> -> vector<16x128xf32>
    %c0_25 = arith.constant 0 : index
    %c0_26 = arith.constant 0 : index
    %81 = vector.load %arg8[%c0_25, %c0_26] : memref<3x128xf32, #tpu.memory_space<vmem>>, vector<1x128xf32>
    %82 = vector.shape_cast %81 : vector<1x128xf32> to vector<128xf32>
    %83 = vector.shape_cast %82 : vector<128xf32> to vector<1x128xf32>
    %84 = vector.broadcast %83 : vector<1x128xf32> to vector<16x128xf32>
    %85 = arith.addf %80, %84 : vector<16x128xf32>
    %cst_27 = arith.constant 0.000000e+00 : f32
    %86 = vector.broadcast %cst_27 : f32 to vector<16x128xf32>
    %87 = arith.maximumf %85, %86 : vector<16x128xf32>
    %c8_i32_28 = arith.constant 8 : i32
    %88 = tpu.dynamic_rotate %87 by %c8_i32_28 dim 1 : vector<16x128xf32>, i32 -> vector<16x128xf32>
    %cst_29 = arith.constant 0.000000e+00 : f32
    %89 = vector.broadcast %cst_29 : f32 to vector<16x128xf32>
    %90 = arith.select %3, %88, %89 : vector<16x128xi1>, vector<16x128xf32>
    %c120_i32_30 = arith.constant 120 : i32
    %91 = tpu.dynamic_rotate %87 by %c120_i32_30 dim 1 : vector<16x128xf32>, i32 -> vector<16x128xf32>
    %cst_31 = arith.constant 0.000000e+00 : f32
    %92 = vector.broadcast %cst_31 : f32 to vector<16x128xf32>
    %93 = arith.select %5, %91, %92 : vector<16x128xi1>, vector<16x128xf32>
    %c0_32 = arith.constant 0 : index
    %c0_33 = arith.constant 0 : index
    %94 = vector.load %arg4[%c0_32, %c0_33] : memref<9x128xf32, #tpu.memory_space<vmem>>, vector<1x128xf32>
    %95 = vector.shape_cast %94 : vector<1x128xf32> to vector<128xf32>
    %96 = vector.shape_cast %95 : vector<128xf32> to vector<1x128xf32>
    %97 = vector.broadcast %96 : vector<1x128xf32> to vector<16x128xf32>
    %98 = arith.mulf %90, %97 : vector<16x128xf32>
    %c1_34 = arith.constant 1 : index
    %c0_35 = arith.constant 0 : index
    %99 = vector.load %arg4[%c1_34, %c0_35] : memref<9x128xf32, #tpu.memory_space<vmem>>, vector<1x128xf32>
    %100 = vector.shape_cast %99 : vector<1x128xf32> to vector<128xf32>
    %101 = vector.shape_cast %100 : vector<128xf32> to vector<1x128xf32>
    %102 = vector.broadcast %101 : vector<1x128xf32> to vector<16x128xf32>
    %103 = arith.mulf %87, %102 : vector<16x128xf32>
    %104 = arith.addf %98, %103 : vector<16x128xf32>
    %c2_36 = arith.constant 2 : index
    %c0_37 = arith.constant 0 : index
    %105 = vector.load %arg4[%c2_36, %c0_37] : memref<9x128xf32, #tpu.memory_space<vmem>>, vector<1x128xf32>
    %106 = vector.shape_cast %105 : vector<1x128xf32> to vector<128xf32>
    %107 = vector.shape_cast %106 : vector<128xf32> to vector<1x128xf32>
    %108 = vector.broadcast %107 : vector<1x128xf32> to vector<16x128xf32>
    %109 = arith.mulf %93, %108 : vector<16x128xf32>
    %110 = arith.addf %104, %109 : vector<16x128xf32>
    %c3_38 = arith.constant 3 : index
    %c0_39 = arith.constant 0 : index
    %111 = vector.load %arg4[%c3_38, %c0_39] : memref<9x128xf32, #tpu.memory_space<vmem>>, vector<1x128xf32>
    %112 = vector.shape_cast %111 : vector<1x128xf32> to vector<128xf32>
    %113 = vector.shape_cast %112 : vector<128xf32> to vector<1x128xf32>
    %114 = vector.broadcast %113 : vector<1x128xf32> to vector<16x128xf32>
    %115 = arith.mulf %90, %114 : vector<16x128xf32>
    %c4_40 = arith.constant 4 : index
    %c0_41 = arith.constant 0 : index
    %116 = vector.load %arg4[%c4_40, %c0_41] : memref<9x128xf32, #tpu.memory_space<vmem>>, vector<1x128xf32>
    %117 = vector.shape_cast %116 : vector<1x128xf32> to vector<128xf32>
    %118 = vector.shape_cast %117 : vector<128xf32> to vector<1x128xf32>
    %119 = vector.broadcast %118 : vector<1x128xf32> to vector<16x128xf32>
    %120 = arith.mulf %87, %119 : vector<16x128xf32>
    %121 = arith.addf %115, %120 : vector<16x128xf32>
    %c5_42 = arith.constant 5 : index
    %c0_43 = arith.constant 0 : index
    %122 = vector.load %arg4[%c5_42, %c0_43] : memref<9x128xf32, #tpu.memory_space<vmem>>, vector<1x128xf32>
    %123 = vector.shape_cast %122 : vector<1x128xf32> to vector<128xf32>
    %124 = vector.shape_cast %123 : vector<128xf32> to vector<1x128xf32>
    %125 = vector.broadcast %124 : vector<1x128xf32> to vector<16x128xf32>
    %126 = arith.mulf %93, %125 : vector<16x128xf32>
    %127 = arith.addf %121, %126 : vector<16x128xf32>
    %c6_44 = arith.constant 6 : index
    %c0_45 = arith.constant 0 : index
    %128 = vector.load %arg4[%c6_44, %c0_45] : memref<9x128xf32, #tpu.memory_space<vmem>>, vector<1x128xf32>
    %129 = vector.shape_cast %128 : vector<1x128xf32> to vector<128xf32>
    %130 = vector.shape_cast %129 : vector<128xf32> to vector<1x128xf32>
    %131 = vector.broadcast %130 : vector<1x128xf32> to vector<16x128xf32>
    %132 = arith.mulf %90, %131 : vector<16x128xf32>
    %c7_46 = arith.constant 7 : index
    %c0_47 = arith.constant 0 : index
    %133 = vector.load %arg4[%c7_46, %c0_47] : memref<9x128xf32, #tpu.memory_space<vmem>>, vector<1x128xf32>
    %134 = vector.shape_cast %133 : vector<1x128xf32> to vector<128xf32>
    %135 = vector.shape_cast %134 : vector<128xf32> to vector<1x128xf32>
    %136 = vector.broadcast %135 : vector<1x128xf32> to vector<16x128xf32>
    %137 = arith.mulf %87, %136 : vector<16x128xf32>
    %138 = arith.addf %132, %137 : vector<16x128xf32>
    %c8_48 = arith.constant 8 : index
    %c0_49 = arith.constant 0 : index
    %139 = vector.load %arg4[%c8_48, %c0_49] : memref<9x128xf32, #tpu.memory_space<vmem>>, vector<1x128xf32>
    %140 = vector.shape_cast %139 : vector<1x128xf32> to vector<128xf32>
    %141 = vector.shape_cast %140 : vector<128xf32> to vector<1x128xf32>
    %142 = vector.broadcast %141 : vector<1x128xf32> to vector<16x128xf32>
    %143 = arith.mulf %93, %142 : vector<16x128xf32>
    %144 = arith.addf %138, %143 : vector<16x128xf32>
    %c1_i32_50 = arith.constant 1 : i32
    %145 = tpu.dynamic_rotate %110 by %c1_i32_50 dim 0 : vector<16x128xf32>, i32 -> vector<16x128xf32>
    %cst_51 = arith.constant 0.000000e+00 : f32
    %146 = vector.broadcast %cst_51 : f32 to vector<16x128xf32>
    %147 = arith.select %7, %145, %146 : vector<16x128xi1>, vector<16x128xf32>
    %148 = arith.addf %127, %147 : vector<16x128xf32>
    %c15_i32_52 = arith.constant 15 : i32
    %149 = tpu.dynamic_rotate %144 by %c15_i32_52 dim 0 : vector<16x128xf32>, i32 -> vector<16x128xf32>
    %cst_53 = arith.constant 0.000000e+00 : f32
    %150 = vector.broadcast %cst_53 : f32 to vector<16x128xf32>
    %151 = arith.select %9, %149, %150 : vector<16x128xi1>, vector<16x128xf32>
    %152 = arith.addf %148, %151 : vector<16x128xf32>
    %c0_54 = arith.constant 0 : index
    %c0_55 = arith.constant 0 : index
    %153 = vector.load %arg6[%c0_54, %c0_55] : memref<128x128xf32, #tpu.memory_space<vmem>>, vector<128x128xf32>
    %cst_56 = arith.constant dense<0.000000e+00> : vector<16x128xf32>
    %154 = tpu.matmul %152, %153, %cst_56 {dimension_numbers = #tpu.dot_dimension_numbers<[1], [0], [0], [1], [0, 0, 1, 1], [], []>, precision = #tpu.contract_precision<fp32>} : vector<16x128xf32>, vector<128x128xf32>, vector<16x128xf32> -> vector<16x128xf32>
    %c1_57 = arith.constant 1 : index
    %c0_58 = arith.constant 0 : index
    %155 = vector.load %arg8[%c1_57, %c0_58] : memref<3x128xf32, #tpu.memory_space<vmem>>, vector<1x128xf32>
    %156 = vector.shape_cast %155 : vector<1x128xf32> to vector<128xf32>
    %157 = vector.shape_cast %156 : vector<128xf32> to vector<1x128xf32>
    %158 = vector.broadcast %157 : vector<1x128xf32> to vector<16x128xf32>
    %159 = arith.addf %154, %158 : vector<16x128xf32>
    %cst_59 = arith.constant 0.000000e+00 : f32
    %160 = vector.broadcast %cst_59 : f32 to vector<16x128xf32>
    %161 = arith.maximumf %159, %160 : vector<16x128xf32>
    %c0_60 = arith.constant 0 : index
    %c0_61 = arith.constant 0 : index
    %162 = vector.load %arg7[%c0_60, %c0_61] : memref<64x128xf32, #tpu.memory_space<vmem>>, vector<64x128xf32>
    %cst_62 = arith.constant dense<0.000000e+00> : vector<16x128xf32>
    %163 = tpu.matmul %11, %162, %cst_62 {dimension_numbers = #tpu.dot_dimension_numbers<[1], [0], [0], [1], [0, 0, 1, 1], [], []>, precision = #tpu.contract_precision<fp32>} : vector<16x64xf32>, vector<64x128xf32>, vector<16x128xf32> -> vector<16x128xf32>
    %c2_63 = arith.constant 2 : index
    %c0_64 = arith.constant 0 : index
    %164 = vector.load %arg8[%c2_63, %c0_64] : memref<3x128xf32, #tpu.memory_space<vmem>>, vector<1x128xf32>
    %165 = vector.shape_cast %164 : vector<1x128xf32> to vector<128xf32>
    %166 = vector.shape_cast %165 : vector<128xf32> to vector<1x128xf32>
    %167 = vector.broadcast %166 : vector<1x128xf32> to vector<16x128xf32>
    %168 = arith.addf %163, %167 : vector<16x128xf32>
    %169 = arith.addf %161, %168 : vector<16x128xf32>
    %cst_65 = arith.constant 0.000000e+00 : f32
    %170 = vector.broadcast %cst_65 : f32 to vector<16x128xf32>
    %171 = arith.maximumf %169, %170 : vector<16x128xf32>
    %c0_66 = arith.constant 0 : index
    %c0_67 = arith.constant 0 : index
    %c0_68 = arith.constant 0 : index
    %172 = vector.load %arg9[%c0_66, %c0_67, %c0_68] : memref<1x16x128xf32, #tpu.memory_space<vmem>>, vector<1x16x128xf32>
    %173 = vector.shape_cast %172 : vector<1x16x128xf32> to vector<16x128xf32>
    %174 = vector.shape_cast %171 : vector<16x128xf32> to vector<1x16x128xf32>
    tpu.vector_store %arg9[%c0_66, %c0_67, %c0_68], %174 {strides = array<i32>} : memref<1x16x128xf32, #tpu.memory_space<vmem>>, vector<1x16x128xf32>,
    return
  }
  func.func @transform_0(%arg0: i32) -> (i32, i32, i32) {
    %c0_i32 = arith.constant 0 : i32
    %c0_i32_0 = arith.constant 0 : i32
    %c0_i32_1 = arith.constant 0 : i32
    return %arg0, %c0_i32, %c0_i32_0 : i32, i32, i32
  }
  func.func @transform_1(%arg0: i32) -> (i32, i32) {
    %c0_i32 = arith.constant 0 : i32
    %c0_i32_0 = arith.constant 0 : i32
    %c0_i32_1 = arith.constant 0 : i32
    return %c0_i32, %c0_i32_0 : i32, i32
  }
  func.func @transform_2(%arg0: i32) -> (i32, i32) {
    %c0_i32 = arith.constant 0 : i32
    %c0_i32_0 = arith.constant 0 : i32
    %c0_i32_1 = arith.constant 0 : i32
    return %c0_i32, %c0_i32_0 : i32, i32
  }
  func.func @transform_3(%arg0: i32) -> (i32, i32) {
    %c0_i32 = arith.constant 0 : i32
    %c0_i32_0 = arith.constant 0 : i32
    %c0_i32_1 = arith.constant 0 : i32
    return %c0_i32, %c0_i32_0 : i32, i32
  }
  func.func @transform_4(%arg0: i32) -> (i32, i32) {
    %c0_i32 = arith.constant 0 : i32
    %c0_i32_0 = arith.constant 0 : i32
    %c0_i32_1 = arith.constant 0 : i32
    return %c0_i32, %c0_i32_0 : i32, i32
  }
  func.func @transform_5(%arg0: i32) -> (i32, i32) {
    %c0_i32 = arith.constant 0 : i32
    %c0_i32_0 = arith.constant 0 : i32
    %c0_i32_1 = arith.constant 0 : i32
    return %c0_i32, %c0_i32_0 : i32, i32
  }
  func.func @transform_6(%arg0: i32) -> (i32, i32) {
    %c0_i32 = arith.constant 0 : i32
    %c0_i32_0 = arith.constant 0 : i32
    %c0_i32_1 = arith.constant 0 : i32
    return %c0_i32, %c0_i32_0 : i32, i32
  }
  func.func @transform_7(%arg0: i32) -> (i32, i32) {
    %c0_i32 = arith.constant 0 : i32
    %c0_i32_0 = arith.constant 0 : i32
    %c0_i32_1 = arith.constant 0 : i32
    return %c0_i32, %c0_i32_0 : i32, i32
  }
  func.func @transform_8(%arg0: i32) -> (i32, i32, i32) {
    %c0_i32 = arith.constant 0 : i32
    %c0_i32_0 = arith.constant 0 : i32
    %c0_i32_1 = arith.constant 0 : i32
    return %arg0, %c0_i32, %c0_i32_0 : i32, i32, i32
  }
}

</mosaic_0001>

<llo_original>
// kernel: tpu_custom_call.1
$region0: #{tpu_custom_call.1}
  #allocation0 [shape = 'u32[]', space=smem, size = 0x4, offset = 0x4, fixed_abs, tag = 'smem constant byte address 0x4 - core index']
  #allocation1 [shape = 'u32[144,128]{1,0:T(1,128)}', space=vmem, size = 0x12000, scoped, tag = 'internal scratch']
  %s0 = inlined_call_operand.hbm [shape: f32[2,16,64], index: 0, kind: input, shape index: {}]
  %s1 = inlined_call_operand.hbm [shape: f32[64,128], index: 1, kind: input, shape index: {}]
  %s2 = inlined_call_operand.hbm [shape: f32[9,128], index: 2, kind: input, shape index: {}]
  %s3 = inlined_call_operand.hbm [shape: f32[9,128], index: 3, kind: input, shape index: {}]
  %s4 = inlined_call_operand.hbm [shape: f32[128,128], index: 4, kind: input, shape index: {}]
  %s5 = inlined_call_operand.hbm [shape: f32[128,128], index: 5, kind: input, shape index: {}]
  %s6 = inlined_call_operand.hbm [shape: f32[64,128], index: 6, kind: input, shape index: {}]
  %s7 = inlined_call_operand.vmem [shape: f32[3,128], index: 7, kind: input, shape index: {}]
  %s8 = inlined_call_operand.hbm [shape: f32[2,16,128], index: 8, kind: output, shape index: {}]
  %s9 = sld [smem:[#allocation0]]
  $region93: #{tpu_custom_call.1} parent=0
    _
  %s11 = ssub.s32 1, %s9
  %s12 = scalar_select 0, %s11, %s9
  $region1: #{tpu_custom_call.1} parent=0
    #allocation2 [shape = 'u8[16384]{0}', space=vmem, size = 0x4000, scoped, tag = 'input window, operand 0']
    #allocation3 [shape = 's32[2]{0}', space=sflag, size = 0x8, scoped, tag = 'scoped memory for tpu_custom_call.1']
    #allocation4 [shape = 's32[2]{0}', space=sflag, size = 0x8, scoped, tag = 'scoped memory for tpu_custom_call.1']
    #allocation5 [shape = 'u8[32768]{0}', space=vmem, size = 0x8000, scoped, tag = 'input window, operand 1, single buffered']
    #allocation6 [shape = 's32[1]{0}', space=sflag, size = 0x4, scoped, tag = 'scoped memory for tpu_custom_call.1']
    #allocation7 [shape = 'u8[8192]{0}', space=vmem, size = 0x2000, scoped, tag = 'input window, operand 2, single buffered']
    #allocation8 [shape = 'u8[8192]{0}', space=vmem, size = 0x2000, scoped, tag = 'input window, operand 3, single buffered']
    #allocation9 [shape = 's32[1]{0}', space=sflag, size = 0x4, scoped, tag = 'scoped memory for tpu_custom_call.1']
    #allocation10 [shape = 'u8[65536]{0}', space=vmem, size = 0x10000, scoped, tag = 'input window, operand 4, single buffered']
    #allocation11 [shape = 'u8[65536]{0}', space=vmem, size = 0x10000, scoped, tag = 'input window, operand 5, single buffered']
    #allocation12 [shape = 's32[1]{0}', space=sflag, size = 0x4, scoped, tag = 'scoped memory for tpu_custom_call.1']
    #allocation13 [shape = 'u8[32768]{0}', space=vmem, size = 0x8000, scoped, tag = 'input window, operand 6, single buffered']
    #allocation14 [shape = 'u8[16384]{0}', space=vmem, size = 0x4000, scoped, tag = 'output window, operand 0']
    %13 = vsyncpa [#allocation3], 0
    %s14 = scalar_lea.sflag [#allocation3], 1
    %15 = vsyncpa %s14, 0
    %16 = vsyncpa [#allocation6], 0
    %17 = vsyncpa [#allocation9], 0
    %18 = vsyncpa [#allocation12], 0
    %19 = vsyncpa [#allocation4], 0
    %s20 = scalar_lea.sflag [#allocation4], 1
    %21 = vsyncpa %s20, 0
    loop: start=0, step=1, limit=4
    $region2: #{tpu_custom_call.1} parent=1 // loop_pre_header
      _
    $region3: #{tpu_custom_call.1} parent=1 // loop_header
      %s23 = sphi 0, %s27
      %p24 = scmp.ge.s32.totalorder %s23, 4
      %s33 = sphi 0, %s35
      %s36 = sphi 0, %s33
      %s37 = sphi 0, %s36
      %s53 = sphi 0, %s37
      %s57 = sphi 0, %s57
      %s59 = sphi 0, %s57
      %s60 = sphi 0, %s59
      %s74 = sphi 0, %s60
      %s78 = sphi 0, %s78
      %s80 = sphi 0, %s78
      %s81 = sphi 0, %s80
      %s95 = sphi 0, %s81
      %s99 = sphi 0, %s99
      %s101 = sphi 0, %s99
      %s102 = sphi 0, %s101
      %s116 = sphi 0, %s102
      %s120 = sphi 0, %s120
      %s122 = sphi 0, %s120
      %s123 = sphi 0, %s122
      %s137 = sphi 0, %s123
      %s141 = sphi 0, %s141
      %s143 = sphi 0, %s141
      %s144 = sphi 0, %s143
      %s158 = sphi 0, %s144
      %s162 = sphi 0, %s162
      %s164 = sphi 0, %s162
      %s165 = sphi 0, %s164
      %s179 = sphi 0, %s165
      %s183 = sphi 0, %s183
      %s185 = sphi 0, %s183
      %s186 = sphi 0, %s185
      %s200 = sphi 0, %s186
      %s206 = sphi 0, %s208
      %s209 = sphi 0, %s206
      %s210 = sphi 0, %s209
      %s226 = sphi 0, %s210
    $region4: #{tpu_custom_call.1} parent=1 // loop_header_branch
      %26 = sbr.rel (%p24) target = $region8
    $region5: #{tpu_custom_call.1} parent=1 // loop_body
      %s28 = ssub.s32 %s23, 1
      %s29 = ssub.s32 %s23, 2
      %s30 = sadd.s32 %s23, 1
      %s31 = ssub.s32 %s23, %s30
      %p32 = scmp.eq.s32.totalorder %s31, 0
      %s34 = sadd.s32 %s33, 1
      %s35 = scalar_select %p32, %s33, %s34
      %p38 = pneg %p32
      %p39 = scmp.eq.s32.totalorder %s23, 1
      %p40 = por %p38, %p39
      %p41 = scmp.ne.s32.totalorder %s33, %s36
      %p42 = scmp.eq.s32.totalorder %s23, 0
      %p43 = por %p41, %p42
      %p44 = scmp.ne.s32.totalorder %s33, %s36
      %p45 = scmp.eq.s32.totalorder %s28, 1
      %p46 = por %p44, %p45
      %p47 = scmp.ne.s32.totalorder %s36, %s37
      %p48 = scmp.eq.s32.totalorder %s28, 0
      %p49 = por %p47, %p48
      %p50 = scmp.ne.s32.totalorder %s36, %s37
      %p51 = scmp.eq.s32.totalorder %s29, 1
      %p52 = por %p50, %p51
      %p54 = scmp.ne.s32.totalorder %s37, %s53
      %p55 = scmp.eq.s32.totalorder %s29, 0
      %p56 = por %p54, %p55
      %s58 = sadd.s32 %s57, 1
      %p61 = scmp.eq.s32.totalorder %s23, 1
      %p62 = scmp.ne.s32.totalorder %s57, %s59
      %p63 = scmp.eq.s32.totalorder %s23, 0
      %p64 = por %p62, %p63
      %p65 = scmp.ne.s32.totalorder %s57, %s59
      %p66 = scmp.eq.s32.totalorder %s28, 1
      %p67 = por %p65, %p66
      %p68 = scmp.ne.s32.totalorder %s59, %s60
      %p69 = scmp.eq.s32.totalorder %s28, 0
      %p70 = por %p68, %p69
      %p71 = scmp.ne.s32.totalorder %s59, %s60
      %p72 = scmp.eq.s32.totalorder %s29, 1
      %p73 = por %p71, %p72
      %p75 = scmp.ne.s32.totalorder %s60, %s74
      %p76 = scmp.eq.s32.totalorder %s29, 0
      %p77 = por %p75, %p76
      %s79 = sadd.s32 %s78, 1
      %p82 = scmp.eq.s32.totalorder %s23, 1
      %p83 = scmp.ne.s32.totalorder %s78, %s80
      %p84 = scmp.eq.s32.totalorder %s23, 0
      %p85 = por %p83, %p84
      %p86 = scmp.ne.s32.totalorder %s78, %s80
      %p87 = scmp.eq.s32.totalorder %s28, 1
      %p88 = por %p86, %p87
      %p89 = scmp.ne.s32.totalorder %s80, %s81
      %p90 = scmp.eq.s32.totalorder %s28, 0
      %p91 = por %p89, %p90
      %p92 = scmp.ne.s32.totalorder %s80, %s81
      %p93 = scmp.eq.s32.totalorder %s29, 1
      %p94 = por %p92, %p93
      %p96 = scmp.ne.s32.totalorder %s81, %s95
      %p97 = scmp.eq.s32.totalorder %s29, 0
      %p98 = por %p96, %p97
      %s100 = sadd.s32 %s99, 1
      %p103 = scmp.eq.s32.totalorder %s23, 1
      %p104 = scmp.ne.s32.totalorder %s99, %s101
      %p105 = scmp.eq.s32.totalorder %s23, 0
      %p106 = por %p104, %p105
      %p107 = scmp.ne.s32.totalorder %s99, %s101
      %p108 = scmp.eq.s32.totalorder %s28, 1
      %p109 = por %p107, %p108
      %p110 = scmp.ne.s32.totalorder %s101, %s102
      %p111 = scmp.eq.s32.totalorder %s28, 0
      %p112 = por %p110, %p111
      %p113 = scmp.ne.s32.totalorder %s101, %s102
      %p114 = scmp.eq.s32.totalorder %s29, 1
      %p115 = por %p113, %p114
      %p117 = scmp.ne.s32.totalorder %s102, %s116
      %p118 = scmp.eq.s32.totalorder %s29, 0
      %p119 = por %p117, %p118
      %s121 = sadd.s32 %s120, 1
      %p124 = scmp.eq.s32.totalorder %s23, 1
      %p125 = scmp.ne.s32.totalorder %s120, %s122
      %p126 = scmp.eq.s32.totalorder %s23, 0
      %p127 = por %p125, %p126
      %p128 = scmp.ne.s32.totalorder %s120, %s122
      %p129 = scmp.eq.s32.totalorder %s28, 1
      %p130 = por %p128, %p129
      %p131 = scmp.ne.s32.totalorder %s122, %s123
      %p132 = scmp.eq.s32.totalorder %s28, 0
      %p133 = por %p131, %p132
      %p134 = scmp.ne.s32.totalorder %s122, %s123
      %p135 = scmp.eq.s32.totalorder %s29, 1
      %p136 = por %p134, %p135
      %p138 = scmp.ne.s32.totalorder %s123, %s137
      %p139 = scmp.eq.s32.totalorder %s29, 0
      %p140 = por %p138, %p139
      %s142 = sadd.s32 %s141, 1
      %p145 = scmp.eq.s32.totalorder %s23, 1
      %p146 = scmp.ne.s32.totalorder %s141, %s143
      %p147 = scmp.eq.s32.totalorder %s23, 0
      %p148 = por %p146, %p147
      %p149 = scmp.ne.s32.totalorder %s141, %s143
      %p150 = scmp.eq.s32.totalorder %s28, 1
      %p151 = por %p149, %p150
      %p152 = scmp.ne.s32.totalorder %s143, %s144
      %p153 = scmp.eq.s32.totalorder %s28, 0
      %p154 = por %p152, %p153
      %p155 = scmp.ne.s32.totalorder %s143, %s144
      %p156 = scmp.eq.s32.totalorder %s29, 1
      %p157 = por %p155, %p156
      %p159 = scmp.ne.s32.totalorder %s144, %s158
      %p160 = scmp.eq.s32.totalorder %s29, 0
      %p161 = por %p159, %p160
      %s163 = sadd.s32 %s162, 1
      %p166 = scmp.eq.s32.totalorder %s23, 1
      %p167 = scmp.ne.s32.totalorder %s162, %s164
      %p168 = scmp.eq.s32.totalorder %s23, 0
      %p169 = por %p167, %p168
      %p170 = scmp.ne.s32.totalorder %s162, %s164
      %p171 = scmp.eq.s32.totalorder %s28, 1
      %p172 = por %p170, %p171
      %p173 = scmp.ne.s32.totalorder %s164, %s165
      %p174 = scmp.eq.s32.totalorder %s28, 0
      %p175 = por %p173, %p174
      %p176 = scmp.ne.s32.totalorder %s164, %s165
      %p177 = scmp.eq.s32.totalorder %s29, 1
      %p178 = por %p176, %p177
      %p180 = scmp.ne.s32.totalorder %s165, %s179
      %p181 = scmp.eq.s32.totalorder %s29, 0
      %p182 = por %p180, %p181
      %s184 = sadd.s32 %s183, 1
      %p187 = scmp.eq.s32.totalorder %s23, 1
      %p188 = scmp.ne.s32.totalorder %s183, %s185
      %p189 = scmp.eq.s32.totalorder %s23, 0
      %p190 = por %p188, %p189
      %p191 = scmp.ne.s32.totalorder %s183, %s185
      %p192 = scmp.eq.s32.totalorder %s28, 1
      %p193 = por %p191, %p192
      %p194 = scmp.ne.s32.totalorder %s185, %s186
      %p195 = scmp.eq.s32.totalorder %s28, 0
      %p196 = por %p194, %p195
      %p197 = scmp.ne.s32.totalorder %s185, %s186
      %p198 = scmp.eq.s32.totalorder %s29, 1
      %p199 = por %p197, %p198
      %p201 = scmp.ne.s32.totalorder %s186, %s200
      %p202 = scmp.eq.s32.totalorder %s29, 0
      %p203 = por %p201, %p202
      %s204 = ssub.s32 %s23, %s30
      %p205 = scmp.eq.s32.totalorder %s204, 0
      %s207 = sadd.s32 %s206, 1
      %s208 = scalar_select %p205, %s206, %s207
      %p211 = pneg %p205
      %p212 = scmp.eq.s32.totalorder %s23, 1
      %p213 = por %p211, %p212
      %p214 = scmp.ne.s32.totalorder %s206, %s209
      %p215 = scmp.eq.s32.totalorder %s23, 0
      %p216 = por %p214, %p215
      %p217 = scmp.ne.s32.totalorder %s206, %s209
      %p218 = scmp.eq.s32.totalorder %s28, 1
      %p219 = por %p217, %p218
      %p220 = scmp.ne.s32.totalorder %s209, %s210
      %p221 = scmp.eq.s32.totalorder %s28, 0
      %p222 = por %p220, %p221
      %p223 = scmp.ne.s32.totalorder %s209, %s210
      %p224 = scmp.eq.s32.totalorder %s29, 1
      %p225 = por %p223, %p224
      %p227 = scmp.ne.s32.totalorder %s210, %s226
      %p228 = scmp.eq.s32.totalorder %s29, 0
      %p229 = por %p227, %p228
      %p230 = scmp.le.s32.totalorder 1, %s23
      %p231 = scmp.lt.s32.totalorder %s23, 3
      %p232 = pnand %p230, %p231
      %p233 = pneg %p232
      // Predicated region
      $region9: #{tpu_custom_call.1} parent=5 // pred_check
        _
      $region10: #{tpu_custom_call.1} parent=5 // pred_check_branch
        %235 = sbr.rel (%p232) target = $region12
      $region11: #{tpu_custom_call.1} parent=5 // pred_region
        %s236 = ssub.s32 %s23, 1
        // Predicated region
        $region13: #{tpu_custom_call.1} parent=11 // pred_check
          %p237 = pneg %p70
        $region14: #{tpu_custom_call.1} parent=11 // pred_check_branch
          %239 = sbr.rel (%p237) target = $region16
        $region15: #{tpu_custom_call.1} parent=11 // pred_region
          %s241 = ssub.s32 1024, 1024
          %242 = vsyncadd [#allocation6], %s241
          %s243 = sshll.u32 [#allocation5], 4
          %s244 = int_to_ptr.vmem [resolvable:$true] %s243
          %249 = dma.hbm_to_vmem [thread:$0]  %s1, 1024, %s244, [#allocation6], 128, 128, 8
        $region16: #{tpu_custom_call.1} parent=11 // pred_fallthru
          _
        // Predicated region
        $region17: #{tpu_custom_call.1} parent=11 // pred_check
          %p250 = pneg %p91
        $region18: #{tpu_custom_call.1} parent=11 // pred_check_branch
          %252 = sbr.rel (%p250) target = $region20
        $region19: #{tpu_custom_call.1} parent=11 // pred_region
          %s254 = ssub.s32 256, 256
          %255 = vsyncadd [#allocation6], %s254
          %s256 = sshll.u32 [#allocation7], 4
          %s257 = int_to_ptr.vmem [resolvable:$true] %s256
          %262 = dma.hbm_to_vmem [thread:$0]  %s2, 256, %s257, [#allocation6], 128, 128, 8
        $region20: #{tpu_custom_call.1} parent=11 // pred_fallthru
          _
        // Predicated region
        $region21: #{tpu_custom_call.1} parent=11 // pred_check
          %p263 = pneg %p112
        $region22: #{tpu_custom_call.1} parent=11 // pred_check_branch
          %265 = sbr.rel (%p263) target = $region24
        $region23: #{tpu_custom_call.1} parent=11 // pred_region
          %s267 = ssub.s32 256, 256
          %268 = vsyncadd [#allocation9], %s267
          %s269 = sshll.u32 [#allocation8], 4
          %s270 = int_to_ptr.vmem [resolvable:$true] %s269
          %275 = dma.hbm_to_vmem [thread:$0]  %s3, 256, %s270, [#allocation9], 128, 128, 8
        $region24: #{tpu_custom_call.1} parent=11 // pred_fallthru
          _
        // Predicated region
        $region25: #{tpu_custom_call.1} parent=11 // pred_check
          %p276 = pneg %p133
        $region26: #{tpu_custom_call.1} parent=11 // pred_check_branch
          %278 = sbr.rel (%p276) target = $region28
        $region27: #{tpu_custom_call.1} parent=11 // pred_region
          %s280 = ssub.s32 2048, 2048
          %281 = vsyncadd [#allocation9], %s280
          %s282 = sshll.u32 [#allocation10], 4
          %s283 = int_to_ptr.vmem [resolvable:$true] %s282
          %288 = dma.hbm_to_vmem [thread:$0]  %s4, 2048, %s283, [#allocation9], 128, 128, 8
        $region28: #{tpu_custom_call.1} parent=11 // pred_fallthru
          _
        // Predicated region
        $region29: #{tpu_custom_call.1} parent=11 // pred_check
          %p289 = pneg %p154
        $region30: #{tpu_custom_call.1} parent=11 // pred_check_branch
          %291 = sbr.rel (%p289) target = $region32
        $region31: #{tpu_custom_call.1} parent=11 // pred_region
          %s293 = ssub.s32 2048, 2048
          %294 = vsyncadd [#allocation12], %s293
          %s295 = sshll.u32 [#allocation11], 4
          %s296 = int_to_ptr.vmem [resolvable:$true] %s295
          %301 = dma.hbm_to_vmem [thread:$0]  %s5, 2048, %s296, [#allocation12], 128, 128, 8
        $region32: #{tpu_custom_call.1} parent=11 // pred_fallthru
          _
        // Predicated region
        $region33: #{tpu_custom_call.1} parent=11 // pred_check
          %p302 = pneg %p175
        $region34: #{tpu_custom_call.1} parent=11 // pred_check_branch
          %304 = sbr.rel (%p302) target = $region36
        $region35: #{tpu_custom_call.1} parent=11 // pred_region
          %s306 = ssub.s32 1024, 1024
          %307 = vsyncadd [#allocation12], %s306
          %s308 = sshll.u32 [#allocation13], 4
          %s309 = int_to_ptr.vmem [resolvable:$true] %s308
          %314 = dma.hbm_to_vmem [thread:$0]  %s6, 1024, %s309, [#allocation12], 128, 128, 8
        $region36: #{tpu_custom_call.1} parent=11 // pred_fallthru
          _
        // Predicated region
        $region37: #{tpu_custom_call.1} parent=11 // pred_check
          %p315 = pneg %p196
        $region38: #{tpu_custom_call.1} parent=11 // pred_check_branch
          %317 = sbr.rel (%p315) target = $region40
        $region39: #{tpu_custom_call.1} parent=11 // pred_region
          _
        $region40: #{tpu_custom_call.1} parent=11 // pred_fallthru
          _
      $region12: #{tpu_custom_call.1} parent=5 // pred_fallthru
        _
      %p318 = scmp.lt.s32.totalorder %s23, 2
      // Predicated region
      $region41: #{tpu_custom_call.1} parent=5 // pred_check
        %p319 = pneg %p318
      $region42: #{tpu_custom_call.1} parent=5 // pred_check_branch
        %321 = sbr.rel (%p319) target = $region44
      $region43: #{tpu_custom_call.1} parent=5 // pred_region
        // Predicated region
        $region45: #{tpu_custom_call.1} parent=43 // pred_check
          %p322 = pneg %p43
        $region46: #{tpu_custom_call.1} parent=43 // pred_check_branch
          %324 = sbr.rel (%p322) target = $region48
        $region47: #{tpu_custom_call.1} parent=43 // pred_region
          %s325 = sand.u32 %s33, 1
          %s326 = scalar_lea.sflag [#allocation3], %s325
          %s327 = sand.u32 %s33, 1
          %s328 = smul.addr %s327, 16
          %s329 = scalar_lea.vmem [#allocation2], %s328
          %s331 = ssub.s32 256, 256
          %332 = vsyncadd %s326, %s331
          %s333 = smul.addr %s23, 2
          %s334 = smul.addr %s333, 128
          %s335 = scalar_lea.hbm %s0, %s334
          %s336 = sshll.u32 %s329, 4
          %s337 = int_to_ptr.vmem [resolvable:$true] %s336
          %342 = dma.hbm_to_vmem [thread:$0]  %s335, 256, %s337, %s326, 128, 128, 8
        $region48: #{tpu_custom_call.1} parent=43 // pred_fallthru
          _
      $region44: #{tpu_custom_call.1} parent=5 // pred_fallthru
        _
      %p343 = scmp.le.s32.totalorder 1, %s23
      %p344 = scmp.lt.s32.totalorder %s23, 3
      %p345 = pnand %p343, %p344
      %p346 = pneg %p345
      // Predicated region
      $region49: #{tpu_custom_call.1} parent=5 // pred_check
        _
      $region50: #{tpu_custom_call.1} parent=5 // pred_check_branch
        %348 = sbr.rel (%p345) target = $region52
      $region51: #{tpu_custom_call.1} parent=5 // pred_region
        %s349 = ssub.s32 %s23, 1
        %s350 = sand.u32 %s36, 1
        %s351 = scalar_lea.sflag [#allocation3], %s350
        %s352 = sand.u32 %s36, 1
        %s353 = smul.addr %s352, 16
        %s354 = scalar_lea.vmem [#allocation2], %s353
        // Predicated region
        $region53: #{tpu_custom_call.1} parent=51 // pred_check
          %p355 = pneg %p49
        $region54: #{tpu_custom_call.1} parent=51 // pred_check_branch
          %357 = sbr.rel (%p355) target = $region56
        $region55: #{tpu_custom_call.1} parent=51 // pred_region
          %358 = dma.done %s351, 256
        $region56: #{tpu_custom_call.1} parent=51 // pred_fallthru
          _
        // Predicated region
        $region57: #{tpu_custom_call.1} parent=51 // pred_check
          %p359 = pneg %p70
        $region58: #{tpu_custom_call.1} parent=51 // pred_check_branch
          %361 = sbr.rel (%p359) target = $region60
        $region59: #{tpu_custom_call.1} parent=51 // pred_region
          %362 = dma.done [#allocation6], 1024
        $region60: #{tpu_custom_call.1} parent=51 // pred_fallthru
          _
        // Predicated region
        $region61: #{tpu_custom_call.1} parent=51 // pred_check
          %p363 = pneg %p91
        $region62: #{tpu_custom_call.1} parent=51 // pred_check_branch
          %365 = sbr.rel (%p363) target = $region64
        $region63: #{tpu_custom_call.1} parent=51 // pred_region
          %366 = dma.done [#allocation6], 256
        $region64: #{tpu_custom_call.1} parent=51 // pred_fallthru
          _
        // Predicated region
        $region65: #{tpu_custom_call.1} parent=51 // pred_check
          %p367 = pneg %p112
        $region66: #{tpu_custom_call.1} parent=51 // pred_check_branch
          %369 = sbr.rel (%p367) target = $region68
        $region67: #{tpu_custom_call.1} parent=51 // pred_region
          %370 = dma.done [#allocation9], 256
        $region68: #{tpu_custom_call.1} parent=51 // pred_fallthru
          _
        // Predicated region
        $region69: #{tpu_custom_call.1} parent=51 // pred_check
          %p371 = pneg %p133
        $region70: #{tpu_custom_call.1} parent=51 // pred_check_branch
          %373 = sbr.rel (%p371) target = $region72
        $region71: #{tpu_custom_call.1} parent=51 // pred_region
          %374 = dma.done [#allocation9], 2048
        $region72: #{tpu_custom_call.1} parent=51 // pred_fallthru
          _
        // Predicated region
        $region73: #{tpu_custom_call.1} parent=51 // pred_check
          %p375 = pneg %p154
        $region74: #{tpu_custom_call.1} parent=51 // pred_check_branch
          %377 = sbr.rel (%p375) target = $region76
        $region75: #{tpu_custom_call.1} parent=51 // pred_region
          %378 = dma.done [#allocation12], 2048
        $region76: #{tpu_custom_call.1} parent=51 // pred_fallthru
          _
        // Predicated region
        $region77: #{tpu_custom_call.1} parent=51 // pred_check
          %p379 = pneg %p175
        $region78: #{tpu_custom_call.1} parent=51 // pred_check_branch
          %381 = sbr.rel (%p379) target = $region80
        $region79: #{tpu_custom_call.1} parent=51 // pred_region
          %382 = dma.done [#allocation12], 1024
        $region80: #{tpu_custom_call.1} parent=51 // pred_fallthru
          _
        %s383 = sand.u32 %s36, 1
        %s384 = scalar_lea.sflag [#allocation3], %s383
        %s385 = sand.u32 %s36, 1
        %s386 = smul.addr %s385, 16
        %s387 = scalar_lea.vmem [#allocation2], %s386
        %p388 = pneg %p49
        %p389 = pneg %p46
        %p390 = pneg %p70
        %p391 = pneg %p67
        %p392 = pneg %p91
        %p393 = pneg %p88
        %p394 = pneg %p112
        %p395 = pneg %p109
        %p396 = pneg %p133
        %p397 = pneg %p130
        %p398 = pneg %p154
        %p399 = pneg %p151
        %p400 = pneg %p175
        %p401 = pneg %p172
        %p402 = pneg %p196
        %p403 = pneg %p193
        %p404 = pneg %p222
        %p405 = pneg %p219
        %s406 = sand.u32 %s209, 1
        %s407 = scalar_lea.sflag [#allocation4], %s406
        %s408 = sand.u32 %s209, 1
        %s409 = smul.addr %s408, 16
        %s410 = scalar_lea.vmem [#allocation14], %s409
        %v411 = vlaneseq
        %v412 = vand.u32 %v411, 127
        %v413 = vlaneseq
        %v414 = vshrl.u32 %v413, 7
        %v415 = vadd.s32 %v414, 8
        %vm416 = vcmp.ge.s32.totalorder %v412, 8
        %vm417 = vcmp.lt.s32.totalorder %v412, 120
        %vm418 = vcmp.ge.s32.totalorder %v414, 1
        %vm419 = vcmp.ge.s32.totalorder %v415, 1
        %vm420 = vcmp.lt.s32.totalorder %v414, 15
        %vm421 = vcmp.lt.s32.totalorder %v415, 15
        %v422 = vld [vmem:[%s354] sm:$0xff]
        %v423 = vld [vmem:[%s354 + $0x8] sm:$0xff]
        %v424 = vld [vmem:[#allocation5] sm:$0xff]
        %v425 = vld [vmem:[#allocation5 + $0x8] sm:$0xff]
        %v426 = vld [vmem:[#allocation5 + $0x10] sm:$0xff]
        %v427 = vld [vmem:[#allocation5 + $0x18] sm:$0xff]
        %v428 = vld [vmem:[#allocation5 + $0x20] sm:$0xff]
        %v429 = vld [vmem:[#allocation5 + $0x28] sm:$0xff]
        %v430 = vld [vmem:[#allocation5 + $0x30] sm:$0xff]
        %v431 = vld [vmem:[#allocation5 + $0x38] sm:$0xff]
        %vm432 = vcmask 523264
        %v434 = vsel %vm432, %v422, 0
        %v437 = vsel %vm432, %v423, 0
        %439 = vmatprep.subr.mxu0 0.0
        %440 = vmatpush1.msra.mxu0 0.0
        %441 = vmatprep.subr.mxu0 0.0
        %442 = vmatpush1.msra.mxu0 0.0
        %443 = vmatprep.subr.mxu0 0.0
        %444 = vmatpush1.msra.mxu0 0.0
        %445 = vmatprep.subr.mxu0 0.0
        %446 = vmatpush1.msra.mxu0 0.0
        %447 = vmatprep.subr.mxu0 0.0
        %448 = vmatpush1.msra.mxu0 0.0
        %449 = vmatprep.subr.mxu0 0.0
        %450 = vmatpush1.msra.mxu0 0.0
        %451 = vmatprep.subr.mxu0 0.0
        %452 = vmatpush1.msra.mxu0 0.0
        %453 = vmatprep.subr.mxu0 0.0
        %454 = vmatpush1.msra.mxu0 0.0
        %455 = vmatprep.subr.mxu0 0.0
        %v456 = vand.u32 %v431, 4294901760
        %457 = vmatpush1.msra.mxu0 %v456
        %458 = vmatprep.subr.mxu0 0.0
        %v459 = vand.u32 %v430, 4294901760
        %460 = vmatpush1.msra.mxu0 %v459
        %461 = vmatprep.subr.mxu0 0.0
        %v462 = vand.u32 %v429, 4294901760
        %463 = vmatpush1.msra.mxu0 %v462
        %464 = vmatprep.subr.mxu0 0.0
        %v465 = vand.u32 %v428, 4294901760
        %466 = vmatpush1.msra.mxu0 %v465
        %467 = vmatprep.subr.mxu0 0.0
        %v468 = vand.u32 %v427, 4294901760
        %469 = vmatpush1.msra.mxu0 %v468
        %470 = vmatprep.subr.mxu0 0.0
        %v471 = vand.u32 %v426, 4294901760
        %472 = vmatpush1.msra.mxu0 %v471
        %473 = vmatprep.subr.mxu0 0.0
        %v474 = vand.u32 %v425, 4294901760
        %475 = vmatpush1.msra.mxu0 %v474
        %476 = vmatprep.subr.mxu0 0.0
        %v477 = vand.u32 %v424, 4294901760
        %478 = vmatpush1.msra.mxu0 %v477
        %479 = vmatprep.subr.mxu0 0.0
        %480 = vmatpush2.msra.mxu0 0.0
        %481 = vmatprep.subr.mxu0 0.0
        %482 = vmatpush2.msra.mxu0 0.0
        %483 = vmatprep.subr.mxu0 0.0
        %484 = vmatpush2.msra.mxu0 0.0
        %485 = vmatprep.subr.mxu0 0.0
        %486 = vmatpush2.msra.mxu0 0.0
        %487 = vmatprep.subr.mxu0 0.0
        %488 = vmatpush2.msra.mxu0 0.0
        %489 = vmatprep.subr.mxu0 0.0
        %490 = vmatpush2.msra.mxu0 0.0
        %491 = vmatprep.subr.mxu0 0.0
        %492 = vmatpush2.msra.mxu0 0.0
        %493 = vmatprep.subr.mxu0 0.0
        %494 = vmatpush2.msra.mxu0 0.0
        %495 = vmatprep.subr.mxu0 0.0
        %496 = vmatpush2.msra.mxu0 0.0
        %497 = vmatprep.subr.mxu0 0.0
        %498 = vmatpush2.msra.mxu0 0.0
        %499 = vmatprep.subr.mxu0 0.0
        %500 = vmatpush2.msra.mxu0 0.0
        %501 = vmatprep.subr.mxu0 0.0
        %502 = vmatpush2.msra.mxu0 0.0
        %503 = vmatprep.subr.mxu0 0.0
        %504 = vmatpush2.msra.mxu0 0.0
        %505 = vmatprep.subr.mxu0 0.0
        %506 = vmatpush2.msra.mxu0 0.0
        %507 = vmatprep.subr.mxu0 0.0
        %508 = vmatpush2.msra.mxu0 0.0
        %509 = vmatprep.subr.mxu0 0.0
        %510 = vmatpush2.msra.mxu0 0.0
        %511 = vmatprep.mubr.f32.mxu0 0.0
        %v512 = vand.u32 %v434, 4294901760
        %v513 = vsub.f32 %v434, %v512
        %v514 = vand.u32 %v513, 4294901760
        %v515 = vsub.f32 %v513, %v514
        %v516 = vand.u32 %v515, 4294901760
        %517 = vmatmul.mubr.f32.gmra.mxu0 %v516
        %v518 = vpop.f32.mrf.mxu0
        %v519 = vadd.f32 0.0, %v518
        %v520 = vpop.f32.mrf.mxu0
        %521 = vmatprep.mubr.f32.mxu0 0.0
        %v522 = vand.u32 %v437, 4294901760
        %v523 = vsub.f32 %v437, %v522
        %v524 = vand.u32 %v523, 4294901760
        %v525 = vsub.f32 %v523, %v524
        %v526 = vand.u32 %v525, 4294901760
        %527 = vmatmul.mubr.f32.gmra.mxu0 %v526
        %v528 = vpop.f32.mrf.mxu0
        %v529 = vadd.f32 0.0, %v528
        %v530 = vpop.f32.mrf.mxu0
        %531 = vdwg.mxu0
        %532 = vmatprep.subr.mxu0 0.0
        %533 = vmatpush1.msra.mxu0 0.0
        %534 = vmatprep.subr.mxu0 0.0
        %535 = vmatpush1.msra.mxu0 0.0
        %536 = vmatprep.subr.mxu0 0.0
        %537 = vmatpush1.msra.mxu0 0.0
        %538 = vmatprep.subr.mxu0 0.0
        %539 = vmatpush1.msra.mxu0 0.0
        %540 = vmatprep.subr.mxu0 0.0
        %541 = vmatpush1.msra.mxu0 0.0
        %542 = vmatprep.subr.mxu0 0.0
        %543 = vmatpush1.msra.mxu0 0.0
        %544 = vmatprep.subr.mxu0 0.0
        %545 = vmatpush1.msra.mxu0 0.0
        %546 = vmatprep.subr.mxu0 0.0
        %547 = vmatpush1.msra.mxu0 0.0
        %548 = vmatprep.subr.mxu0 0.0
        %v549 = vand.u32 %v431, 4294901760
        %v550 = vsub.f32 %v431, %v549
        %v551 = vand.u32 %v550, 4294901760
        %v552 = vsub.f32 %v550, %v551
        %v553 = vand.u32 %v552, 4294901760
        %554 = vmatpush1.msra.mxu0 %v553
        %555 = vmatprep.subr.mxu0 0.0
        %v556 = vand.u32 %v430, 4294901760
        %v557 = vsub.f32 %v430, %v556
        %v558 = vand.u32 %v557, 4294901760
        %v559 = vsub.f32 %v557, %v558
        %v560 = vand.u32 %v559, 4294901760
        %561 = vmatpush1.msra.mxu0 %v560
        %562 = vmatprep.subr.mxu0 0.0
        %v563 = vand.u32 %v429, 4294901760
        %v564 = vsub.f32 %v429, %v563
        %v565 = vand.u32 %v564, 4294901760
        %v566 = vsub.f32 %v564, %v565
        %v567 = vand.u32 %v566, 4294901760
        %568 = vmatpush1.msra.mxu0 %v567
        %569 = vmatprep.subr.mxu0 0.0
        %v570 = vand.u32 %v428, 4294901760
        %v571 = vsub.f32 %v428, %v570
        %v572 = vand.u32 %v571, 4294901760
        %v573 = vsub.f32 %v571, %v572
        %v574 = vand.u32 %v573, 4294901760
        %575 = vmatpush1.msra.mxu0 %v574
        %576 = vmatprep.subr.mxu0 0.0
        %v577 = vand.u32 %v427, 4294901760
        %v578 = vsub.f32 %v427, %v577
        %v579 = vand.u32 %v578, 4294901760
        %v580 = vsub.f32 %v578, %v579
        %v581 = vand.u32 %v580, 4294901760
        %582 = vmatpush1.msra.mxu0 %v581
        %583 = vmatprep.subr.mxu0 0.0
        %v584 = vand.u32 %v426, 4294901760
        %v585 = vsub.f32 %v426, %v584
        %v586 = vand.u32 %v585, 4294901760
        %v587 = vsub.f32 %v585, %v586
        %v588 = vand.u32 %v587, 4294901760
        %589 = vmatpush1.msra.mxu0 %v588
        %590 = vmatprep.subr.mxu0 0.0
        %v591 = vand.u32 %v425, 4294901760
        %v592 = vsub.f32 %v425, %v591
        %v593 = vand.u32 %v592, 4294901760
        %v594 = vsub.f32 %v592, %v593
        %v595 = vand.u32 %v594, 4294901760
        %596 = vmatpush1.msra.mxu0 %v595
        %597 = vmatprep.subr.mxu0 0.0
        %v598 = vand.u32 %v424, 4294901760
        %v599 = vsub.f32 %v424, %v598
        %v600 = vand.u32 %v599, 4294901760
        %v601 = vsub.f32 %v599, %v600
        %v602 = vand.u32 %v601, 4294901760
        %603 = vmatpush1.msra.mxu0 %v602
        %604 = vmatprep.subr.mxu0 0.0
        %605 = vmatpush2.msra.mxu0 0.0
        %606 = vmatprep.subr.mxu0 0.0
        %607 = vmatpush2.msra.mxu0 0.0
        %608 = vmatprep.subr.mxu0 0.0
        %609 = vmatpush2.msra.mxu0 0.0
        %610 = vmatprep.subr.mxu0 0.0
        %611 = vmatpush2.msra.mxu0 0.0
        %612 = vmatprep.subr.mxu0 0.0
        %613 = vmatpush2.msra.mxu0 0.0
        %614 = vmatprep.subr.mxu0 0.0
        %615 = vmatpush2.msra.mxu0 0.0
        %616 = vmatprep.subr.mxu0 0.0
        %617 = vmatpush2.msra.mxu0 0.0
        %618 = vmatprep.subr.mxu0 0.0
        %619 = vmatpush2.msra.mxu0 0.0
        %620 = vmatprep.subr.mxu0 0.0
        %621 = vmatpush2.msra.mxu0 0.0
        %622 = vmatprep.subr.mxu0 0.0
        %623 = vmatpush2.msra.mxu0 0.0
        %624 = vmatprep.subr.mxu0 0.0
        %625 = vmatpush2.msra.mxu0 0.0
        %626 = vmatprep.subr.mxu0 0.0
        %627 = vmatpush2.msra.mxu0 0.0
        %628 = vmatprep.subr.mxu0 0.0
        %629 = vmatpush2.msra.mxu0 0.0
        %630 = vmatprep.subr.mxu0 0.0
        %631 = vmatpush2.msra.mxu0 0.0
        %632 = vmatprep.subr.mxu0 0.0
        %633 = vmatpush2.msra.mxu0 0.0
        %634 = vmatprep.subr.mxu0 0.0
        %635 = vmatpush2.msra.mxu0 0.0
        %636 = vmatprep.mubr.f32.mxu0 0.0
        %v637 = vand.u32 %v434, 4294901760
        %638 = vmatmul.mubr.f32.gmra.mxu0 %v637
        %v639 = vpop.f32.mrf.mxu0
        %v640 = vadd.f32 %v519, %v639
        %v641 = vpop.f32.mrf.mxu0
        %642 = vmatprep.mubr.f32.mxu0 0.0
        %v643 = vand.u32 %v437, 4294901760
        %644 = vmatmul.mubr.f32.gmra.mxu0 %v643
        %v645 = vpop.f32.mrf.mxu0
        %v646 = vadd.f32 %v529, %v645
        %v647 = vpop.f32.mrf.mxu0
        %648 = vdwg.mxu0
        %649 = vmatprep.subr.mxu0 0.0
        %650 = vmatpush1.msra.mxu0 0.0
        %651 = vmatprep.subr.mxu0 0.0
        %652 = vmatpush1.msra.mxu0 0.0
        %653 = vmatprep.subr.mxu0 0.0
        %654 = vmatpush1.msra.mxu0 0.0
        %655 = vmatprep.subr.mxu0 0.0
        %656 = vmatpush1.msra.mxu0 0.0
        %657 = vmatprep.subr.mxu0 0.0
        %658 = vmatpush1.msra.mxu0 0.0
        %659 = vmatprep.subr.mxu0 0.0
        %660 = vmatpush1.msra.mxu0 0.0
        %661 = vmatprep.subr.mxu0 0.0
        %662 = vmatpush1.msra.mxu0 0.0
        %663 = vmatprep.subr.mxu0 0.0
        %664 = vmatpush1.msra.mxu0 0.0
        %665 = vmatprep.subr.mxu0 0.0
        %v666 = vand.u32 %v431, 4294901760
        %v667 = vsub.f32 %v431, %v666
        %668 = vmatpush1.msra.mxu0 %v667
        %669 = vmatprep.subr.mxu0 0.0
        %v670 = vand.u32 %v430, 4294901760
        %v671 = vsub.f32 %v430, %v670
        %672 = vmatpush1.msra.mxu0 %v671
        %673 = vmatprep.subr.mxu0 0.0
        %v674 = vand.u32 %v429, 4294901760
        %v675 = vsub.f32 %v429, %v674
        %676 = vmatpush1.msra.mxu0 %v675
        %677 = vmatprep.subr.mxu0 0.0
        %v678 = vand.u32 %v428, 4294901760
        %v679 = vsub.f32 %v428, %v678
        %680 = vmatpush1.msra.mxu0 %v679
        %681 = vmatprep.subr.mxu0 0.0
        %v682 = vand.u32 %v427, 4294901760
        %v683 = vsub.f32 %v427, %v682
        %684 = vmatpush1.msra.mxu0 %v683
        %685 = vmatprep.subr.mxu0 0.0
        %v686 = vand.u32 %v426, 4294901760
        %v687 = vsub.f32 %v426, %v686
        %688 = vmatpush1.msra.mxu0 %v687
        %689 = vmatprep.subr.mxu0 0.0
        %v690 = vand.u32 %v425, 4294901760
        %v691 = vsub.f32 %v425, %v690
        %692 = vmatpush1.msra.mxu0 %v691
        %693 = vmatprep.subr.mxu0 0.0
        %v694 = vand.u32 %v424, 4294901760
        %v695 = vsub.f32 %v424, %v694
        %696 = vmatpush1.msra.mxu0 %v695
        %697 = vmatprep.subr.mxu0 0.0
        %698 = vmatpush2.msra.mxu0 0.0
        %699 = vmatprep.subr.mxu0 0.0
        %700 = vmatpush2.msra.mxu0 0.0
        %701 = vmatprep.subr.mxu0 0.0
        %702 = vmatpush2.msra.mxu0 0.0
        %703 = vmatprep.subr.mxu0 0.0
        %704 = vmatpush2.msra.mxu0 0.0
        %705 = vmatprep.subr.mxu0 0.0
        %706 = vmatpush2.msra.mxu0 0.0
        %707 = vmatprep.subr.mxu0 0.0
        %708 = vmatpush2.msra.mxu0 0.0
        %709 = vmatprep.subr.mxu0 0.0
        %710 = vmatpush2.msra.mxu0 0.0
        %711 = vmatprep.subr.mxu0 0.0
        %712 = vmatpush2.msra.mxu0 0.0
        %713 = vmatprep.subr.mxu0 0.0
        %714 = vmatpush2.msra.mxu0 0.0
        %715 = vmatprep.subr.mxu0 0.0
        %716 = vmatpush2.msra.mxu0 0.0
        %717 = vmatprep.subr.mxu0 0.0
        %718 = vmatpush2.msra.mxu0 0.0
        %719 = vmatprep.subr.mxu0 0.0
        %720 = vmatpush2.msra.mxu0 0.0
        %721 = vmatprep.subr.mxu0 0.0
        %722 = vmatpush2.msra.mxu0 0.0
        %723 = vmatprep.subr.mxu0 0.0
        %724 = vmatpush2.msra.mxu0 0.0
        %725 = vmatprep.subr.mxu0 0.0
        %726 = vmatpush2.msra.mxu0 0.0
        %727 = vmatprep.subr.mxu0 0.0
        %728 = vmatpush2.msra.mxu0 0.0
        %729 = vmatprep.mubr.f32.mxu0 0.0
        %v730 = vand.u32 %v434, 4294901760
        %v731 = vsub.f32 %v434, %v730
        %732 = vmatmul.mubr.f32.gmra.mxu0 %v731
        %v733 = vpop.f32.mrf.mxu0
        %v734 = vadd.f32 %v640, %v733
        %v735 = vpop.f32.mrf.mxu0
        %736 = vmatprep.mubr.f32.mxu0 0.0
        %v737 = vand.u32 %v437, 4294901760
        %v738 = vsub.f32 %v437, %v737
        %739 = vmatmul.mubr.f32.gmra.mxu0 %v738
        %v740 = vpop.f32.mrf.mxu0
        %v741 = vadd.f32 %v646, %v740
        %v742 = vpop.f32.mrf.mxu0
        %743 = vdwg.mxu0
        %744 = vmatprep.subr.mxu0 0.0
        %745 = vmatpush1.msra.mxu0 0.0
        %746 = vmatprep.subr.mxu0 0.0
        %747 = vmatpush1.msra.mxu0 0.0
        %748 = vmatprep.subr.mxu0 0.0
        %749 = vmatpush1.msra.mxu0 0.0
        %750 = vmatprep.subr.mxu0 0.0
        %751 = vmatpush1.msra.mxu0 0.0
        %752 = vmatprep.subr.mxu0 0.0
        %753 = vmatpush1.msra.mxu0 0.0
        %754 = vmatprep.subr.mxu0 0.0
        %755 = vmatpush1.msra.mxu0 0.0
        %756 = vmatprep.subr.mxu0 0.0
        %757 = vmatpush1.msra.mxu0 0.0
        %758 = vmatprep.subr.mxu0 0.0
        %759 = vmatpush1.msra.mxu0 0.0
        %760 = vmatprep.subr.mxu0 0.0
        %v761 = vand.u32 %v431, 4294901760
        %762 = vmatpush1.msra.mxu0 %v761
        %763 = vmatprep.subr.mxu0 0.0
        %v764 = vand.u32 %v430, 4294901760
        %765 = vmatpush1.msra.mxu0 %v764
        %766 = vmatprep.subr.mxu0 0.0
        %v767 = vand.u32 %v429, 4294901760
        %768 = vmatpush1.msra.mxu0 %v767
        %769 = vmatprep.subr.mxu0 0.0
        %v770 = vand.u32 %v428, 4294901760
        %771 = vmatpush1.msra.mxu0 %v770
        %772 = vmatprep.subr.mxu0 0.0
        %v773 = vand.u32 %v427, 4294901760
        %774 = vmatpush1.msra.mxu0 %v773
        %775 = vmatprep.subr.mxu0 0.0
        %v776 = vand.u32 %v426, 4294901760
        %777 = vmatpush1.msra.mxu0 %v776
        %778 = vmatprep.subr.mxu0 0.0
        %v779 = vand.u32 %v425, 4294901760
        %780 = vmatpush1.msra.mxu0 %v779
        %781 = vmatprep.subr.mxu0 0.0
        %v782 = vand.u32 %v424, 4294901760
        %783 = vmatpush1.msra.mxu0 %v782
        %784 = vmatprep.subr.mxu0 0.0
        %785 = vmatpush2.msra.mxu0 0.0
        %786 = vmatprep.subr.mxu0 0.0
        %787 = vmatpush2.msra.mxu0 0.0
        %788 = vmatprep.subr.mxu0 0.0
        %789 = vmatpush2.msra.mxu0 0.0
        %790 = vmatprep.subr.mxu0 0.0
        %791 = vmatpush2.msra.mxu0 0.0
        %792 = vmatprep.subr.mxu0 0.0
        %793 = vmatpush2.msra.mxu0 0.0
        %794 = vmatprep.subr.mxu0 0.0
        %795 = vmatpush2.msra.mxu0 0.0
        %796 = vmatprep.subr.mxu0 0.0
        %797 = vmatpush2.msra.mxu0 0.0
        %798 = vmatprep.subr.mxu0 0.0
        %799 = vmatpush2.msra.mxu0 0.0
        %800 = vmatprep.subr.mxu0 0.0
        %801 = vmatpush2.msra.mxu0 0.0
        %802 = vmatprep.subr.mxu0 0.0
        %803 = vmatpush2.msra.mxu0 0.0
        %804 = vmatprep.subr.mxu0 0.0
        %805 = vmatpush2.msra.mxu0 0.0
        %806 = vmatprep.subr.mxu0 0.0
        %807 = vmatpush2.msra.mxu0 0.0
        %808 = vmatprep.subr.mxu0 0.0
        %809 = vmatpush2.msra.mxu0 0.0
        %810 = vmatprep.subr.mxu0 0.0
        %811 = vmatpush2.msra.mxu0 0.0
        %812 = vmatprep.subr.mxu0 0.0
        %813 = vmatpush2.msra.mxu0 0.0
        %814 = vmatprep.subr.mxu0 0.0
        %815 = vmatpush2.msra.mxu0 0.0
        %816 = vmatprep.mubr.f32.mxu0 0.0
        %v817 = vand.u32 %v434, 4294901760
        %v818 = vsub.f32 %v434, %v817
        %v819 = vand.u32 %v818, 4294901760
        %820 = vmatmul.mubr.f32.gmra.mxu0 %v819
        %v821 = vpop.f32.mrf.mxu0
        %v822 = vadd.f32 %v734, %v821
        %v823 = vpop.f32.mrf.mxu0
        %824 = vmatprep.mubr.f32.mxu0 0.0
        %v825 = vand.u32 %v437, 4294901760
        %v826 = vsub.f32 %v437, %v825
        %v827 = vand.u32 %v826, 4294901760
        %828 = vmatmul.mubr.f32.gmra.mxu0 %v827
        %v829 = vpop.f32.mrf.mxu0
        %v830 = vadd.f32 %v741, %v829
        %v831 = vpop.f32.mrf.mxu0
        %832 = vdwg.mxu0
        %833 = vmatprep.subr.mxu0 0.0
        %834 = vmatpush1.msra.mxu0 0.0
        %835 = vmatprep.subr.mxu0 0.0
        %836 = vmatpush1.msra.mxu0 0.0
        %837 = vmatprep.subr.mxu0 0.0
        %838 = vmatpush1.msra.mxu0 0.0
        %839 = vmatprep.subr.mxu0 0.0
        %840 = vmatpush1.msra.mxu0 0.0
        %841 = vmatprep.subr.mxu0 0.0
        %842 = vmatpush1.msra.mxu0 0.0
        %843 = vmatprep.subr.mxu0 0.0
        %844 = vmatpush1.msra.mxu0 0.0
        %845 = vmatprep.subr.mxu0 0.0
        %846 = vmatpush1.msra.mxu0 0.0
        %847 = vmatprep.subr.mxu0 0.0
        %848 = vmatpush1.msra.mxu0 0.0
        %849 = vmatprep.subr.mxu0 0.0
        %v850 = vand.u32 %v431, 4294901760
        %v851 = vsub.f32 %v431, %v850
        %v852 = vand.u32 %v851, 4294901760
        %853 = vmatpush1.msra.mxu0 %v852
        %854 = vmatprep.subr.mxu0 0.0
        %v855 = vand.u32 %v430, 4294901760
        %v856 = vsub.f32 %v430, %v855
        %v857 = vand.u32 %v856, 4294901760
        %858 = vmatpush1.msra.mxu0 %v857
        %859 = vmatprep.subr.mxu0 0.0
        %v860 = vand.u32 %v429, 4294901760
        %v861 = vsub.f32 %v429, %v860
        %v862 = vand.u32 %v861, 4294901760
        %863 = vmatpush1.msra.mxu0 %v862
        %864 = vmatprep.subr.mxu0 0.0
        %v865 = vand.u32 %v428, 4294901760
        %v866 = vsub.f32 %v428, %v865
        %v867 = vand.u32 %v866, 4294901760
        %868 = vmatpush1.msra.mxu0 %v867
        %869 = vmatprep.subr.mxu0 0.0
        %v870 = vand.u32 %v427, 4294901760
        %v871 = vsub.f32 %v427, %v870
        %v872 = vand.u32 %v871, 4294901760
        %873 = vmatpush1.msra.mxu0 %v872
        %874 = vmatprep.subr.mxu0 0.0
        %v875 = vand.u32 %v426, 4294901760
        %v876 = vsub.f32 %v426, %v875
        %v877 = vand.u32 %v876, 4294901760
        %878 = vmatpush1.msra.mxu0 %v877
        %879 = vmatprep.subr.mxu0 0.0
        %v880 = vand.u32 %v425, 4294901760
        %v881 = vsub.f32 %v425, %v880
        %v882 = vand.u32 %v881, 4294901760
        %883 = vmatpush1.msra.mxu0 %v882
        %884 = vmatprep.subr.mxu0 0.0
        %v885 = vand.u32 %v424, 4294901760
        %v886 = vsub.f32 %v424, %v885
        %v887 = vand.u32 %v886, 4294901760
        %888 = vmatpush1.msra.mxu0 %v887
        %889 = vmatprep.subr.mxu0 0.0
        %890 = vmatpush2.msra.mxu0 0.0
        %891 = vmatprep.subr.mxu0 0.0
        %892 = vmatpush2.msra.mxu0 0.0
        %893 = vmatprep.subr.mxu0 0.0
        %894 = vmatpush2.msra.mxu0 0.0
        %895 = vmatprep.subr.mxu0 0.0
        %896 = vmatpush2.msra.mxu0 0.0
        %897 = vmatprep.subr.mxu0 0.0
        %898 = vmatpush2.msra.mxu0 0.0
        %899 = vmatprep.subr.mxu0 0.0
        %900 = vmatpush2.msra.mxu0 0.0
        %901 = vmatprep.subr.mxu0 0.0
        %902 = vmatpush2.msra.mxu0 0.0
        %903 = vmatprep.subr.mxu0 0.0
        %904 = vmatpush2.msra.mxu0 0.0
        %905 = vmatprep.subr.mxu0 0.0
        %906 = vmatpush2.msra.mxu0 0.0
        %907 = vmatprep.subr.mxu0 0.0
        %908 = vmatpush2.msra.mxu0 0.0
        %909 = vmatprep.subr.mxu0 0.0
        %910 = vmatpush2.msra.mxu0 0.0
        %911 = vmatprep.subr.mxu0 0.0
        %912 = vmatpush2.msra.mxu0 0.0
        %913 = vmatprep.subr.mxu0 0.0
        %914 = vmatpush2.msra.mxu0 0.0
        %915 = vmatprep.subr.mxu0 0.0
        %916 = vmatpush2.msra.mxu0 0.0
        %917 = vmatprep.subr.mxu0 0.0
        %918 = vmatpush2.msra.mxu0 0.0
        %919 = vmatprep.subr.mxu0 0.0
        %920 = vmatpush2.msra.mxu0 0.0
        %921 = vmatprep.mubr.f32.mxu0 0.0
        %v922 = vand.u32 %v434, 4294901760
        %923 = vmatmul.mubr.f32.gmra.mxu0 %v922
        %v924 = vpop.f32.mrf.mxu0
        %v925 = vadd.f32 %v822, %v924
        %v926 = vpop.f32.mrf.mxu0
        %927 = vmatprep.mubr.f32.mxu0 0.0
        %v928 = vand.u32 %v437, 4294901760
        %929 = vmatmul.mubr.f32.gmra.mxu0 %v928
        %v930 = vpop.f32.mrf.mxu0
        %v931 = vadd.f32 %v830, %v930
        %v932 = vpop.f32.mrf.mxu0
        %933 = vdwg.mxu0
        %934 = vmatprep.subr.mxu0 0.0
        %935 = vmatpush1.msra.mxu0 0.0
        %936 = vmatprep.subr.mxu0 0.0
        %937 = vmatpush1.msra.mxu0 0.0
        %938 = vmatprep.subr.mxu0 0.0
        %939 = vmatpush1.msra.mxu0 0.0
        %940 = vmatprep.subr.mxu0 0.0
        %941 = vmatpush1.msra.mxu0 0.0
        %942 = vmatprep.subr.mxu0 0.0
        %943 = vmatpush1.msra.mxu0 0.0
        %944 = vmatprep.subr.mxu0 0.0
        %945 = vmatpush1.msra.mxu0 0.0
        %946 = vmatprep.subr.mxu0 0.0
        %947 = vmatpush1.msra.mxu0 0.0
        %948 = vmatprep.subr.mxu0 0.0
        %949 = vmatpush1.msra.mxu0 0.0
        %950 = vmatprep.subr.mxu0 0.0
        %v951 = vand.u32 %v431, 4294901760
        %952 = vmatpush1.msra.mxu0 %v951
        %953 = vmatprep.subr.mxu0 0.0
        %v954 = vand.u32 %v430, 4294901760
        %955 = vmatpush1.msra.mxu0 %v954
        %956 = vmatprep.subr.mxu0 0.0
        %v957 = vand.u32 %v429, 4294901760
        %958 = vmatpush1.msra.mxu0 %v957
        %959 = vmatprep.subr.mxu0 0.0
        %v960 = vand.u32 %v428, 4294901760
        %961 = vmatpush1.msra.mxu0 %v960
        %962 = vmatprep.subr.mxu0 0.0
        %v963 = vand.u32 %v427, 4294901760
        %964 = vmatpush1.msra.mxu0 %v963
        %965 = vmatprep.subr.mxu0 0.0
        %v966 = vand.u32 %v426, 4294901760
        %967 = vmatpush1.msra.mxu0 %v966
        %968 = vmatprep.subr.mxu0 0.0
        %v969 = vand.u32 %v425, 4294901760
        %970 = vmatpush1.msra.mxu0 %v969
        %971 = vmatprep.subr.mxu0 0.0
        %v972 = vand.u32 %v424, 4294901760
        %973 = vmatpush1.msra.mxu0 %v972
        %974 = vmatprep.subr.mxu0 0.0
        %975 = vmatpush2.msra.mxu0 0.0
        %976 = vmatprep.subr.mxu0 0.0
        %977 = vmatpush2.msra.mxu0 0.0
        %978 = vmatprep.subr.mxu0 0.0
        %979 = vmatpush2.msra.mxu0 0.0
        %980 = vmatprep.subr.mxu0 0.0
        %981 = vmatpush2.msra.mxu0 0.0
        %982 = vmatprep.subr.mxu0 0.0
        %983 = vmatpush2.msra.mxu0 0.0
        %984 = vmatprep.subr.mxu0 0.0
        %985 = vmatpush2.msra.mxu0 0.0
        %986 = vmatprep.subr.mxu0 0.0
        %987 = vmatpush2.msra.mxu0 0.0
        %988 = vmatprep.subr.mxu0 0.0
        %989 = vmatpush2.msra.mxu0 0.0
        %990 = vmatprep.subr.mxu0 0.0
        %991 = vmatpush2.msra.mxu0 0.0
        %992 = vmatprep.subr.mxu0 0.0
        %993 = vmatpush2.msra.mxu0 0.0
        %994 = vmatprep.subr.mxu0 0.0
        %995 = vmatpush2.msra.mxu0 0.0
        %996 = vmatprep.subr.mxu0 0.0
        %997 = vmatpush2.msra.mxu0 0.0
        %998 = vmatprep.subr.mxu0 0.0
        %999 = vmatpush2.msra.mxu0 0.0
        %1000 = vmatprep.subr.mxu0 0.0
        %1001 = vmatpush2.msra.mxu0 0.0
        %1002 = vmatprep.subr.mxu0 0.0
        %1003 = vmatpush2.msra.mxu0 0.0
        %1004 = vmatprep.subr.mxu0 0.0
        %1005 = vmatpush2.msra.mxu0 0.0
        %1006 = vmatprep.mubr.f32.mxu0 0.0
        %v1007 = vand.u32 %v434, 4294901760
        %1008 = vmatmul.mubr.f32.gmra.mxu0 %v1007
        %v1009 = vpop.f32.mrf.mxu0
        %v1010 = vadd.f32 %v925, %v1009
        %v1011 = vpop.f32.mrf.mxu0
        %1012 = vmatprep.mubr.f32.mxu0 0.0
        %v1013 = vand.u32 %v437, 4294901760
        %1014 = vmatmul.mubr.f32.gmra.mxu0 %v1013
        %v1015 = vpop.f32.mrf.mxu0
        %v1016 = vadd.f32 %v931, %v1015
        %v1017 = vpop.f32.mrf.mxu0
        %1018 = vdwg.mxu0
        %1019 = vrot.lane.b32.xlu0 %v1010, 8
        %v1020 = vpop.permute.xlu0 %1019
        %1021 = vrot.lane.b32.xlu0 %v1016, 8
        %v1022 = vpop.permute.xlu0 %1021
        %v1023 = vsel %vm416, %v1020, 0.0
        %v1024 = vsel %vm416, %v1022, 0.0
        %1025 = vrot.lane.b32.xlu0 %v1010, 120
        %v1026 = vpop.permute.xlu0 %1025
        %1027 = vrot.lane.b32.xlu0 %v1016, 120
        %v1028 = vpop.permute.xlu0 %1027
        %v1029 = vsel %vm417, %v1026, 0.0
        %v1030 = vsel %vm417, %v1028, 0.0
        %v1031 = vld [vmem:[#allocation7] sm:$0x1]
        %v1032 = vlaneseq
        %v1033 = vshrl.u32 %v1032, 7
        %v1034 = vsub.s32 0, %v1033
        %v1035 = vrot.slane %v1031, %v1034
        %v1036 = vmul.f32 %v1023, %v1035
        %v1037 = vmul.f32 %v1024, %v1035
        %v1038 = vld [vmem:[#allocation7 + $0x1] sm:$0x1]
        %v1039 = vlaneseq
        %v1040 = vshrl.u32 %v1039, 7
        %v1041 = vsub.s32 0, %v1040
        %v1042 = vrot.slane %v1038, %v1041
        %v1043 = vmul.f32 %v1010, %v1042
        %v1044 = vmul.f32 %v1016, %v1042
        %v1045 = vadd.f32 %v1036, %v1043
        %v1046 = vadd.f32 %v1037, %v1044
        %v1047 = vld [vmem:[#allocation7 + $0x2] sm:$0x1]
        %v1048 = vlaneseq
        %v1049 = vshrl.u32 %v1048, 7
        %v1050 = vsub.s32 0, %v1049
        %v1051 = vrot.slane %v1047, %v1050
        %v1052 = vmul.f32 %v1029, %v1051
        %v1053 = vmul.f32 %v1030, %v1051
        %v1054 = vadd.f32 %v1045, %v1052
        %v1055 = vadd.f32 %v1046, %v1053
        %v1056 = vld [vmem:[#allocation7 + $0x3] sm:$0x1]
        %v1057 = vlaneseq
        %v1058 = vshrl.u32 %v1057, 7
        %v1059 = vsub.s32 0, %v1058
        %v1060 = vrot.slane %v1056, %v1059
        %v1061 = vmul.f32 %v1023, %v1060
        %v1062 = vmul.f32 %v1024, %v1060
        %v1063 = vld [vmem:[#allocation7 + $0x4] sm:$0x1]
        %v1064 = vlaneseq
        %v1065 = vshrl.u32 %v1064, 7
        %v1066 = vsub.s32 0, %v1065
        %v1067 = vrot.slane %v1063, %v1066
        %v1068 = vmul.f32 %v1010, %v1067
        %v1069 = vmul.f32 %v1016, %v1067
        %v1070 = vadd.f32 %v1061, %v1068
        %v1071 = vadd.f32 %v1062, %v1069
        %v1072 = vld [vmem:[#allocation7 + $0x5] sm:$0x1]
        %v1073 = vlaneseq
        %v1074 = vshrl.u32 %v1073, 7
        %v1075 = vsub.s32 0, %v1074
        %v1076 = vrot.slane %v1072, %v1075
        %v1077 = vmul.f32 %v1029, %v1076
        %v1078 = vmul.f32 %v1030, %v1076
        %v1079 = vadd.f32 %v1070, %v1077
        %v1080 = vadd.f32 %v1071, %v1078
        %v1081 = vld [vmem:[#allocation7 + $0x6] sm:$0x1]
        %v1082 = vlaneseq
        %v1083 = vshrl.u32 %v1082, 7
        %v1084 = vsub.s32 0, %v1083
        %v1085 = vrot.slane %v1081, %v1084
        %v1086 = vmul.f32 %v1023, %v1085
        %v1087 = vmul.f32 %v1024, %v1085
        %v1088 = vld [vmem:[#allocation7 + $0x7] sm:$0x1]
        %v1089 = vlaneseq
        %v1090 = vshrl.u32 %v1089, 7
        %v1091 = vsub.s32 0, %v1090
        %v1092 = vrot.slane %v1088, %v1091
        %v1093 = vmul.f32 %v1010, %v1092
        %v1094 = vmul.f32 %v1016, %v1092
        %v1095 = vadd.f32 %v1086, %v1093
        %v1096 = vadd.f32 %v1087, %v1094
        %v1097 = vld [vmem:[#allocation7 + $0x8] sm:$0x1]
        %v1098 = vlaneseq
        %v1099 = vshrl.u32 %v1098, 7
        %v1100 = vsub.s32 0, %v1099
        %v1101 = vrot.slane %v1097, %v1100
        %v1102 = vmul.f32 %v1029, %v1101
        %v1103 = vmul.f32 %v1030, %v1101
        %v1104 = vadd.f32 %v1095, %v1102
        %v1105 = vadd.f32 %v1096, %v1103
        %v1106 = vrot.slane %v1054, 7
        %v1107 = vrot.slane %v1055, 7
        %vm1108 = vcmp.lt.s32.totalorder %v414, 1
        %v1109 = vsel %vm1108, %v1106, %v1107
        %v1110 = vsel %vm1108, %v1107, %v1106
        %v1111 = vsel %vm418, %v1110, 0.0
        %v1112 = vsel %vm419, %v1109, 0.0
        %v1113 = vadd.f32 %v1079, %v1111
        %v1114 = vadd.f32 %v1080, %v1112
        %v1115 = vrot.slane %v1104, 1
        %v1116 = vrot.slane %v1105, 1
        %vm1117 = vcmp.lt.s32.totalorder %v414, 7
        %v1118 = vsel %vm1117, %v1115, %v1116
        %v1119 = vsel %vm1117, %v1116, %v1115
        %v1120 = vsel %vm420, %v1118, 0.0
        %v1121 = vsel %vm421, %v1119, 0.0
        %v1122 = vadd.f32 %v1113, %v1120
        %v1123 = vadd.f32 %v1114, %v1121
        %v1124 = vld [vmem:[#allocation10] sm:$0xff]
        %v1125 = vld [vmem:[#allocation10 + $0x8] sm:$0xff]
        %v1126 = vld [vmem:[#allocation10 + $0x10] sm:$0xff]
        %v1127 = vld [vmem:[#allocation10 + $0x18] sm:$0xff]
        %v1128 = vld [vmem:[#allocation10 + $0x20] sm:$0xff]
        %v1129 = vld [vmem:[#allocation10 + $0x28] sm:$0xff]
        %v1130 = vld [vmem:[#allocation10 + $0x30] sm:$0xff]
        %v1131 = vld [vmem:[#allocation10 + $0x38] sm:$0xff]
        %v1132 = vld [vmem:[#allocation10 + $0x40] sm:$0xff]
        %v1133 = vld [vmem:[#allocation10 + $0x48] sm:$0xff]
        %v1134 = vld [vmem:[#allocation10 + $0x50] sm:$0xff]
        %v1135 = vld [vmem:[#allocation10 + $0x58] sm:$0xff]
        %v1136 = vld [vmem:[#allocation10 + $0x60] sm:$0xff]
        %v1137 = vld [vmem:[#allocation10 + $0x68] sm:$0xff]
        %v1138 = vld [vmem:[#allocation10 + $0x70] sm:$0xff]
        %v1139 = vld [vmem:[#allocation10 + $0x78] sm:$0xff]
        %v1140 = vld [vmem:[%s7] sm:$0x1]
        %v1141 = vlaneseq
        %v1142 = vshrl.u32 %v1141, 7
        %v1143 = vsub.s32 0, %v1142
        %v1144 = vrot.slane %v1140, %v1143
        %1145 = vmatprep.subr.mxu0 0.0
        %v1146 = vand.u32 %v1139, 4294901760
        %1147 = vmatpush1.msra.mxu0 %v1146
        %1148 = vmatprep.subr.mxu0 0.0
        %v1149 = vand.u32 %v1138, 4294901760
        %1150 = vmatpush1.msra.mxu0 %v1149
        %1151 = vmatprep.subr.mxu0 0.0
        %v1152 = vand.u32 %v1137, 4294901760
        %1153 = vmatpush1.msra.mxu0 %v1152
        %1154 = vmatprep.subr.mxu0 0.0
        %v1155 = vand.u32 %v1136, 4294901760
        %1156 = vmatpush1.msra.mxu0 %v1155
        %1157 = vmatprep.subr.mxu0 0.0
        %v1158 = vand.u32 %v1135, 4294901760
        %1159 = vmatpush1.msra.mxu0 %v1158
        %1160 = vmatprep.subr.mxu0 0.0
        %v1161 = vand.u32 %v1134, 4294901760
        %1162 = vmatpush1.msra.mxu0 %v1161
        %1163 = vmatprep.subr.mxu0 0.0
        %v1164 = vand.u32 %v1133, 4294901760
        %1165 = vmatpush1.msra.mxu0 %v1164
        %1166 = vmatprep.subr.mxu0 0.0
        %v1167 = vand.u32 %v1132, 4294901760
        %1168 = vmatpush1.msra.mxu0 %v1167
        %1169 = vmatprep.subr.mxu0 0.0
        %v1170 = vand.u32 %v1131, 4294901760
        %1171 = vmatpush1.msra.mxu0 %v1170
        %1172 = vmatprep.subr.mxu0 0.0
        %v1173 = vand.u32 %v1130, 4294901760
        %1174 = vmatpush1.msra.mxu0 %v1173
        %1175 = vmatprep.subr.mxu0 0.0
        %v1176 = vand.u32 %v1129, 4294901760
        %1177 = vmatpush1.msra.mxu0 %v1176
        %1178 = vmatprep.subr.mxu0 0.0
        %v1179 = vand.u32 %v1128, 4294901760
        %1180 = vmatpush1.msra.mxu0 %v1179
        %1181 = vmatprep.subr.mxu0 0.0
        %v1182 = vand.u32 %v1127, 4294901760
        %1183 = vmatpush1.msra.mxu0 %v1182
        %1184 = vmatprep.subr.mxu0 0.0
        %v1185 = vand.u32 %v1126, 4294901760
        %1186 = vmatpush1.msra.mxu0 %v1185
        %1187 = vmatprep.subr.mxu0 0.0
        %v1188 = vand.u32 %v1125, 4294901760
        %1189 = vmatpush1.msra.mxu0 %v1188
        %1190 = vmatprep.subr.mxu0 0.0
        %v1191 = vand.u32 %v1124, 4294901760
        %1192 = vmatpush1.msra.mxu0 %v1191
        %1193 = vmatprep.subr.mxu0 0.0
        %1194 = vmatpush2.msra.mxu0 0.0
        %1195 = vmatprep.subr.mxu0 0.0
        %1196 = vmatpush2.msra.mxu0 0.0
        %1197 = vmatprep.subr.mxu0 0.0
        %1198 = vmatpush2.msra.mxu0 0.0
        %1199 = vmatprep.subr.mxu0 0.0
        %1200 = vmatpush2.msra.mxu0 0.0
        %1201 = vmatprep.subr.mxu0 0.0
        %1202 = vmatpush2.msra.mxu0 0.0
        %1203 = vmatprep.subr.mxu0 0.0
        %1204 = vmatpush2.msra.mxu0 0.0
        %1205 = vmatprep.subr.mxu0 0.0
        %1206 = vmatpush2.msra.mxu0 0.0
        %1207 = vmatprep.subr.mxu0 0.0
        %1208 = vmatpush2.msra.mxu0 0.0
        %1209 = vmatprep.subr.mxu0 0.0
        %1210 = vmatpush2.msra.mxu0 0.0
        %1211 = vmatprep.subr.mxu0 0.0
        %1212 = vmatpush2.msra.mxu0 0.0
        %1213 = vmatprep.subr.mxu0 0.0
        %1214 = vmatpush2.msra.mxu0 0.0
        %1215 = vmatprep.subr.mxu0 0.0
        %1216 = vmatpush2.msra.mxu0 0.0
        %1217 = vmatprep.subr.mxu0 0.0
        %1218 = vmatpush2.msra.mxu0 0.0
        %1219 = vmatprep.subr.mxu0 0.0
        %1220 = vmatpush2.msra.mxu0 0.0
        %1221 = vmatprep.subr.mxu0 0.0
        %1222 = vmatpush2.msra.mxu0 0.0
        %1223 = vmatprep.subr.mxu0 0.0
        %1224 = vmatpush2.msra.mxu0 0.0
        %1225 = vmatprep.mubr.f32.mxu0 0.0
        %v1226 = vand.u32 %v1122, 4294901760
        %v1227 = vsub.f32 %v1122, %v1226
        %v1228 = vand.u32 %v1227, 4294901760
        %v1229 = vsub.f32 %v1227, %v1228
        %v1230 = vand.u32 %v1229, 4294901760
        %1231 = vmatmul.mubr.f32.gmra.mxu0 %v1230
        %v1232 = vpop.f32.mrf.mxu0
        %v1233 = vadd.f32 %v1144, %v1232
        %v1234 = vpop.f32.mrf.mxu0
        %1235 = vmatprep.mubr.f32.mxu0 0.0
        %v1236 = vand.u32 %v1123, 4294901760
        %v1237 = vsub.f32 %v1123, %v1236
        %v1238 = vand.u32 %v1237, 4294901760
        %v1239 = vsub.f32 %v1237, %v1238
        %v1240 = vand.u32 %v1239, 4294901760
        %1241 = vmatmul.mubr.f32.gmra.mxu0 %v1240
        %v1242 = vpop.f32.mrf.mxu0
        %v1243 = vadd.f32 %v1144, %v1242
        %v1244 = vpop.f32.mrf.mxu0
        %1245 = vdwg.mxu0
        %1246 = vmatprep.subr.mxu0 0.0
        %v1247 = vand.u32 %v1139, 4294901760
        %v1248 = vsub.f32 %v1139, %v1247
        %v1249 = vand.u32 %v1248, 4294901760
        %v1250 = vsub.f32 %v1248, %v1249
        %v1251 = vand.u32 %v1250, 4294901760
        %1252 = vmatpush1.msra.mxu0 %v1251
        %1253 = vmatprep.subr.mxu0 0.0
        %v1254 = vand.u32 %v1138, 4294901760
        %v1255 = vsub.f32 %v1138, %v1254
        %v1256 = vand.u32 %v1255, 4294901760
        %v1257 = vsub.f32 %v1255, %v1256
        %v1258 = vand.u32 %v1257, 4294901760
        %1259 = vmatpush1.msra.mxu0 %v1258
        %1260 = vmatprep.subr.mxu0 0.0
        %v1261 = vand.u32 %v1137, 4294901760
        %v1262 = vsub.f32 %v1137, %v1261
        %v1263 = vand.u32 %v1262, 4294901760
        %v1264 = vsub.f32 %v1262, %v1263
        %v1265 = vand.u32 %v1264, 4294901760
        %1266 = vmatpush1.msra.mxu0 %v1265
        %1267 = vmatprep.subr.mxu0 0.0
        %v1268 = vand.u32 %v1136, 4294901760
        %v1269 = vsub.f32 %v1136, %v1268
        %v1270 = vand.u32 %v1269, 4294901760
        %v1271 = vsub.f32 %v1269, %v1270
        %v1272 = vand.u32 %v1271, 4294901760
        %1273 = vmatpush1.msra.mxu0 %v1272
        %1274 = vmatprep.subr.mxu0 0.0
        %v1275 = vand.u32 %v1135, 4294901760
        %v1276 = vsub.f32 %v1135, %v1275
        %v1277 = vand.u32 %v1276, 4294901760
        %v1278 = vsub.f32 %v1276, %v1277
        %v1279 = vand.u32 %v1278, 4294901760
        %1280 = vmatpush1.msra.mxu0 %v1279
        %1281 = vmatprep.subr.mxu0 0.0
        %v1282 = vand.u32 %v1134, 4294901760
        %v1283 = vsub.f32 %v1134, %v1282
        %v1284 = vand.u32 %v1283, 4294901760
        %v1285 = vsub.f32 %v1283, %v1284
        %v1286 = vand.u32 %v1285, 4294901760
        %1287 = vmatpush1.msra.mxu0 %v1286
        %1288 = vmatprep.subr.mxu0 0.0
        %v1289 = vand.u32 %v1133, 4294901760
        %v1290 = vsub.f32 %v1133, %v1289
        %v1291 = vand.u32 %v1290, 4294901760
        %v1292 = vsub.f32 %v1290, %v1291
        %v1293 = vand.u32 %v1292, 4294901760
        %1294 = vmatpush1.msra.mxu0 %v1293
        %1295 = vmatprep.subr.mxu0 0.0
        %v1296 = vand.u32 %v1132, 4294901760
        %v1297 = vsub.f32 %v1132, %v1296
        %v1298 = vand.u32 %v1297, 4294901760
        %v1299 = vsub.f32 %v1297, %v1298
        %v1300 = vand.u32 %v1299, 4294901760
        %1301 = vmatpush1.msra.mxu0 %v1300
        %1302 = vmatprep.subr.mxu0 0.0
        %v1303 = vand.u32 %v1131, 4294901760
        %v1304 = vsub.f32 %v1131, %v1303
        %v1305 = vand.u32 %v1304, 4294901760
        %v1306 = vsub.f32 %v1304, %v1305
        %v1307 = vand.u32 %v1306, 4294901760
        %1308 = vmatpush1.msra.mxu0 %v1307
        %1309 = vmatprep.subr.mxu0 0.0
        %v1310 = vand.u32 %v1130, 4294901760
        %v1311 = vsub.f32 %v1130, %v1310
        %v1312 = vand.u32 %v1311, 4294901760
        %v1313 = vsub.f32 %v1311, %v1312
        %v1314 = vand.u32 %v1313, 4294901760
        %1315 = vmatpush1.msra.mxu0 %v1314
        %1316 = vmatprep.subr.mxu0 0.0
        %v1317 = vand.u32 %v1129, 4294901760
        %v1318 = vsub.f32 %v1129, %v1317
        %v1319 = vand.u32 %v1318, 4294901760
        %v1320 = vsub.f32 %v1318, %v1319
        %v1321 = vand.u32 %v1320, 4294901760
        %1322 = vmatpush1.msra.mxu0 %v1321
        %1323 = vmatprep.subr.mxu0 0.0
        %v1324 = vand.u32 %v1128, 4294901760
        %v1325 = vsub.f32 %v1128, %v1324
        %v1326 = vand.u32 %v1325, 4294901760
        %v1327 = vsub.f32 %v1325, %v1326
        %v1328 = vand.u32 %v1327, 4294901760
        %1329 = vmatpush1.msra.mxu0 %v1328
        %1330 = vmatprep.subr.mxu0 0.0
        %v1331 = vand.u32 %v1127, 4294901760
        %v1332 = vsub.f32 %v1127, %v1331
        %v1333 = vand.u32 %v1332, 4294901760
        %v1334 = vsub.f32 %v1332, %v1333
        %v1335 = vand.u32 %v1334, 4294901760
        %1336 = vmatpush1.msra.mxu0 %v1335
        %1337 = vmatprep.subr.mxu0 0.0
        %v1338 = vand.u32 %v1126, 4294901760
        %v1339 = vsub.f32 %v1126, %v1338
        %v1340 = vand.u32 %v1339, 4294901760
        %v1341 = vsub.f32 %v1339, %v1340
        %v1342 = vand.u32 %v1341, 4294901760
        %1343 = vmatpush1.msra.mxu0 %v1342
        %1344 = vmatprep.subr.mxu0 0.0
        %v1345 = vand.u32 %v1125, 4294901760
        %v1346 = vsub.f32 %v1125, %v1345
        %v1347 = vand.u32 %v1346, 4294901760
        %v1348 = vsub.f32 %v1346, %v1347
        %v1349 = vand.u32 %v1348, 4294901760
        %1350 = vmatpush1.msra.mxu0 %v1349
        %1351 = vmatprep.subr.mxu0 0.0
        %v1352 = vand.u32 %v1124, 4294901760
        %v1353 = vsub.f32 %v1124, %v1352
        %v1354 = vand.u32 %v1353, 4294901760
        %v1355 = vsub.f32 %v1353, %v1354
        %v1356 = vand.u32 %v1355, 4294901760
        %1357 = vmatpush1.msra.mxu0 %v1356
        %1358 = vmatprep.subr.mxu0 0.0
        %1359 = vmatpush2.msra.mxu0 0.0
        %1360 = vmatprep.subr.mxu0 0.0
        %1361 = vmatpush2.msra.mxu0 0.0
        %1362 = vmatprep.subr.mxu0 0.0
        %1363 = vmatpush2.msra.mxu0 0.0
        %1364 = vmatprep.subr.mxu0 0.0
        %1365 = vmatpush2.msra.mxu0 0.0
        %1366 = vmatprep.subr.mxu0 0.0
        %1367 = vmatpush2.msra.mxu0 0.0
        %1368 = vmatprep.subr.mxu0 0.0
        %1369 = vmatpush2.msra.mxu0 0.0
        %1370 = vmatprep.subr.mxu0 0.0
        %1371 = vmatpush2.msra.mxu0 0.0
        %1372 = vmatprep.subr.mxu0 0.0
        %1373 = vmatpush2.msra.mxu0 0.0
        %1374 = vmatprep.subr.mxu0 0.0
        %1375 = vmatpush2.msra.mxu0 0.0
        %1376 = vmatprep.subr.mxu0 0.0
        %1377 = vmatpush2.msra.mxu0 0.0
        %1378 = vmatprep.subr.mxu0 0.0
        %1379 = vmatpush2.msra.mxu0 0.0
        %1380 = vmatprep.subr.mxu0 0.0
        %1381 = vmatpush2.msra.mxu0 0.0
        %1382 = vmatprep.subr.mxu0 0.0
        %1383 = vmatpush2.msra.mxu0 0.0
        %1384 = vmatprep.subr.mxu0 0.0
        %1385 = vmatpush2.msra.mxu0 0.0
        %1386 = vmatprep.subr.mxu0 0.0
        %1387 = vmatpush2.msra.mxu0 0.0
        %1388 = vmatprep.subr.mxu0 0.0
        %1389 = vmatpush2.msra.mxu0 0.0
        %1390 = vmatprep.mubr.f32.mxu0 0.0
        %v1391 = vand.u32 %v1122, 4294901760
        %1392 = vmatmul.mubr.f32.gmra.mxu0 %v1391
        %v1393 = vpop.f32.mrf.mxu0
        %v1394 = vadd.f32 %v1233, %v1393
        %v1395 = vpop.f32.mrf.mxu0
        %1396 = vmatprep.mubr.f32.mxu0 0.0
        %v1397 = vand.u32 %v1123, 4294901760
        %1398 = vmatmul.mubr.f32.gmra.mxu0 %v1397
        %v1399 = vpop.f32.mrf.mxu0
        %v1400 = vadd.f32 %v1243, %v1399
        %v1401 = vpop.f32.mrf.mxu0
        %1402 = vdwg.mxu0
        %1403 = vmatprep.subr.mxu0 0.0
        %v1404 = vand.u32 %v1139, 4294901760
        %v1405 = vsub.f32 %v1139, %v1404
        %1406 = vmatpush1.msra.mxu0 %v1405
        %1407 = vmatprep.subr.mxu0 0.0
        %v1408 = vand.u32 %v1138, 4294901760
        %v1409 = vsub.f32 %v1138, %v1408
        %1410 = vmatpush1.msra.mxu0 %v1409
        %1411 = vmatprep.subr.mxu0 0.0
        %v1412 = vand.u32 %v1137, 4294901760
        %v1413 = vsub.f32 %v1137, %v1412
        %1414 = vmatpush1.msra.mxu0 %v1413
        %1415 = vmatprep.subr.mxu0 0.0
        %v1416 = vand.u32 %v1136, 4294901760
        %v1417 = vsub.f32 %v1136, %v1416
        %1418 = vmatpush1.msra.mxu0 %v1417
        %1419 = vmatprep.subr.mxu0 0.0
        %v1420 = vand.u32 %v1135, 4294901760
        %v1421 = vsub.f32 %v1135, %v1420
        %1422 = vmatpush1.msra.mxu0 %v1421
        %1423 = vmatprep.subr.mxu0 0.0
        %v1424 = vand.u32 %v1134, 4294901760
        %v1425 = vsub.f32 %v1134, %v1424
        %1426 = vmatpush1.msra.mxu0 %v1425
        %1427 = vmatprep.subr.mxu0 0.0
        %v1428 = vand.u32 %v1133, 4294901760
        %v1429 = vsub.f32 %v1133, %v1428
        %1430 = vmatpush1.msra.mxu0 %v1429
        %1431 = vmatprep.subr.mxu0 0.0
        %v1432 = vand.u32 %v1132, 4294901760
        %v1433 = vsub.f32 %v1132, %v1432
        %1434 = vmatpush1.msra.mxu0 %v1433
        %1435 = vmatprep.subr.mxu0 0.0
        %v1436 = vand.u32 %v1131, 4294901760
        %v1437 = vsub.f32 %v1131, %v1436
        %1438 = vmatpush1.msra.mxu0 %v1437
        %1439 = vmatprep.subr.mxu0 0.0
        %v1440 = vand.u32 %v1130, 4294901760
        %v1441 = vsub.f32 %v1130, %v1440
        %1442 = vmatpush1.msra.mxu0 %v1441
        %1443 = vmatprep.subr.mxu0 0.0
        %v1444 = vand.u32 %v1129, 4294901760
        %v1445 = vsub.f32 %v1129, %v1444
        %1446 = vmatpush1.msra.mxu0 %v1445
        %1447 = vmatprep.subr.mxu0 0.0
        %v1448 = vand.u32 %v1128, 4294901760
        %v1449 = vsub.f32 %v1128, %v1448
        %1450 = vmatpush1.msra.mxu0 %v1449
        %1451 = vmatprep.subr.mxu0 0.0
        %v1452 = vand.u32 %v1127, 4294901760
        %v1453 = vsub.f32 %v1127, %v1452
        %1454 = vmatpush1.msra.mxu0 %v1453
        %1455 = vmatprep.subr.mxu0 0.0
        %v1456 = vand.u32 %v1126, 4294901760
        %v1457 = vsub.f32 %v1126, %v1456
        %1458 = vmatpush1.msra.mxu0 %v1457
        %1459 = vmatprep.subr.mxu0 0.0
        %v1460 = vand.u32 %v1125, 4294901760
        %v1461 = vsub.f32 %v1125, %v1460
        %1462 = vmatpush1.msra.mxu0 %v1461
        %1463 = vmatprep.subr.mxu0 0.0
        %v1464 = vand.u32 %v1124, 4294901760
        %v1465 = vsub.f32 %v1124, %v1464
        %1466 = vmatpush1.msra.mxu0 %v1465
        %1467 = vmatprep.subr.mxu0 0.0
        %1468 = vmatpush2.msra.mxu0 0.0
        %1469 = vmatprep.subr.mxu0 0.0
        %1470 = vmatpush2.msra.mxu0 0.0
        %1471 = vmatprep.subr.mxu0 0.0
        %1472 = vmatpush2.msra.mxu0 0.0
        %1473 = vmatprep.subr.mxu0 0.0
        %1474 = vmatpush2.msra.mxu0 0.0
        %1475 = vmatprep.subr.mxu0 0.0
        %1476 = vmatpush2.msra.mxu0 0.0
        %1477 = vmatprep.subr.mxu0 0.0
        %1478 = vmatpush2.msra.mxu0 0.0
        %1479 = vmatprep.subr.mxu0 0.0
        %1480 = vmatpush2.msra.mxu0 0.0
        %1481 = vmatprep.subr.mxu0 0.0
        %1482 = vmatpush2.msra.mxu0 0.0
        %1483 = vmatprep.subr.mxu0 0.0
        %1484 = vmatpush2.msra.mxu0 0.0
        %1485 = vmatprep.subr.mxu0 0.0
        %1486 = vmatpush2.msra.mxu0 0.0
        %1487 = vmatprep.subr.mxu0 0.0
        %1488 = vmatpush2.msra.mxu0 0.0
        %1489 = vmatprep.subr.mxu0 0.0
        %1490 = vmatpush2.msra.mxu0 0.0
        %1491 = vmatprep.subr.mxu0 0.0
        %1492 = vmatpush2.msra.mxu0 0.0
        %1493 = vmatprep.subr.mxu0 0.0
        %1494 = vmatpush2.msra.mxu0 0.0
        %1495 = vmatprep.subr.mxu0 0.0
        %1496 = vmatpush2.msra.mxu0 0.0
        %1497 = vmatprep.subr.mxu0 0.0
        %1498 = vmatpush2.msra.mxu0 0.0
        %1499 = vmatprep.mubr.f32.mxu0 0.0
        %v1500 = vand.u32 %v1122, 4294901760
        %v1501 = vsub.f32 %v1122, %v1500
        %1502 = vmatmul.mubr.f32.gmra.mxu0 %v1501
        %v1503 = vpop.f32.mrf.mxu0
        %v1504 = vadd.f32 %v1394, %v1503
        %v1505 = vpop.f32.mrf.mxu0
        %1506 = vmatprep.mubr.f32.mxu0 0.0
        %v1507 = vand.u32 %v1123, 4294901760
        %v1508 = vsub.f32 %v1123, %v1507
        %1509 = vmatmul.mubr.f32.gmra.mxu0 %v1508
        %v1510 = vpop.f32.mrf.mxu0
        %v1511 = vadd.f32 %v1400, %v1510
        %v1512 = vpop.f32.mrf.mxu0
        %1513 = vdwg.mxu0
        %1514 = vmatprep.subr.mxu0 0.0
        %v1515 = vand.u32 %v1139, 4294901760
        %1516 = vmatpush1.msra.mxu0 %v1515
        %1517 = vmatprep.subr.mxu0 0.0
        %v1518 = vand.u32 %v1138, 4294901760
        %1519 = vmatpush1.msra.mxu0 %v1518
        %1520 = vmatprep.subr.mxu0 0.0
        %v1521 = vand.u32 %v1137, 4294901760
        %1522 = vmatpush1.msra.mxu0 %v1521
        %1523 = vmatprep.subr.mxu0 0.0
        %v1524 = vand.u32 %v1136, 4294901760
        %1525 = vmatpush1.msra.mxu0 %v1524
        %1526 = vmatprep.subr.mxu0 0.0
        %v1527 = vand.u32 %v1135, 4294901760
        %1528 = vmatpush1.msra.mxu0 %v1527
        %1529 = vmatprep.subr.mxu0 0.0
        %v1530 = vand.u32 %v1134, 4294901760
        %1531 = vmatpush1.msra.mxu0 %v1530
        %1532 = vmatprep.subr.mxu0 0.0
        %v1533 = vand.u32 %v1133, 4294901760
        %1534 = vmatpush1.msra.mxu0 %v1533
        %1535 = vmatprep.subr.mxu0 0.0
        %v1536 = vand.u32 %v1132, 4294901760
        %1537 = vmatpush1.msra.mxu0 %v1536
        %1538 = vmatprep.subr.mxu0 0.0
        %v1539 = vand.u32 %v1131, 4294901760
        %1540 = vmatpush1.msra.mxu0 %v1539
        %1541 = vmatprep.subr.mxu0 0.0
        %v1542 = vand.u32 %v1130, 4294901760
        %1543 = vmatpush1.msra.mxu0 %v1542
        %1544 = vmatprep.subr.mxu0 0.0
        %v1545 = vand.u32 %v1129, 4294901760
        %1546 = vmatpush1.msra.mxu0 %v1545
        %1547 = vmatprep.subr.mxu0 0.0
        %v1548 = vand.u32 %v1128, 4294901760
        %1549 = vmatpush1.msra.mxu0 %v1548
        %1550 = vmatprep.subr.mxu0 0.0
        %v1551 = vand.u32 %v1127, 4294901760
        %1552 = vmatpush1.msra.mxu0 %v1551
        %1553 = vmatprep.subr.mxu0 0.0
        %v1554 = vand.u32 %v1126, 4294901760
        %1555 = vmatpush1.msra.mxu0 %v1554
        %1556 = vmatprep.subr.mxu0 0.0
        %v1557 = vand.u32 %v1125, 4294901760
        %1558 = vmatpush1.msra.mxu0 %v1557
        %1559 = vmatprep.subr.mxu0 0.0
        %v1560 = vand.u32 %v1124, 4294901760
        %1561 = vmatpush1.msra.mxu0 %v1560
        %1562 = vmatprep.subr.mxu0 0.0
        %1563 = vmatpush2.msra.mxu0 0.0
        %1564 = vmatprep.subr.mxu0 0.0
        %1565 = vmatpush2.msra.mxu0 0.0
        %1566 = vmatprep.subr.mxu0 0.0
        %1567 = vmatpush2.msra.mxu0 0.0
        %1568 = vmatprep.subr.mxu0 0.0
        %1569 = vmatpush2.msra.mxu0 0.0
        %1570 = vmatprep.subr.mxu0 0.0
        %1571 = vmatpush2.msra.mxu0 0.0
        %1572 = vmatprep.subr.mxu0 0.0
        %1573 = vmatpush2.msra.mxu0 0.0
        %1574 = vmatprep.subr.mxu0 0.0
        %1575 = vmatpush2.msra.mxu0 0.0
        %1576 = vmatprep.subr.mxu0 0.0
        %1577 = vmatpush2.msra.mxu0 0.0
        %1578 = vmatprep.subr.mxu0 0.0
        %1579 = vmatpush2.msra.mxu0 0.0
        %1580 = vmatprep.subr.mxu0 0.0
        %1581 = vmatpush2.msra.mxu0 0.0
        %1582 = vmatprep.subr.mxu0 0.0
        %1583 = vmatpush2.msra.mxu0 0.0
        %1584 = vmatprep.subr.mxu0 0.0
        %1585 = vmatpush2.msra.mxu0 0.0
        %1586 = vmatprep.subr.mxu0 0.0
        %1587 = vmatpush2.msra.mxu0 0.0
        %1588 = vmatprep.subr.mxu0 0.0
        %1589 = vmatpush2.msra.mxu0 0.0
        %1590 = vmatprep.subr.mxu0 0.0
        %1591 = vmatpush2.msra.mxu0 0.0
        %1592 = vmatprep.subr.mxu0 0.0
        %1593 = vmatpush2.msra.mxu0 0.0
        %1594 = vmatprep.mubr.f32.mxu0 0.0
        %v1595 = vand.u32 %v1122, 4294901760
        %v1596 = vsub.f32 %v1122, %v1595
        %v1597 = vand.u32 %v1596, 4294901760
        %1598 = vmatmul.mubr.f32.gmra.mxu0 %v1597
        %v1599 = vpop.f32.mrf.mxu0
        %v1600 = vadd.f32 %v1504, %v1599
        %v1601 = vpop.f32.mrf.mxu0
        %1602 = vmatprep.mubr.f32.mxu0 0.0
        %v1603 = vand.u32 %v1123, 4294901760
        %v1604 = vsub.f32 %v1123, %v1603
        %v1605 = vand.u32 %v1604, 4294901760
        %1606 = vmatmul.mubr.f32.gmra.mxu0 %v1605
        %v1607 = vpop.f32.mrf.mxu0
        %v1608 = vadd.f32 %v1511, %v1607
        %v1609 = vpop.f32.mrf.mxu0
        %1610 = vdwg.mxu0
        %1611 = vmatprep.subr.mxu0 0.0
        %v1612 = vand.u32 %v1139, 4294901760
        %v1613 = vsub.f32 %v1139, %v1612
        %v1614 = vand.u32 %v1613, 4294901760
        %1615 = vmatpush1.msra.mxu0 %v1614
        %1616 = vmatprep.subr.mxu0 0.0
        %v1617 = vand.u32 %v1138, 4294901760
        %v1618 = vsub.f32 %v1138, %v1617
        %v1619 = vand.u32 %v1618, 4294901760
        %1620 = vmatpush1.msra.mxu0 %v1619
        %1621 = vmatprep.subr.mxu0 0.0
        %v1622 = vand.u32 %v1137, 4294901760
        %v1623 = vsub.f32 %v1137, %v1622
        %v1624 = vand.u32 %v1623, 4294901760
        %1625 = vmatpush1.msra.mxu0 %v1624
        %1626 = vmatprep.subr.mxu0 0.0
        %v1627 = vand.u32 %v1136, 4294901760
        %v1628 = vsub.f32 %v1136, %v1627
        %v1629 = vand.u32 %v1628, 4294901760
        %1630 = vmatpush1.msra.mxu0 %v1629
        %1631 = vmatprep.subr.mxu0 0.0
        %v1632 = vand.u32 %v1135, 4294901760
        %v1633 = vsub.f32 %v1135, %v1632
        %v1634 = vand.u32 %v1633, 4294901760
        %1635 = vmatpush1.msra.mxu0 %v1634
        %1636 = vmatprep.subr.mxu0 0.0
        %v1637 = vand.u32 %v1134, 4294901760
        %v1638 = vsub.f32 %v1134, %v1637
        %v1639 = vand.u32 %v1638, 4294901760
        %1640 = vmatpush1.msra.mxu0 %v1639
        %1641 = vmatprep.subr.mxu0 0.0
        %v1642 = vand.u32 %v1133, 4294901760
        %v1643 = vsub.f32 %v1133, %v1642
        %v1644 = vand.u32 %v1643, 4294901760
        %1645 = vmatpush1.msra.mxu0 %v1644
        %1646 = vmatprep.subr.mxu0 0.0
        %v1647 = vand.u32 %v1132, 4294901760
        %v1648 = vsub.f32 %v1132, %v1647
        %v1649 = vand.u32 %v1648, 4294901760
        %1650 = vmatpush1.msra.mxu0 %v1649
        %1651 = vmatprep.subr.mxu0 0.0
        %v1652 = vand.u32 %v1131, 4294901760
        %v1653 = vsub.f32 %v1131, %v1652
        %v1654 = vand.u32 %v1653, 4294901760
        %1655 = vmatpush1.msra.mxu0 %v1654
        %1656 = vmatprep.subr.mxu0 0.0
        %v1657 = vand.u32 %v1130, 4294901760
        %v1658 = vsub.f32 %v1130, %v1657
        %v1659 = vand.u32 %v1658, 4294901760
        %1660 = vmatpush1.msra.mxu0 %v1659
        %1661 = vmatprep.subr.mxu0 0.0
        %v1662 = vand.u32 %v1129, 4294901760
        %v1663 = vsub.f32 %v1129, %v1662
        %v1664 = vand.u32 %v1663, 4294901760
        %1665 = vmatpush1.msra.mxu0 %v1664
        %1666 = vmatprep.subr.mxu0 0.0
        %v1667 = vand.u32 %v1128, 4294901760
        %v1668 = vsub.f32 %v1128, %v1667
        %v1669 = vand.u32 %v1668, 4294901760
        %1670 = vmatpush1.msra.mxu0 %v1669
        %1671 = vmatprep.subr.mxu0 0.0
        %v1672 = vand.u32 %v1127, 4294901760
        %v1673 = vsub.f32 %v1127, %v1672
        %v1674 = vand.u32 %v1673, 4294901760
        %1675 = vmatpush1.msra.mxu0 %v1674
        %1676 = vmatprep.subr.mxu0 0.0
        %v1677 = vand.u32 %v1126, 4294901760
        %v1678 = vsub.f32 %v1126, %v1677
        %v1679 = vand.u32 %v1678, 4294901760
        %1680 = vmatpush1.msra.mxu0 %v1679
        %1681 = vmatprep.subr.mxu0 0.0
        %v1682 = vand.u32 %v1125, 4294901760
        %v1683 = vsub.f32 %v1125, %v1682
        %v1684 = vand.u32 %v1683, 4294901760
        %1685 = vmatpush1.msra.mxu0 %v1684
        %1686 = vmatprep.subr.mxu0 0.0
        %v1687 = vand.u32 %v1124, 4294901760
        %v1688 = vsub.f32 %v1124, %v1687
        %v1689 = vand.u32 %v1688, 4294901760
        %1690 = vmatpush1.msra.mxu0 %v1689
        %1691 = vmatprep.subr.mxu0 0.0
        %1692 = vmatpush2.msra.mxu0 0.0
        %1693 = vmatprep.subr.mxu0 0.0
        %1694 = vmatpush2.msra.mxu0 0.0
        %1695 = vmatprep.subr.mxu0 0.0
        %1696 = vmatpush2.msra.mxu0 0.0
        %1697 = vmatprep.subr.mxu0 0.0
        %1698 = vmatpush2.msra.mxu0 0.0
        %1699 = vmatprep.subr.mxu0 0.0
        %1700 = vmatpush2.msra.mxu0 0.0
        %1701 = vmatprep.subr.mxu0 0.0
        %1702 = vmatpush2.msra.mxu0 0.0
        %1703 = vmatprep.subr.mxu0 0.0
        %1704 = vmatpush2.msra.mxu0 0.0
        %1705 = vmatprep.subr.mxu0 0.0
        %1706 = vmatpush2.msra.mxu0 0.0
        %1707 = vmatprep.subr.mxu0 0.0
        %1708 = vmatpush2.msra.mxu0 0.0
        %1709 = vmatprep.subr.mxu0 0.0
        %1710 = vmatpush2.msra.mxu0 0.0
        %1711 = vmatprep.subr.mxu0 0.0
        %1712 = vmatpush2.msra.mxu0 0.0
        %1713 = vmatprep.subr.mxu0 0.0
        %1714 = vmatpush2.msra.mxu0 0.0
        %1715 = vmatprep.subr.mxu0 0.0
        %1716 = vmatpush2.msra.mxu0 0.0
        %1717 = vmatprep.subr.mxu0 0.0
        %1718 = vmatpush2.msra.mxu0 0.0
        %1719 = vmatprep.subr.mxu0 0.0
        %1720 = vmatpush2.msra.mxu0 0.0
        %1721 = vmatprep.subr.mxu0 0.0
        %1722 = vmatpush2.msra.mxu0 0.0
        %1723 = vmatprep.mubr.f32.mxu0 0.0
        %v1724 = vand.u32 %v1122, 4294901760
        %1725 = vmatmul.mubr.f32.gmra.mxu0 %v1724
        %v1726 = vpop.f32.mrf.mxu0
        %v1727 = vadd.f32 %v1600, %v1726
        %v1728 = vpop.f32.mrf.mxu0
        %1729 = vmatprep.mubr.f32.mxu0 0.0
        %v1730 = vand.u32 %v1123, 4294901760
        %1731 = vmatmul.mubr.f32.gmra.mxu0 %v1730
        %v1732 = vpop.f32.mrf.mxu0
        %v1733 = vadd.f32 %v1608, %v1732
        %v1734 = vpop.f32.mrf.mxu0
        %1735 = vdwg.mxu0
        %1736 = vmatprep.subr.mxu0 0.0
        %v1737 = vand.u32 %v1139, 4294901760
        %1738 = vmatpush1.msra.mxu0 %v1737
        %1739 = vmatprep.subr.mxu0 0.0
        %v1740 = vand.u32 %v1138, 4294901760
        %1741 = vmatpush1.msra.mxu0 %v1740
        %1742 = vmatprep.subr.mxu0 0.0
        %v1743 = vand.u32 %v1137, 4294901760
        %1744 = vmatpush1.msra.mxu0 %v1743
        %1745 = vmatprep.subr.mxu0 0.0
        %v1746 = vand.u32 %v1136, 4294901760
        %1747 = vmatpush1.msra.mxu0 %v1746
        %1748 = vmatprep.subr.mxu0 0.0
        %v1749 = vand.u32 %v1135, 4294901760
        %1750 = vmatpush1.msra.mxu0 %v1749
        %1751 = vmatprep.subr.mxu0 0.0
        %v1752 = vand.u32 %v1134, 4294901760
        %1753 = vmatpush1.msra.mxu0 %v1752
        %1754 = vmatprep.subr.mxu0 0.0
        %v1755 = vand.u32 %v1133, 4294901760
        %1756 = vmatpush1.msra.mxu0 %v1755
        %1757 = vmatprep.subr.mxu0 0.0
        %v1758 = vand.u32 %v1132, 4294901760
        %1759 = vmatpush1.msra.mxu0 %v1758
        %1760 = vmatprep.subr.mxu0 0.0
        %v1761 = vand.u32 %v1131, 4294901760
        %1762 = vmatpush1.msra.mxu0 %v1761
        %1763 = vmatprep.subr.mxu0 0.0
        %v1764 = vand.u32 %v1130, 4294901760
        %1765 = vmatpush1.msra.mxu0 %v1764
        %1766 = vmatprep.subr.mxu0 0.0
        %v1767 = vand.u32 %v1129, 4294901760
        %1768 = vmatpush1.msra.mxu0 %v1767
        %1769 = vmatprep.subr.mxu0 0.0
        %v1770 = vand.u32 %v1128, 4294901760
        %1771 = vmatpush1.msra.mxu0 %v1770
        %1772 = vmatprep.subr.mxu0 0.0
        %v1773 = vand.u32 %v1127, 4294901760
        %1774 = vmatpush1.msra.mxu0 %v1773
        %1775 = vmatprep.subr.mxu0 0.0
        %v1776 = vand.u32 %v1126, 4294901760
        %1777 = vmatpush1.msra.mxu0 %v1776
        %1778 = vmatprep.subr.mxu0 0.0
        %v1779 = vand.u32 %v1125, 4294901760
        %1780 = vmatpush1.msra.mxu0 %v1779
        %1781 = vmatprep.subr.mxu0 0.0
        %v1782 = vand.u32 %v1124, 4294901760
        %1783 = vmatpush1.msra.mxu0 %v1782
        %1784 = vmatprep.subr.mxu0 0.0
        %1785 = vmatpush2.msra.mxu0 0.0
        %1786 = vmatprep.subr.mxu0 0.0
        %1787 = vmatpush2.msra.mxu0 0.0
        %1788 = vmatprep.subr.mxu0 0.0
        %1789 = vmatpush2.msra.mxu0 0.0
        %1790 = vmatprep.subr.mxu0 0.0
        %1791 = vmatpush2.msra.mxu0 0.0
        %1792 = vmatprep.subr.mxu0 0.0
        %1793 = vmatpush2.msra.mxu0 0.0
        %1794 = vmatprep.subr.mxu0 0.0
        %1795 = vmatpush2.msra.mxu0 0.0
        %1796 = vmatprep.subr.mxu0 0.0
        %1797 = vmatpush2.msra.mxu0 0.0
        %1798 = vmatprep.subr.mxu0 0.0
        %1799 = vmatpush2.msra.mxu0 0.0
        %1800 = vmatprep.subr.mxu0 0.0
        %1801 = vmatpush2.msra.mxu0 0.0
        %1802 = vmatprep.subr.mxu0 0.0
        %1803 = vmatpush2.msra.mxu0 0.0
        %1804 = vmatprep.subr.mxu0 0.0
        %1805 = vmatpush2.msra.mxu0 0.0
        %1806 = vmatprep.subr.mxu0 0.0
        %1807 = vmatpush2.msra.mxu0 0.0
        %1808 = vmatprep.subr.mxu0 0.0
        %1809 = vmatpush2.msra.mxu0 0.0
        %1810 = vmatprep.subr.mxu0 0.0
        %1811 = vmatpush2.msra.mxu0 0.0
        %1812 = vmatprep.subr.mxu0 0.0
        %1813 = vmatpush2.msra.mxu0 0.0
        %1814 = vmatprep.subr.mxu0 0.0
        %1815 = vmatpush2.msra.mxu0 0.0
        %1816 = vmatprep.mubr.f32.mxu0 0.0
        %v1817 = vand.u32 %v1122, 4294901760
        %1818 = vmatmul.mubr.f32.gmra.mxu0 %v1817
        %v1819 = vpop.f32.mrf.mxu0
        %v1820 = vadd.f32 %v1727, %v1819
        %v1821 = vpop.f32.mrf.mxu0
        %1822 = vmatprep.mubr.f32.mxu0 0.0
        %v1823 = vand.u32 %v1123, 4294901760
        %1824 = vmatmul.mubr.f32.gmra.mxu0 %v1823
        %v1825 = vpop.f32.mrf.mxu0
        %v1826 = vadd.f32 %v1733, %v1825
        %v1827 = vpop.f32.mrf.mxu0
        %1828 = vdwg.mxu0
        %v1829 = vmax.f32 %v1820, 0.0
        %v1830 = vmax.f32 %v1826, 0.0
        %1831 = vrot.lane.b32.xlu0 %v1829, 8
        %v1832 = vpop.permute.xlu0 %1831
        %1833 = vrot.lane.b32.xlu0 %v1830, 8
        %v1834 = vpop.permute.xlu0 %1833
        %v1835 = vsel %vm416, %v1832, 0.0
        %v1836 = vsel %vm416, %v1834, 0.0
        %1837 = vrot.lane.b32.xlu0 %v1829, 120
        %v1838 = vpop.permute.xlu0 %1837
        %1839 = vrot.lane.b32.xlu0 %v1830, 120
        %v1840 = vpop.permute.xlu0 %1839
        %v1841 = vsel %vm417, %v1838, 0.0
        %v1842 = vsel %vm417, %v1840, 0.0
        %v1843 = vld [vmem:[#allocation8] sm:$0x1]
        %v1844 = vlaneseq
        %v1845 = vshrl.u32 %v1844, 7
        %v1846 = vsub.s32 0, %v1845
        %v1847 = vrot.slane %v1843, %v1846
        %v1848 = vmul.f32 %v1835, %v1847
        %v1849 = vmul.f32 %v1836, %v1847
        %v1850 = vld [vmem:[#allocation8 + $0x1] sm:$0x1]
        %v1851 = vlaneseq
        %v1852 = vshrl.u32 %v1851, 7
        %v1853 = vsub.s32 0, %v1852
        %v1854 = vrot.slane %v1850, %v1853
        %v1855 = vmul.f32 %v1829, %v1854
        %v1856 = vmul.f32 %v1830, %v1854
        %v1857 = vadd.f32 %v1848, %v1855
        %v1858 = vadd.f32 %v1849, %v1856
        %v1859 = vld [vmem:[#allocation8 + $0x2] sm:$0x1]
        %v1860 = vlaneseq
        %v1861 = vshrl.u32 %v1860, 7
        %v1862 = vsub.s32 0, %v1861
        %v1863 = vrot.slane %v1859, %v1862
        %v1864 = vmul.f32 %v1841, %v1863
        %v1865 = vmul.f32 %v1842, %v1863
        %v1866 = vadd.f32 %v1857, %v1864
        %v1867 = vadd.f32 %v1858, %v1865
        %v1868 = vld [vmem:[#allocation8 + $0x3] sm:$0x1]
        %v1869 = vlaneseq
        %v1870 = vshrl.u32 %v1869, 7
        %v1871 = vsub.s32 0, %v1870
        %v1872 = vrot.slane %v1868, %v1871
        %v1873 = vmul.f32 %v1835, %v1872
        %v1874 = vmul.f32 %v1836, %v1872
        %v1875 = vld [vmem:[#allocation8 + $0x4] sm:$0x1]
        %v1876 = vlaneseq
        %v1877 = vshrl.u32 %v1876, 7
        %v1878 = vsub.s32 0, %v1877
        %v1879 = vrot.slane %v1875, %v1878
        %v1880 = vmul.f32 %v1829, %v1879
        %v1881 = vmul.f32 %v1830, %v1879
        %v1882 = vadd.f32 %v1873, %v1880
        %v1883 = vadd.f32 %v1874, %v1881
        %v1884 = vld [vmem:[#allocation8 + $0x5] sm:$0x1]
        %v1885 = vlaneseq
        %v1886 = vshrl.u32 %v1885, 7
        %v1887 = vsub.s32 0, %v1886
        %v1888 = vrot.slane %v1884, %v1887
        %v1889 = vmul.f32 %v1841, %v1888
        %v1890 = vmul.f32 %v1842, %v1888
        %v1891 = vadd.f32 %v1882, %v1889
        %v1892 = vadd.f32 %v1883, %v1890
        %v1893 = vld [vmem:[#allocation8 + $0x6] sm:$0x1]
        %v1894 = vlaneseq
        %v1895 = vshrl.u32 %v1894, 7
        %v1896 = vsub.s32 0, %v1895
        %v1897 = vrot.slane %v1893, %v1896
        %v1898 = vmul.f32 %v1835, %v1897
        %v1899 = vmul.f32 %v1836, %v1897
        %v1900 = vld [vmem:[#allocation8 + $0x7] sm:$0x1]
        %v1901 = vlaneseq
        %v1902 = vshrl.u32 %v1901, 7
        %v1903 = vsub.s32 0, %v1902
        %v1904 = vrot.slane %v1900, %v1903
        %v1905 = vmul.f32 %v1829, %v1904
        %v1906 = vmul.f32 %v1830, %v1904
        %v1907 = vadd.f32 %v1898, %v1905
        %v1908 = vadd.f32 %v1899, %v1906
        %v1909 = vld [vmem:[#allocation8 + $0x8] sm:$0x1]
        %v1910 = vlaneseq
        %v1911 = vshrl.u32 %v1910, 7
        %v1912 = vsub.s32 0, %v1911
        %v1913 = vrot.slane %v1909, %v1912
        %v1914 = vmul.f32 %v1841, %v1913
        %v1915 = vmul.f32 %v1842, %v1913
        %v1916 = vadd.f32 %v1907, %v1914
        %v1917 = vadd.f32 %v1908, %v1915
        %v1918 = vrot.slane %v1866, 7
        %v1919 = vrot.slane %v1867, 7
        %v1920 = vsel %vm1108, %v1918, %v1919
        %v1921 = vsel %vm1108, %v1919, %v1918
        %v1922 = vsel %vm418, %v1921, 0.0
        %v1923 = vsel %vm419, %v1920, 0.0
        %v1924 = vadd.f32 %v1891, %v1922
        %v1925 = vadd.f32 %v1892, %v1923
        %v1926 = vrot.slane %v1916, 1
        %v1927 = vrot.slane %v1917, 1
        %v1928 = vsel %vm1117, %v1926, %v1927
        %v1929 = vsel %vm1117, %v1927, %v1926
        %v1930 = vsel %vm420, %v1928, 0.0
        %v1931 = vsel %vm421, %v1929, 0.0
        %v1932 = vadd.f32 %v1924, %v1930
        %v1933 = vadd.f32 %v1925, %v1931
        %v1934 = vld [vmem:[#allocation11] sm:$0xff]
        %v1935 = vld [vmem:[#allocation11 + $0x8] sm:$0xff]
        %v1936 = vld [vmem:[#allocation11 + $0x10] sm:$0xff]
        %v1937 = vld [vmem:[#allocation11 + $0x18] sm:$0xff]
        %v1938 = vld [vmem:[#allocation11 + $0x20] sm:$0xff]
        %v1939 = vld [vmem:[#allocation11 + $0x28] sm:$0xff]
        %v1940 = vld [vmem:[#allocation11 + $0x30] sm:$0xff]
        %v1941 = vld [vmem:[#allocation11 + $0x38] sm:$0xff]
        %v1942 = vld [vmem:[#allocation11 + $0x40] sm:$0xff]
        %v1943 = vld [vmem:[#allocation11 + $0x48] sm:$0xff]
        %v1944 = vld [vmem:[#allocation11 + $0x50] sm:$0xff]
        %v1945 = vld [vmem:[#allocation11 + $0x58] sm:$0xff]
        %v1946 = vld [vmem:[#allocation11 + $0x60] sm:$0xff]
        %v1947 = vld [vmem:[#allocation11 + $0x68] sm:$0xff]
        %v1948 = vld [vmem:[#allocation11 + $0x70] sm:$0xff]
        %v1949 = vld [vmem:[#allocation11 + $0x78] sm:$0xff]
        %v1950 = vld [vmem:[%s7 + $0x1] sm:$0x1]
        %v1951 = vlaneseq
        %v1952 = vshrl.u32 %v1951, 7
        %v1953 = vsub.s32 0, %v1952
        %v1954 = vrot.slane %v1950, %v1953
        %1955 = vmatprep.subr.mxu0 0.0
        %v1956 = vand.u32 %v1949, 4294901760
        %1957 = vmatpush1.msra.mxu0 %v1956
        %1958 = vmatprep.subr.mxu0 0.0
        %v1959 = vand.u32 %v1948, 4294901760
        %1960 = vmatpush1.msra.mxu0 %v1959
        %1961 = vmatprep.subr.mxu0 0.0
        %v1962 = vand.u32 %v1947, 4294901760
        %1963 = vmatpush1.msra.mxu0 %v1962
        %1964 = vmatprep.subr.mxu0 0.0
        %v1965 = vand.u32 %v1946, 4294901760
        %1966 = vmatpush1.msra.mxu0 %v1965
        %1967 = vmatprep.subr.mxu0 0.0
        %v1968 = vand.u32 %v1945, 4294901760
        %1969 = vmatpush1.msra.mxu0 %v1968
        %1970 = vmatprep.subr.mxu0 0.0
        %v1971 = vand.u32 %v1944, 4294901760
        %1972 = vmatpush1.msra.mxu0 %v1971
        %1973 = vmatprep.subr.mxu0 0.0
        %v1974 = vand.u32 %v1943, 4294901760
        %1975 = vmatpush1.msra.mxu0 %v1974
        %1976 = vmatprep.subr.mxu0 0.0
        %v1977 = vand.u32 %v1942, 4294901760
        %1978 = vmatpush1.msra.mxu0 %v1977
        %1979 = vmatprep.subr.mxu0 0.0
        %v1980 = vand.u32 %v1941, 4294901760
        %1981 = vmatpush1.msra.mxu0 %v1980
        %1982 = vmatprep.subr.mxu0 0.0
        %v1983 = vand.u32 %v1940, 4294901760
        %1984 = vmatpush1.msra.mxu0 %v1983
        %1985 = vmatprep.subr.mxu0 0.0
        %v1986 = vand.u32 %v1939, 4294901760
        %1987 = vmatpush1.msra.mxu0 %v1986
        %1988 = vmatprep.subr.mxu0 0.0
        %v1989 = vand.u32 %v1938, 4294901760
        %1990 = vmatpush1.msra.mxu0 %v1989
        %1991 = vmatprep.subr.mxu0 0.0
        %v1992 = vand.u32 %v1937, 4294901760
        %1993 = vmatpush1.msra.mxu0 %v1992
        %1994 = vmatprep.subr.mxu0 0.0
        %v1995 = vand.u32 %v1936, 4294901760
        %1996 = vmatpush1.msra.mxu0 %v1995
        %1997 = vmatprep.subr.mxu0 0.0
        %v1998 = vand.u32 %v1935, 4294901760
        %1999 = vmatpush1.msra.mxu0 %v1998
        %2000 = vmatprep.subr.mxu0 0.0
        %v2001 = vand.u32 %v1934, 4294901760
        %2002 = vmatpush1.msra.mxu0 %v2001
        %2003 = vmatprep.subr.mxu0 0.0
        %2004 = vmatpush2.msra.mxu0 0.0
        %2005 = vmatprep.subr.mxu0 0.0
        %2006 = vmatpush2.msra.mxu0 0.0
        %2007 = vmatprep.subr.mxu0 0.0
        %2008 = vmatpush2.msra.mxu0 0.0
        %2009 = vmatprep.subr.mxu0 0.0
        %2010 = vmatpush2.msra.mxu0 0.0
        %2011 = vmatprep.subr.mxu0 0.0
        %2012 = vmatpush2.msra.mxu0 0.0
        %2013 = vmatprep.subr.mxu0 0.0
        %2014 = vmatpush2.msra.mxu0 0.0
        %2015 = vmatprep.subr.mxu0 0.0
        %2016 = vmatpush2.msra.mxu0 0.0
        %2017 = vmatprep.subr.mxu0 0.0
        %2018 = vmatpush2.msra.mxu0 0.0
        %2019 = vmatprep.subr.mxu0 0.0
        %2020 = vmatpush2.msra.mxu0 0.0
        %2021 = vmatprep.subr.mxu0 0.0
        %2022 = vmatpush2.msra.mxu0 0.0
        %2023 = vmatprep.subr.mxu0 0.0
        %2024 = vmatpush2.msra.mxu0 0.0
        %2025 = vmatprep.subr.mxu0 0.0
        %2026 = vmatpush2.msra.mxu0 0.0
        %2027 = vmatprep.subr.mxu0 0.0
        %2028 = vmatpush2.msra.mxu0 0.0
        %2029 = vmatprep.subr.mxu0 0.0
        %2030 = vmatpush2.msra.mxu0 0.0
        %2031 = vmatprep.subr.mxu0 0.0
        %2032 = vmatpush2.msra.mxu0 0.0
        %2033 = vmatprep.subr.mxu0 0.0
        %2034 = vmatpush2.msra.mxu0 0.0
        %2035 = vmatprep.mubr.f32.mxu0 0.0
        %v2036 = vand.u32 %v1932, 4294901760
        %v2037 = vsub.f32 %v1932, %v2036
        %v2038 = vand.u32 %v2037, 4294901760
        %v2039 = vsub.f32 %v2037, %v2038
        %v2040 = vand.u32 %v2039, 4294901760
        %2041 = vmatmul.mubr.f32.gmra.mxu0 %v2040
        %v2042 = vpop.f32.mrf.mxu0
        %v2043 = vadd.f32 %v1954, %v2042
        %v2044 = vpop.f32.mrf.mxu0
        %2045 = vmatprep.mubr.f32.mxu0 0.0
        %v2046 = vand.u32 %v1933, 4294901760
        %v2047 = vsub.f32 %v1933, %v2046
        %v2048 = vand.u32 %v2047, 4294901760
        %v2049 = vsub.f32 %v2047, %v2048
        %v2050 = vand.u32 %v2049, 4294901760
        %2051 = vmatmul.mubr.f32.gmra.mxu0 %v2050
        %v2052 = vpop.f32.mrf.mxu0
        %v2053 = vadd.f32 %v1954, %v2052
        %v2054 = vpop.f32.mrf.mxu0
        %2055 = vdwg.mxu0
        %2056 = vmatprep.subr.mxu0 0.0
        %v2057 = vand.u32 %v1949, 4294901760
        %v2058 = vsub.f32 %v1949, %v2057
        %v2059 = vand.u32 %v2058, 4294901760
        %v2060 = vsub.f32 %v2058, %v2059
        %v2061 = vand.u32 %v2060, 4294901760
        %2062 = vmatpush1.msra.mxu0 %v2061
        %2063 = vmatprep.subr.mxu0 0.0
        %v2064 = vand.u32 %v1948, 4294901760
        %v2065 = vsub.f32 %v1948, %v2064
        %v2066 = vand.u32 %v2065, 4294901760
        %v2067 = vsub.f32 %v2065, %v2066
        %v2068 = vand.u32 %v2067, 4294901760
        %2069 = vmatpush1.msra.mxu0 %v2068
        %2070 = vmatprep.subr.mxu0 0.0
        %v2071 = vand.u32 %v1947, 4294901760
        %v2072 = vsub.f32 %v1947, %v2071
        %v2073 = vand.u32 %v2072, 4294901760
        %v2074 = vsub.f32 %v2072, %v2073
        %v2075 = vand.u32 %v2074, 4294901760
        %2076 = vmatpush1.msra.mxu0 %v2075
        %2077 = vmatprep.subr.mxu0 0.0
        %v2078 = vand.u32 %v1946, 4294901760
        %v2079 = vsub.f32 %v1946, %v2078
        %v2080 = vand.u32 %v2079, 4294901760
        %v2081 = vsub.f32 %v2079, %v2080
        %v2082 = vand.u32 %v2081, 4294901760
        %2083 = vmatpush1.msra.mxu0 %v2082
        %2084 = vmatprep.subr.mxu0 0.0
        %v2085 = vand.u32 %v1945, 4294901760
        %v2086 = vsub.f32 %v1945, %v2085
        %v2087 = vand.u32 %v2086, 4294901760
        %v2088 = vsub.f32 %v2086, %v2087
        %v2089 = vand.u32 %v2088, 4294901760
        %2090 = vmatpush1.msra.mxu0 %v2089
        %2091 = vmatprep.subr.mxu0 0.0
        %v2092 = vand.u32 %v1944, 4294901760
        %v2093 = vsub.f32 %v1944, %v2092
        %v2094 = vand.u32 %v2093, 4294901760
        %v2095 = vsub.f32 %v2093, %v2094
        %v2096 = vand.u32 %v2095, 4294901760
        %2097 = vmatpush1.msra.mxu0 %v2096
        %2098 = vmatprep.subr.mxu0 0.0
        %v2099 = vand.u32 %v1943, 4294901760
        %v2100 = vsub.f32 %v1943, %v2099
        %v2101 = vand.u32 %v2100, 4294901760
        %v2102 = vsub.f32 %v2100, %v2101
        %v2103 = vand.u32 %v2102, 4294901760
        %2104 = vmatpush1.msra.mxu0 %v2103
        %2105 = vmatprep.subr.mxu0 0.0
        %v2106 = vand.u32 %v1942, 4294901760
        %v2107 = vsub.f32 %v1942, %v2106
        %v2108 = vand.u32 %v2107, 4294901760
        %v2109 = vsub.f32 %v2107, %v2108
        %v2110 = vand.u32 %v2109, 4294901760
        %2111 = vmatpush1.msra.mxu0 %v2110
        %2112 = vmatprep.subr.mxu0 0.0
        %v2113 = vand.u32 %v1941, 4294901760
        %v2114 = vsub.f32 %v1941, %v2113
        %v2115 = vand.u32 %v2114, 4294901760
        %v2116 = vsub.f32 %v2114, %v2115
        %v2117 = vand.u32 %v2116, 4294901760
        %2118 = vmatpush1.msra.mxu0 %v2117
        %2119 = vmatprep.subr.mxu0 0.0
        %v2120 = vand.u32 %v1940, 4294901760
        %v2121 = vsub.f32 %v1940, %v2120
        %v2122 = vand.u32 %v2121, 4294901760
        %v2123 = vsub.f32 %v2121, %v2122
        %v2124 = vand.u32 %v2123, 4294901760
        %2125 = vmatpush1.msra.mxu0 %v2124
        %2126 = vmatprep.subr.mxu0 0.0
        %v2127 = vand.u32 %v1939, 4294901760
        %v2128 = vsub.f32 %v1939, %v2127
        %v2129 = vand.u32 %v2128, 4294901760
        %v2130 = vsub.f32 %v2128, %v2129
        %v2131 = vand.u32 %v2130, 4294901760
        %2132 = vmatpush1.msra.mxu0 %v2131
        %2133 = vmatprep.subr.mxu0 0.0
        %v2134 = vand.u32 %v1938, 4294901760
        %v2135 = vsub.f32 %v1938, %v2134
        %v2136 = vand.u32 %v2135, 4294901760
        %v2137 = vsub.f32 %v2135, %v2136
        %v2138 = vand.u32 %v2137, 4294901760
        %2139 = vmatpush1.msra.mxu0 %v2138
        %2140 = vmatprep.subr.mxu0 0.0
        %v2141 = vand.u32 %v1937, 4294901760
        %v2142 = vsub.f32 %v1937, %v2141
        %v2143 = vand.u32 %v2142, 4294901760
        %v2144 = vsub.f32 %v2142, %v2143
        %v2145 = vand.u32 %v2144, 4294901760
        %2146 = vmatpush1.msra.mxu0 %v2145
        %2147 = vmatprep.subr.mxu0 0.0
        %v2148 = vand.u32 %v1936, 4294901760
        %v2149 = vsub.f32 %v1936, %v2148
        %v2150 = vand.u32 %v2149, 4294901760
        %v2151 = vsub.f32 %v2149, %v2150
        %v2152 = vand.u32 %v2151, 4294901760
        %2153 = vmatpush1.msra.mxu0 %v2152
        %2154 = vmatprep.subr.mxu0 0.0
        %v2155 = vand.u32 %v1935, 4294901760
        %v2156 = vsub.f32 %v1935, %v2155
        %v2157 = vand.u32 %v2156, 4294901760
        %v2158 = vsub.f32 %v2156, %v2157
        %v2159 = vand.u32 %v2158, 4294901760
        %2160 = vmatpush1.msra.mxu0 %v2159
        %2161 = vmatprep.subr.mxu0 0.0
        %v2162 = vand.u32 %v1934, 4294901760
        %v2163 = vsub.f32 %v1934, %v2162
        %v2164 = vand.u32 %v2163, 4294901760
        %v2165 = vsub.f32 %v2163, %v2164
        %v2166 = vand.u32 %v2165, 4294901760
        %2167 = vmatpush1.msra.mxu0 %v2166
        %2168 = vmatprep.subr.mxu0 0.0
        %2169 = vmatpush2.msra.mxu0 0.0
        %2170 = vmatprep.subr.mxu0 0.0
        %2171 = vmatpush2.msra.mxu0 0.0
        %2172 = vmatprep.subr.mxu0 0.0
        %2173 = vmatpush2.msra.mxu0 0.0
        %2174 = vmatprep.subr.mxu0 0.0
        %2175 = vmatpush2.msra.mxu0 0.0
        %2176 = vmatprep.subr.mxu0 0.0
        %2177 = vmatpush2.msra.mxu0 0.0
        %2178 = vmatprep.subr.mxu0 0.0
        %2179 = vmatpush2.msra.mxu0 0.0
        %2180 = vmatprep.subr.mxu0 0.0
        %2181 = vmatpush2.msra.mxu0 0.0
        %2182 = vmatprep.subr.mxu0 0.0
        %2183 = vmatpush2.msra.mxu0 0.0
        %2184 = vmatprep.subr.mxu0 0.0
        %2185 = vmatpush2.msra.mxu0 0.0
        %2186 = vmatprep.subr.mxu0 0.0
        %2187 = vmatpush2.msra.mxu0 0.0
        %2188 = vmatprep.subr.mxu0 0.0
        %2189 = vmatpush2.msra.mxu0 0.0
        %2190 = vmatprep.subr.mxu0 0.0
        %2191 = vmatpush2.msra.mxu0 0.0
        %2192 = vmatprep.subr.mxu0 0.0
        %2193 = vmatpush2.msra.mxu0 0.0
        %2194 = vmatprep.subr.mxu0 0.0
        %2195 = vmatpush2.msra.mxu0 0.0
        %2196 = vmatprep.subr.mxu0 0.0
        %2197 = vmatpush2.msra.mxu0 0.0
        %2198 = vmatprep.subr.mxu0 0.0
        %2199 = vmatpush2.msra.mxu0 0.0
        %2200 = vmatprep.mubr.f32.mxu0 0.0
        %v2201 = vand.u32 %v1932, 4294901760
        %2202 = vmatmul.mubr.f32.gmra.mxu0 %v2201
        %v2203 = vpop.f32.mrf.mxu0
        %v2204 = vadd.f32 %v2043, %v2203
        %v2205 = vpop.f32.mrf.mxu0
        %2206 = vmatprep.mubr.f32.mxu0 0.0
        %v2207 = vand.u32 %v1933, 4294901760
        %2208 = vmatmul.mubr.f32.gmra.mxu0 %v2207
        %v2209 = vpop.f32.mrf.mxu0
        %v2210 = vadd.f32 %v2053, %v2209
        %v2211 = vpop.f32.mrf.mxu0
        %2212 = vdwg.mxu0
        %2213 = vmatprep.subr.mxu0 0.0
        %v2214 = vand.u32 %v1949, 4294901760
        %v2215 = vsub.f32 %v1949, %v2214
        %2216 = vmatpush1.msra.mxu0 %v2215
        %2217 = vmatprep.subr.mxu0 0.0
        %v2218 = vand.u32 %v1948, 4294901760
        %v2219 = vsub.f32 %v1948, %v2218
        %2220 = vmatpush1.msra.mxu0 %v2219
        %2221 = vmatprep.subr.mxu0 0.0
        %v2222 = vand.u32 %v1947, 4294901760
        %v2223 = vsub.f32 %v1947, %v2222
        %2224 = vmatpush1.msra.mxu0 %v2223
        %2225 = vmatprep.subr.mxu0 0.0
        %v2226 = vand.u32 %v1946, 4294901760
        %v2227 = vsub.f32 %v1946, %v2226
        %2228 = vmatpush1.msra.mxu0 %v2227
        %2229 = vmatprep.subr.mxu0 0.0
        %v2230 = vand.u32 %v1945, 4294901760
        %v2231 = vsub.f32 %v1945, %v2230
        %2232 = vmatpush1.msra.mxu0 %v2231
        %2233 = vmatprep.subr.mxu0 0.0
        %v2234 = vand.u32 %v1944, 4294901760
        %v2235 = vsub.f32 %v1944, %v2234
        %2236 = vmatpush1.msra.mxu0 %v2235
        %2237 = vmatprep.subr.mxu0 0.0
        %v2238 = vand.u32 %v1943, 4294901760
        %v2239 = vsub.f32 %v1943, %v2238
        %2240 = vmatpush1.msra.mxu0 %v2239
        %2241 = vmatprep.subr.mxu0 0.0
        %v2242 = vand.u32 %v1942, 4294901760
        %v2243 = vsub.f32 %v1942, %v2242
        %2244 = vmatpush1.msra.mxu0 %v2243
        %2245 = vmatprep.subr.mxu0 0.0
        %v2246 = vand.u32 %v1941, 4294901760
        %v2247 = vsub.f32 %v1941, %v2246
        %2248 = vmatpush1.msra.mxu0 %v2247
        %2249 = vmatprep.subr.mxu0 0.0
        %v2250 = vand.u32 %v1940, 4294901760
        %v2251 = vsub.f32 %v1940, %v2250
        %2252 = vmatpush1.msra.mxu0 %v2251
        %2253 = vmatprep.subr.mxu0 0.0
        %v2254 = vand.u32 %v1939, 4294901760
        %v2255 = vsub.f32 %v1939, %v2254
        %2256 = vmatpush1.msra.mxu0 %v2255
        %2257 = vmatprep.subr.mxu0 0.0
        %v2258 = vand.u32 %v1938, 4294901760
        %v2259 = vsub.f32 %v1938, %v2258
        %2260 = vmatpush1.msra.mxu0 %v2259
        %2261 = vmatprep.subr.mxu0 0.0
        %v2262 = vand.u32 %v1937, 4294901760
        %v2263 = vsub.f32 %v1937, %v2262
        %2264 = vmatpush1.msra.mxu0 %v2263
        %2265 = vmatprep.subr.mxu0 0.0
        %v2266 = vand.u32 %v1936, 4294901760
        %v2267 = vsub.f32 %v1936, %v2266
        %2268 = vmatpush1.msra.mxu0 %v2267
        %2269 = vmatprep.subr.mxu0 0.0
        %v2270 = vand.u32 %v1935, 4294901760
        %v2271 = vsub.f32 %v1935, %v2270
        %2272 = vmatpush1.msra.mxu0 %v2271
        %2273 = vmatprep.subr.mxu0 0.0
        %v2274 = vand.u32 %v1934, 4294901760
        %v2275 = vsub.f32 %v1934, %v2274
        %2276 = vmatpush1.msra.mxu0 %v2275
        %2277 = vmatprep.subr.mxu0 0.0
        %2278 = vmatpush2.msra.mxu0 0.0
        %2279 = vmatprep.subr.mxu0 0.0
        %2280 = vmatpush2.msra.mxu0 0.0
        %2281 = vmatprep.subr.mxu0 0.0
        %2282 = vmatpush2.msra.mxu0 0.0
        %2283 = vmatprep.subr.mxu0 0.0
        %2284 = vmatpush2.msra.mxu0 0.0
        %2285 = vmatprep.subr.mxu0 0.0
        %2286 = vmatpush2.msra.mxu0 0.0
        %2287 = vmatprep.subr.mxu0 0.0
        %2288 = vmatpush2.msra.mxu0 0.0
        %2289 = vmatprep.subr.mxu0 0.0
        %2290 = vmatpush2.msra.mxu0 0.0
        %2291 = vmatprep.subr.mxu0 0.0
        %2292 = vmatpush2.msra.mxu0 0.0
        %2293 = vmatprep.subr.mxu0 0.0
        %2294 = vmatpush2.msra.mxu0 0.0
        %2295 = vmatprep.subr.mxu0 0.0
        %2296 = vmatpush2.msra.mxu0 0.0
        %2297 = vmatprep.subr.mxu0 0.0
        %2298 = vmatpush2.msra.mxu0 0.0
        %2299 = vmatprep.subr.mxu0 0.0
        %2300 = vmatpush2.msra.mxu0 0.0
        %2301 = vmatprep.subr.mxu0 0.0
        %2302 = vmatpush2.msra.mxu0 0.0
        %2303 = vmatprep.subr.mxu0 0.0
        %2304 = vmatpush2.msra.mxu0 0.0
        %2305 = vmatprep.subr.mxu0 0.0
        %2306 = vmatpush2.msra.mxu0 0.0
        %2307 = vmatprep.subr.mxu0 0.0
        %2308 = vmatpush2.msra.mxu0 0.0
        %2309 = vmatprep.mubr.f32.mxu0 0.0
        %v2310 = vand.u32 %v1932, 4294901760
        %v2311 = vsub.f32 %v1932, %v2310
        %2312 = vmatmul.mubr.f32.gmra.mxu0 %v2311
        %v2313 = vpop.f32.mrf.mxu0
        %v2314 = vadd.f32 %v2204, %v2313
        %v2315 = vpop.f32.mrf.mxu0
        %2316 = vmatprep.mubr.f32.mxu0 0.0
        %v2317 = vand.u32 %v1933, 4294901760
        %v2318 = vsub.f32 %v1933, %v2317
        %2319 = vmatmul.mubr.f32.gmra.mxu0 %v2318
        %v2320 = vpop.f32.mrf.mxu0
        %v2321 = vadd.f32 %v2210, %v2320
        %v2322 = vpop.f32.mrf.mxu0
        %2323 = vdwg.mxu0
        %2324 = vmatprep.subr.mxu0 0.0
        %v2325 = vand.u32 %v1949, 4294901760
        %2326 = vmatpush1.msra.mxu0 %v2325
        %2327 = vmatprep.subr.mxu0 0.0
        %v2328 = vand.u32 %v1948, 4294901760
        %2329 = vmatpush1.msra.mxu0 %v2328
        %2330 = vmatprep.subr.mxu0 0.0
        %v2331 = vand.u32 %v1947, 4294901760
        %2332 = vmatpush1.msra.mxu0 %v2331
        %2333 = vmatprep.subr.mxu0 0.0
        %v2334 = vand.u32 %v1946, 4294901760
        %2335 = vmatpush1.msra.mxu0 %v2334
        %2336 = vmatprep.subr.mxu0 0.0
        %v2337 = vand.u32 %v1945, 4294901760
        %2338 = vmatpush1.msra.mxu0 %v2337
        %2339 = vmatprep.subr.mxu0 0.0
        %v2340 = vand.u32 %v1944, 4294901760
        %2341 = vmatpush1.msra.mxu0 %v2340
        %2342 = vmatprep.subr.mxu0 0.0
        %v2343 = vand.u32 %v1943, 4294901760
        %2344 = vmatpush1.msra.mxu0 %v2343
        %2345 = vmatprep.subr.mxu0 0.0
        %v2346 = vand.u32 %v1942, 4294901760
        %2347 = vmatpush1.msra.mxu0 %v2346
        %2348 = vmatprep.subr.mxu0 0.0
        %v2349 = vand.u32 %v1941, 4294901760
        %2350 = vmatpush1.msra.mxu0 %v2349
        %2351 = vmatprep.subr.mxu0 0.0
        %v2352 = vand.u32 %v1940, 4294901760
        %2353 = vmatpush1.msra.mxu0 %v2352
        %2354 = vmatprep.subr.mxu0 0.0
        %v2355 = vand.u32 %v1939, 4294901760
        %2356 = vmatpush1.msra.mxu0 %v2355
        %2357 = vmatprep.subr.mxu0 0.0
        %v2358 = vand.u32 %v1938, 4294901760
        %2359 = vmatpush1.msra.mxu0 %v2358
        %2360 = vmatprep.subr.mxu0 0.0
        %v2361 = vand.u32 %v1937, 4294901760
        %2362 = vmatpush1.msra.mxu0 %v2361
        %2363 = vmatprep.subr.mxu0 0.0
        %v2364 = vand.u32 %v1936, 4294901760
        %2365 = vmatpush1.msra.mxu0 %v2364
        %2366 = vmatprep.subr.mxu0 0.0
        %v2367 = vand.u32 %v1935, 4294901760
        %2368 = vmatpush1.msra.mxu0 %v2367
        %2369 = vmatprep.subr.mxu0 0.0
        %v2370 = vand.u32 %v1934, 4294901760
        %2371 = vmatpush1.msra.mxu0 %v2370
        %2372 = vmatprep.subr.mxu0 0.0
        %2373 = vmatpush2.msra.mxu0 0.0
        %2374 = vmatprep.subr.mxu0 0.0
        %2375 = vmatpush2.msra.mxu0 0.0
        %2376 = vmatprep.subr.mxu0 0.0
        %2377 = vmatpush2.msra.mxu0 0.0
        %2378 = vmatprep.subr.mxu0 0.0
        %2379 = vmatpush2.msra.mxu0 0.0
        %2380 = vmatprep.subr.mxu0 0.0
        %2381 = vmatpush2.msra.mxu0 0.0
        %2382 = vmatprep.subr.mxu0 0.0
        %2383 = vmatpush2.msra.mxu0 0.0
        %2384 = vmatprep.subr.mxu0 0.0
        %2385 = vmatpush2.msra.mxu0 0.0
        %2386 = vmatprep.subr.mxu0 0.0
        %2387 = vmatpush2.msra.mxu0 0.0
        %2388 = vmatprep.subr.mxu0 0.0
        %2389 = vmatpush2.msra.mxu0 0.0
        %2390 = vmatprep.subr.mxu0 0.0
        %2391 = vmatpush2.msra.mxu0 0.0
        %2392 = vmatprep.subr.mxu0 0.0
        %2393 = vmatpush2.msra.mxu0 0.0
        %2394 = vmatprep.subr.mxu0 0.0
        %2395 = vmatpush2.msra.mxu0 0.0
        %2396 = vmatprep.subr.mxu0 0.0
        %2397 = vmatpush2.msra.mxu0 0.0
        %2398 = vmatprep.subr.mxu0 0.0
        %2399 = vmatpush2.msra.mxu0 0.0
        %2400 = vmatprep.subr.mxu0 0.0
        %2401 = vmatpush2.msra.mxu0 0.0
        %2402 = vmatprep.subr.mxu0 0.0
        %2403 = vmatpush2.msra.mxu0 0.0
        %2404 = vmatprep.mubr.f32.mxu0 0.0
        %v2405 = vand.u32 %v1932, 4294901760
        %v2406 = vsub.f32 %v1932, %v2405
        %v2407 = vand.u32 %v2406, 4294901760
        %2408 = vmatmul.mubr.f32.gmra.mxu0 %v2407
        %v2409 = vpop.f32.mrf.mxu0
        %v2410 = vadd.f32 %v2314, %v2409
        %v2411 = vpop.f32.mrf.mxu0
        %2412 = vmatprep.mubr.f32.mxu0 0.0
        %v2413 = vand.u32 %v1933, 4294901760
        %v2414 = vsub.f32 %v1933, %v2413
        %v2415 = vand.u32 %v2414, 4294901760
        %2416 = vmatmul.mubr.f32.gmra.mxu0 %v2415
        %v2417 = vpop.f32.mrf.mxu0
        %v2418 = vadd.f32 %v2321, %v2417
        %v2419 = vpop.f32.mrf.mxu0
        %2420 = vdwg.mxu0
        %2421 = vmatprep.subr.mxu0 0.0
        %v2422 = vand.u32 %v1949, 4294901760
        %v2423 = vsub.f32 %v1949, %v2422
        %v2424 = vand.u32 %v2423, 4294901760
        %2425 = vmatpush1.msra.mxu0 %v2424
        %2426 = vmatprep.subr.mxu0 0.0
        %v2427 = vand.u32 %v1948, 4294901760
        %v2428 = vsub.f32 %v1948, %v2427
        %v2429 = vand.u32 %v2428, 4294901760
        %2430 = vmatpush1.msra.mxu0 %v2429
        %2431 = vmatprep.subr.mxu0 0.0
        %v2432 = vand.u32 %v1947, 4294901760
        %v2433 = vsub.f32 %v1947, %v2432
        %v2434 = vand.u32 %v2433, 4294901760
        %2435 = vmatpush1.msra.mxu0 %v2434
        %2436 = vmatprep.subr.mxu0 0.0
        %v2437 = vand.u32 %v1946, 4294901760
        %v2438 = vsub.f32 %v1946, %v2437
        %v2439 = vand.u32 %v2438, 4294901760
        %2440 = vmatpush1.msra.mxu0 %v2439
        %2441 = vmatprep.subr.mxu0 0.0
        %v2442 = vand.u32 %v1945, 4294901760
        %v2443 = vsub.f32 %v1945, %v2442
        %v2444 = vand.u32 %v2443, 4294901760
        %2445 = vmatpush1.msra.mxu0 %v2444
        %2446 = vmatprep.subr.mxu0 0.0
        %v2447 = vand.u32 %v1944, 4294901760
        %v2448 = vsub.f32 %v1944, %v2447
        %v2449 = vand.u32 %v2448, 4294901760
        %2450 = vmatpush1.msra.mxu0 %v2449
        %2451 = vmatprep.subr.mxu0 0.0
        %v2452 = vand.u32 %v1943, 4294901760
        %v2453 = vsub.f32 %v1943, %v2452
        %v2454 = vand.u32 %v2453, 4294901760
        %2455 = vmatpush1.msra.mxu0 %v2454
        %2456 = vmatprep.subr.mxu0 0.0
        %v2457 = vand.u32 %v1942, 4294901760
        %v2458 = vsub.f32 %v1942, %v2457
        %v2459 = vand.u32 %v2458, 4294901760
        %2460 = vmatpush1.msra.mxu0 %v2459
        %2461 = vmatprep.subr.mxu0 0.0
        %v2462 = vand.u32 %v1941, 4294901760
        %v2463 = vsub.f32 %v1941, %v2462
        %v2464 = vand.u32 %v2463, 4294901760
        %2465 = vmatpush1.msra.mxu0 %v2464
        %2466 = vmatprep.subr.mxu0 0.0
        %v2467 = vand.u32 %v1940, 4294901760
        %v2468 = vsub.f32 %v1940, %v2467
        %v2469 = vand.u32 %v2468, 4294901760
        %2470 = vmatpush1.msra.mxu0 %v2469
        %2471 = vmatprep.subr.mxu0 0.0
        %v2472 = vand.u32 %v1939, 4294901760
        %v2473 = vsub.f32 %v1939, %v2472
        %v2474 = vand.u32 %v2473, 4294901760
        %2475 = vmatpush1.msra.mxu0 %v2474
        %2476 = vmatprep.subr.mxu0 0.0
        %v2477 = vand.u32 %v1938, 4294901760
        %v2478 = vsub.f32 %v1938, %v2477
        %v2479 = vand.u32 %v2478, 4294901760
        %2480 = vmatpush1.msra.mxu0 %v2479
        %2481 = vmatprep.subr.mxu0 0.0
        %v2482 = vand.u32 %v1937, 4294901760
        %v2483 = vsub.f32 %v1937, %v2482
        %v2484 = vand.u32 %v2483, 4294901760
        %2485 = vmatpush1.msra.mxu0 %v2484
        %2486 = vmatprep.subr.mxu0 0.0
        %v2487 = vand.u32 %v1936, 4294901760
        %v2488 = vsub.f32 %v1936, %v2487
        %v2489 = vand.u32 %v2488, 4294901760
        %2490 = vmatpush1.msra.mxu0 %v2489
        %2491 = vmatprep.subr.mxu0 0.0
        %v2492 = vand.u32 %v1935, 4294901760
        %v2493 = vsub.f32 %v1935, %v2492
        %v2494 = vand.u32 %v2493, 4294901760
        %2495 = vmatpush1.msra.mxu0 %v2494
        %2496 = vmatprep.subr.mxu0 0.0
        %v2497 = vand.u32 %v1934, 4294901760
        %v2498 = vsub.f32 %v1934, %v2497
        %v2499 = vand.u32 %v2498, 4294901760
        %2500 = vmatpush1.msra.mxu0 %v2499
        %2501 = vmatprep.subr.mxu0 0.0
        %2502 = vmatpush2.msra.mxu0 0.0
        %2503 = vmatprep.subr.mxu0 0.0
        %2504 = vmatpush2.msra.mxu0 0.0
        %2505 = vmatprep.subr.mxu0 0.0
        %2506 = vmatpush2.msra.mxu0 0.0
        %2507 = vmatprep.subr.mxu0 0.0
        %2508 = vmatpush2.msra.mxu0 0.0
        %2509 = vmatprep.subr.mxu0 0.0
        %2510 = vmatpush2.msra.mxu0 0.0
        %2511 = vmatprep.subr.mxu0 0.0
        %2512 = vmatpush2.msra.mxu0 0.0
        %2513 = vmatprep.subr.mxu0 0.0
        %2514 = vmatpush2.msra.mxu0 0.0
        %2515 = vmatprep.subr.mxu0 0.0
        %2516 = vmatpush2.msra.mxu0 0.0
        %2517 = vmatprep.subr.mxu0 0.0
        %2518 = vmatpush2.msra.mxu0 0.0
        %2519 = vmatprep.subr.mxu0 0.0
        %2520 = vmatpush2.msra.mxu0 0.0
        %2521 = vmatprep.subr.mxu0 0.0
        %2522 = vmatpush2.msra.mxu0 0.0
        %2523 = vmatprep.subr.mxu0 0.0
        %2524 = vmatpush2.msra.mxu0 0.0
        %2525 = vmatprep.subr.mxu0 0.0
        %2526 = vmatpush2.msra.mxu0 0.0
        %2527 = vmatprep.subr.mxu0 0.0
        %2528 = vmatpush2.msra.mxu0 0.0
        %2529 = vmatprep.subr.mxu0 0.0
        %2530 = vmatpush2.msra.mxu0 0.0
        %2531 = vmatprep.subr.mxu0 0.0
        %2532 = vmatpush2.msra.mxu0 0.0
        %2533 = vmatprep.mubr.f32.mxu0 0.0
        %v2534 = vand.u32 %v1932, 4294901760
        %2535 = vmatmul.mubr.f32.gmra.mxu0 %v2534
        %v2536 = vpop.f32.mrf.mxu0
        %v2537 = vadd.f32 %v2410, %v2536
        %v2538 = vpop.f32.mrf.mxu0
        %2539 = vmatprep.mubr.f32.mxu0 0.0
        %v2540 = vand.u32 %v1933, 4294901760
        %2541 = vmatmul.mubr.f32.gmra.mxu0 %v2540
        %v2542 = vpop.f32.mrf.mxu0
        %v2543 = vadd.f32 %v2418, %v2542
        %v2544 = vpop.f32.mrf.mxu0
        %2545 = vdwg.mxu0
        %2546 = vmatprep.subr.mxu0 0.0
        %v2547 = vand.u32 %v1949, 4294901760
        %2548 = vmatpush1.msra.mxu0 %v2547
        %2549 = vmatprep.subr.mxu0 0.0
        %v2550 = vand.u32 %v1948, 4294901760
        %2551 = vmatpush1.msra.mxu0 %v2550
        %2552 = vmatprep.subr.mxu0 0.0
        %v2553 = vand.u32 %v1947, 4294901760
        %2554 = vmatpush1.msra.mxu0 %v2553
        %2555 = vmatprep.subr.mxu0 0.0
        %v2556 = vand.u32 %v1946, 4294901760
        %2557 = vmatpush1.msra.mxu0 %v2556
        %2558 = vmatprep.subr.mxu0 0.0
        %v2559 = vand.u32 %v1945, 4294901760
        %2560 = vmatpush1.msra.mxu0 %v2559
        %2561 = vmatprep.subr.mxu0 0.0
        %v2562 = vand.u32 %v1944, 4294901760
        %2563 = vmatpush1.msra.mxu0 %v2562
        %2564 = vmatprep.subr.mxu0 0.0
        %v2565 = vand.u32 %v1943, 4294901760
        %2566 = vmatpush1.msra.mxu0 %v2565
        %2567 = vmatprep.subr.mxu0 0.0
        %v2568 = vand.u32 %v1942, 4294901760
        %2569 = vmatpush1.msra.mxu0 %v2568
        %2570 = vmatprep.subr.mxu0 0.0
        %v2571 = vand.u32 %v1941, 4294901760
        %2572 = vmatpush1.msra.mxu0 %v2571
        %2573 = vmatprep.subr.mxu0 0.0
        %v2574 = vand.u32 %v1940, 4294901760
        %2575 = vmatpush1.msra.mxu0 %v2574
        %2576 = vmatprep.subr.mxu0 0.0
        %v2577 = vand.u32 %v1939, 4294901760
        %2578 = vmatpush1.msra.mxu0 %v2577
        %2579 = vmatprep.subr.mxu0 0.0
        %v2580 = vand.u32 %v1938, 4294901760
        %2581 = vmatpush1.msra.mxu0 %v2580
        %2582 = vmatprep.subr.mxu0 0.0
        %v2583 = vand.u32 %v1937, 4294901760
        %2584 = vmatpush1.msra.mxu0 %v2583
        %2585 = vmatprep.subr.mxu0 0.0
        %v2586 = vand.u32 %v1936, 4294901760
        %2587 = vmatpush1.msra.mxu0 %v2586
        %2588 = vmatprep.subr.mxu0 0.0
        %v2589 = vand.u32 %v1935, 4294901760
        %2590 = vmatpush1.msra.mxu0 %v2589
        %2591 = vmatprep.subr.mxu0 0.0
        %v2592 = vand.u32 %v1934, 4294901760
        %2593 = vmatpush1.msra.mxu0 %v2592
        %2594 = vmatprep.subr.mxu0 0.0
        %2595 = vmatpush2.msra.mxu0 0.0
        %2596 = vmatprep.subr.mxu0 0.0
        %2597 = vmatpush2.msra.mxu0 0.0
        %2598 = vmatprep.subr.mxu0 0.0
        %2599 = vmatpush2.msra.mxu0 0.0
        %2600 = vmatprep.subr.mxu0 0.0
        %2601 = vmatpush2.msra.mxu0 0.0
        %2602 = vmatprep.subr.mxu0 0.0
        %2603 = vmatpush2.msra.mxu0 0.0
        %2604 = vmatprep.subr.mxu0 0.0
        %2605 = vmatpush2.msra.mxu0 0.0
        %2606 = vmatprep.subr.mxu0 0.0
        %2607 = vmatpush2.msra.mxu0 0.0
        %2608 = vmatprep.subr.mxu0 0.0
        %2609 = vmatpush2.msra.mxu0 0.0
        %2610 = vmatprep.subr.mxu0 0.0
        %2611 = vmatpush2.msra.mxu0 0.0
        %2612 = vmatprep.subr.mxu0 0.0
        %2613 = vmatpush2.msra.mxu0 0.0
        %2614 = vmatprep.subr.mxu0 0.0
        %2615 = vmatpush2.msra.mxu0 0.0
        %2616 = vmatprep.subr.mxu0 0.0
        %2617 = vmatpush2.msra.mxu0 0.0
        %2618 = vmatprep.subr.mxu0 0.0
        %2619 = vmatpush2.msra.mxu0 0.0
        %2620 = vmatprep.subr.mxu0 0.0
        %2621 = vmatpush2.msra.mxu0 0.0
        %2622 = vmatprep.subr.mxu0 0.0
        %2623 = vmatpush2.msra.mxu0 0.0
        %2624 = vmatprep.subr.mxu0 0.0
        %2625 = vmatpush2.msra.mxu0 0.0
        %2626 = vmatprep.mubr.f32.mxu0 0.0
        %v2627 = vand.u32 %v1932, 4294901760
        %2628 = vmatmul.mubr.f32.gmra.mxu0 %v2627
        %v2629 = vpop.f32.mrf.mxu0
        %v2630 = vadd.f32 %v2537, %v2629
        %v2631 = vpop.f32.mrf.mxu0
        %2632 = vmatprep.mubr.f32.mxu0 0.0
        %v2633 = vand.u32 %v1933, 4294901760
        %2634 = vmatmul.mubr.f32.gmra.mxu0 %v2633
        %v2635 = vpop.f32.mrf.mxu0
        %v2636 = vadd.f32 %v2543, %v2635
        %v2637 = vpop.f32.mrf.mxu0
        %2638 = vdwg.mxu0
        %v2639 = vmax.f32 %v2630, 0.0
        %v2640 = vmax.f32 %v2636, 0.0
        %v2641 = vld [vmem:[#allocation13] sm:$0xff]
        %v2642 = vld [vmem:[#allocation13 + $0x8] sm:$0xff]
        %v2643 = vld [vmem:[#allocation13 + $0x10] sm:$0xff]
        %v2644 = vld [vmem:[#allocation13 + $0x18] sm:$0xff]
        %v2645 = vld [vmem:[#allocation13 + $0x20] sm:$0xff]
        %v2646 = vld [vmem:[#allocation13 + $0x28] sm:$0xff]
        %v2647 = vld [vmem:[#allocation13 + $0x30] sm:$0xff]
        %v2648 = vld [vmem:[#allocation13 + $0x38] sm:$0xff]
        %v2649 = vld [vmem:[%s7 + $0x2] sm:$0x1]
        %v2650 = vlaneseq
        %v2651 = vshrl.u32 %v2650, 7
        %v2652 = vsub.s32 0, %v2651
        %v2653 = vrot.slane %v2649, %v2652
        %2654 = vmatprep.subr.mxu0 0.0
        %2655 = vmatpush1.msra.mxu0 0.0
        %2656 = vmatprep.subr.mxu0 0.0
        %2657 = vmatpush1.msra.mxu0 0.0
        %2658 = vmatprep.subr.mxu0 0.0
        %2659 = vmatpush1.msra.mxu0 0.0
        %2660 = vmatprep.subr.mxu0 0.0
        %2661 = vmatpush1.msra.mxu0 0.0
        %2662 = vmatprep.subr.mxu0 0.0
        %2663 = vmatpush1.msra.mxu0 0.0
        %2664 = vmatprep.subr.mxu0 0.0
        %2665 = vmatpush1.msra.mxu0 0.0
        %2666 = vmatprep.subr.mxu0 0.0
        %2667 = vmatpush1.msra.mxu0 0.0
        %2668 = vmatprep.subr.mxu0 0.0
        %2669 = vmatpush1.msra.mxu0 0.0
        %2670 = vmatprep.subr.mxu0 0.0
        %v2671 = vand.u32 %v2648, 4294901760
        %2672 = vmatpush1.msra.mxu0 %v2671
        %2673 = vmatprep.subr.mxu0 0.0
        %v2674 = vand.u32 %v2647, 4294901760
        %2675 = vmatpush1.msra.mxu0 %v2674
        %2676 = vmatprep.subr.mxu0 0.0
        %v2677 = vand.u32 %v2646, 4294901760
        %2678 = vmatpush1.msra.mxu0 %v2677
        %2679 = vmatprep.subr.mxu0 0.0
        %v2680 = vand.u32 %v2645, 4294901760
        %2681 = vmatpush1.msra.mxu0 %v2680
        %2682 = vmatprep.subr.mxu0 0.0
        %v2683 = vand.u32 %v2644, 4294901760
        %2684 = vmatpush1.msra.mxu0 %v2683
        %2685 = vmatprep.subr.mxu0 0.0
        %v2686 = vand.u32 %v2643, 4294901760
        %2687 = vmatpush1.msra.mxu0 %v2686
        %2688 = vmatprep.subr.mxu0 0.0
        %v2689 = vand.u32 %v2642, 4294901760
        %2690 = vmatpush1.msra.mxu0 %v2689
        %2691 = vmatprep.subr.mxu0 0.0
        %v2692 = vand.u32 %v2641, 4294901760
        %2693 = vmatpush1.msra.mxu0 %v2692
        %2694 = vmatprep.subr.mxu0 0.0
        %2695 = vmatpush2.msra.mxu0 0.0
        %2696 = vmatprep.subr.mxu0 0.0
        %2697 = vmatpush2.msra.mxu0 0.0
        %2698 = vmatprep.subr.mxu0 0.0
        %2699 = vmatpush2.msra.mxu0 0.0
        %2700 = vmatprep.subr.mxu0 0.0
        %2701 = vmatpush2.msra.mxu0 0.0
        %2702 = vmatprep.subr.mxu0 0.0
        %2703 = vmatpush2.msra.mxu0 0.0
        %2704 = vmatprep.subr.mxu0 0.0
        %2705 = vmatpush2.msra.mxu0 0.0
        %2706 = vmatprep.subr.mxu0 0.0
        %2707 = vmatpush2.msra.mxu0 0.0
        %2708 = vmatprep.subr.mxu0 0.0
        %2709 = vmatpush2.msra.mxu0 0.0
        %2710 = vmatprep.subr.mxu0 0.0
        %2711 = vmatpush2.msra.mxu0 0.0
        %2712 = vmatprep.subr.mxu0 0.0
        %2713 = vmatpush2.msra.mxu0 0.0
        %2714 = vmatprep.subr.mxu0 0.0
        %2715 = vmatpush2.msra.mxu0 0.0
        %2716 = vmatprep.subr.mxu0 0.0
        %2717 = vmatpush2.msra.mxu0 0.0
        %2718 = vmatprep.subr.mxu0 0.0
        %2719 = vmatpush2.msra.mxu0 0.0
        %2720 = vmatprep.subr.mxu0 0.0
        %2721 = vmatpush2.msra.mxu0 0.0
        %2722 = vmatprep.subr.mxu0 0.0
        %2723 = vmatpush2.msra.mxu0 0.0
        %2724 = vmatprep.subr.mxu0 0.0
        %2725 = vmatpush2.msra.mxu0 0.0
        %2726 = vmatprep.mubr.f32.mxu0 0.0
        %v2727 = vand.u32 %v434, 4294901760
        %v2728 = vsub.f32 %v434, %v2727
        %v2729 = vand.u32 %v2728, 4294901760
        %v2730 = vsub.f32 %v2728, %v2729
        %v2731 = vand.u32 %v2730, 4294901760
        %2732 = vmatmul.mubr.f32.gmra.mxu0 %v2731
        %v2733 = vpop.f32.mrf.mxu0
        %v2734 = vadd.f32 %v2653, %v2733
        %v2735 = vpop.f32.mrf.mxu0
        %2736 = vmatprep.mubr.f32.mxu0 0.0
        %v2737 = vand.u32 %v437, 4294901760
        %v2738 = vsub.f32 %v437, %v2737
        %v2739 = vand.u32 %v2738, 4294901760
        %v2740 = vsub.f32 %v2738, %v2739
        %v2741 = vand.u32 %v2740, 4294901760
        %2742 = vmatmul.mubr.f32.gmra.mxu0 %v2741
        %v2743 = vpop.f32.mrf.mxu0
        %v2744 = vadd.f32 %v2653, %v2743
        %v2745 = vpop.f32.mrf.mxu0
        %2746 = vdwg.mxu0
        %2747 = vmatprep.subr.mxu0 0.0
        %2748 = vmatpush1.msra.mxu0 0.0
        %2749 = vmatprep.subr.mxu0 0.0
        %2750 = vmatpush1.msra.mxu0 0.0
        %2751 = vmatprep.subr.mxu0 0.0
        %2752 = vmatpush1.msra.mxu0 0.0
        %2753 = vmatprep.subr.mxu0 0.0
        %2754 = vmatpush1.msra.mxu0 0.0
        %2755 = vmatprep.subr.mxu0 0.0
        %2756 = vmatpush1.msra.mxu0 0.0
        %2757 = vmatprep.subr.mxu0 0.0
        %2758 = vmatpush1.msra.mxu0 0.0
        %2759 = vmatprep.subr.mxu0 0.0
        %2760 = vmatpush1.msra.mxu0 0.0
        %2761 = vmatprep.subr.mxu0 0.0
        %2762 = vmatpush1.msra.mxu0 0.0
        %2763 = vmatprep.subr.mxu0 0.0
        %v2764 = vand.u32 %v2648, 4294901760
        %v2765 = vsub.f32 %v2648, %v2764
        %v2766 = vand.u32 %v2765, 4294901760
        %v2767 = vsub.f32 %v2765, %v2766
        %v2768 = vand.u32 %v2767, 4294901760
        %2769 = vmatpush1.msra.mxu0 %v2768
        %2770 = vmatprep.subr.mxu0 0.0
        %v2771 = vand.u32 %v2647, 4294901760
        %v2772 = vsub.f32 %v2647, %v2771
        %v2773 = vand.u32 %v2772, 4294901760
        %v2774 = vsub.f32 %v2772, %v2773
        %v2775 = vand.u32 %v2774, 4294901760
        %2776 = vmatpush1.msra.mxu0 %v2775
        %2777 = vmatprep.subr.mxu0 0.0
        %v2778 = vand.u32 %v2646, 4294901760
        %v2779 = vsub.f32 %v2646, %v2778
        %v2780 = vand.u32 %v2779, 4294901760
        %v2781 = vsub.f32 %v2779, %v2780
        %v2782 = vand.u32 %v2781, 4294901760
        %2783 = vmatpush1.msra.mxu0 %v2782
        %2784 = vmatprep.subr.mxu0 0.0
        %v2785 = vand.u32 %v2645, 4294901760
        %v2786 = vsub.f32 %v2645, %v2785
        %v2787 = vand.u32 %v2786, 4294901760
        %v2788 = vsub.f32 %v2786, %v2787
        %v2789 = vand.u32 %v2788, 4294901760
        %2790 = vmatpush1.msra.mxu0 %v2789
        %2791 = vmatprep.subr.mxu0 0.0
        %v2792 = vand.u32 %v2644, 4294901760
        %v2793 = vsub.f32 %v2644, %v2792
        %v2794 = vand.u32 %v2793, 4294901760
        %v2795 = vsub.f32 %v2793, %v2794
        %v2796 = vand.u32 %v2795, 4294901760
        %2797 = vmatpush1.msra.mxu0 %v2796
        %2798 = vmatprep.subr.mxu0 0.0
        %v2799 = vand.u32 %v2643, 4294901760
        %v2800 = vsub.f32 %v2643, %v2799
        %v2801 = vand.u32 %v2800, 4294901760
        %v2802 = vsub.f32 %v2800, %v2801
        %v2803 = vand.u32 %v2802, 4294901760
        %2804 = vmatpush1.msra.mxu0 %v2803
        %2805 = vmatprep.subr.mxu0 0.0
        %v2806 = vand.u32 %v2642, 4294901760
        %v2807 = vsub.f32 %v2642, %v2806
        %v2808 = vand.u32 %v2807, 4294901760
        %v2809 = vsub.f32 %v2807, %v2808
        %v2810 = vand.u32 %v2809, 4294901760
        %2811 = vmatpush1.msra.mxu0 %v2810
        %2812 = vmatprep.subr.mxu0 0.0
        %v2813 = vand.u32 %v2641, 4294901760
        %v2814 = vsub.f32 %v2641, %v2813
        %v2815 = vand.u32 %v2814, 4294901760
        %v2816 = vsub.f32 %v2814, %v2815
        %v2817 = vand.u32 %v2816, 4294901760
        %2818 = vmatpush1.msra.mxu0 %v2817
        %2819 = vmatprep.subr.mxu0 0.0
        %2820 = vmatpush2.msra.mxu0 0.0
        %2821 = vmatprep.subr.mxu0 0.0
        %2822 = vmatpush2.msra.mxu0 0.0
        %2823 = vmatprep.subr.mxu0 0.0
        %2824 = vmatpush2.msra.mxu0 0.0
        %2825 = vmatprep.subr.mxu0 0.0
        %2826 = vmatpush2.msra.mxu0 0.0
        %2827 = vmatprep.subr.mxu0 0.0
        %2828 = vmatpush2.msra.mxu0 0.0
        %2829 = vmatprep.subr.mxu0 0.0
        %2830 = vmatpush2.msra.mxu0 0.0
        %2831 = vmatprep.subr.mxu0 0.0
        %2832 = vmatpush2.msra.mxu0 0.0
        %2833 = vmatprep.subr.mxu0 0.0
        %2834 = vmatpush2.msra.mxu0 0.0
        %2835 = vmatprep.subr.mxu0 0.0
        %2836 = vmatpush2.msra.mxu0 0.0
        %2837 = vmatprep.subr.mxu0 0.0
        %2838 = vmatpush2.msra.mxu0 0.0
        %2839 = vmatprep.subr.mxu0 0.0
        %2840 = vmatpush2.msra.mxu0 0.0
        %2841 = vmatprep.subr.mxu0 0.0
        %2842 = vmatpush2.msra.mxu0 0.0
        %2843 = vmatprep.subr.mxu0 0.0
        %2844 = vmatpush2.msra.mxu0 0.0
        %2845 = vmatprep.subr.mxu0 0.0
        %2846 = vmatpush2.msra.mxu0 0.0
        %2847 = vmatprep.subr.mxu0 0.0
        %2848 = vmatpush2.msra.mxu0 0.0
        %2849 = vmatprep.subr.mxu0 0.0
        %2850 = vmatpush2.msra.mxu0 0.0
        %2851 = vmatprep.mubr.f32.mxu0 0.0
        %v2852 = vand.u32 %v434, 4294901760
        %2853 = vmatmul.mubr.f32.gmra.mxu0 %v2852
        %v2854 = vpop.f32.mrf.mxu0
        %v2855 = vadd.f32 %v2734, %v2854
        %v2856 = vpop.f32.mrf.mxu0
        %2857 = vmatprep.mubr.f32.mxu0 0.0
        %v2858 = vand.u32 %v437, 4294901760
        %2859 = vmatmul.mubr.f32.gmra.mxu0 %v2858
        %v2860 = vpop.f32.mrf.mxu0
        %v2861 = vadd.f32 %v2744, %v2860
        %v2862 = vpop.f32.mrf.mxu0
        %2863 = vdwg.mxu0
        %2864 = vmatprep.subr.mxu0 0.0
        %2865 = vmatpush1.msra.mxu0 0.0
        %2866 = vmatprep.subr.mxu0 0.0
        %2867 = vmatpush1.msra.mxu0 0.0
        %2868 = vmatprep.subr.mxu0 0.0
        %2869 = vmatpush1.msra.mxu0 0.0
        %2870 = vmatprep.subr.mxu0 0.0
        %2871 = vmatpush1.msra.mxu0 0.0
        %2872 = vmatprep.subr.mxu0 0.0
        %2873 = vmatpush1.msra.mxu0 0.0
        %2874 = vmatprep.subr.mxu0 0.0
        %2875 = vmatpush1.msra.mxu0 0.0
        %2876 = vmatprep.subr.mxu0 0.0
        %2877 = vmatpush1.msra.mxu0 0.0
        %2878 = vmatprep.subr.mxu0 0.0
        %2879 = vmatpush1.msra.mxu0 0.0
        %2880 = vmatprep.subr.mxu0 0.0
        %v2881 = vand.u32 %v2648, 4294901760
        %v2882 = vsub.f32 %v2648, %v2881
        %2883 = vmatpush1.msra.mxu0 %v2882
        %2884 = vmatprep.subr.mxu0 0.0
        %v2885 = vand.u32 %v2647, 4294901760
        %v2886 = vsub.f32 %v2647, %v2885
        %2887 = vmatpush1.msra.mxu0 %v2886
        %2888 = vmatprep.subr.mxu0 0.0
        %v2889 = vand.u32 %v2646, 4294901760
        %v2890 = vsub.f32 %v2646, %v2889
        %2891 = vmatpush1.msra.mxu0 %v2890
        %2892 = vmatprep.subr.mxu0 0.0
        %v2893 = vand.u32 %v2645, 4294901760
        %v2894 = vsub.f32 %v2645, %v2893
        %2895 = vmatpush1.msra.mxu0 %v2894
        %2896 = vmatprep.subr.mxu0 0.0
        %v2897 = vand.u32 %v2644, 4294901760
        %v2898 = vsub.f32 %v2644, %v2897
        %2899 = vmatpush1.msra.mxu0 %v2898
        %2900 = vmatprep.subr.mxu0 0.0
        %v2901 = vand.u32 %v2643, 4294901760
        %v2902 = vsub.f32 %v2643, %v2901
        %2903 = vmatpush1.msra.mxu0 %v2902
        %2904 = vmatprep.subr.mxu0 0.0
        %v2905 = vand.u32 %v2642, 4294901760
        %v2906 = vsub.f32 %v2642, %v2905
        %2907 = vmatpush1.msra.mxu0 %v2906
        %2908 = vmatprep.subr.mxu0 0.0
        %v2909 = vand.u32 %v2641, 4294901760
        %v2910 = vsub.f32 %v2641, %v2909
        %2911 = vmatpush1.msra.mxu0 %v2910
        %2912 = vmatprep.subr.mxu0 0.0
        %2913 = vmatpush2.msra.mxu0 0.0
        %2914 = vmatprep.subr.mxu0 0.0
        %2915 = vmatpush2.msra.mxu0 0.0
        %2916 = vmatprep.subr.mxu0 0.0
        %2917 = vmatpush2.msra.mxu0 0.0
        %2918 = vmatprep.subr.mxu0 0.0
        %2919 = vmatpush2.msra.mxu0 0.0
        %2920 = vmatprep.subr.mxu0 0.0
        %2921 = vmatpush2.msra.mxu0 0.0
        %2922 = vmatprep.subr.mxu0 0.0
        %2923 = vmatpush2.msra.mxu0 0.0
        %2924 = vmatprep.subr.mxu0 0.0
        %2925 = vmatpush2.msra.mxu0 0.0
        %2926 = vmatprep.subr.mxu0 0.0
        %2927 = vmatpush2.msra.mxu0 0.0
        %2928 = vmatprep.subr.mxu0 0.0
        %2929 = vmatpush2.msra.mxu0 0.0
        %2930 = vmatprep.subr.mxu0 0.0
        %2931 = vmatpush2.msra.mxu0 0.0
        %2932 = vmatprep.subr.mxu0 0.0
        %2933 = vmatpush2.msra.mxu0 0.0
        %2934 = vmatprep.subr.mxu0 0.0
        %2935 = vmatpush2.msra.mxu0 0.0
        %2936 = vmatprep.subr.mxu0 0.0
        %2937 = vmatpush2.msra.mxu0 0.0
        %2938 = vmatprep.subr.mxu0 0.0
        %2939 = vmatpush2.msra.mxu0 0.0
        %2940 = vmatprep.subr.mxu0 0.0
        %2941 = vmatpush2.msra.mxu0 0.0
        %2942 = vmatprep.subr.mxu0 0.0
        %2943 = vmatpush2.msra.mxu0 0.0
        %2944 = vmatprep.mubr.f32.mxu0 0.0
        %v2945 = vand.u32 %v434, 4294901760
        %v2946 = vsub.f32 %v434, %v2945
        %2947 = vmatmul.mubr.f32.gmra.mxu0 %v2946
        %v2948 = vpop.f32.mrf.mxu0
        %v2949 = vadd.f32 %v2855, %v2948
        %v2950 = vpop.f32.mrf.mxu0
        %2951 = vmatprep.mubr.f32.mxu0 0.0
        %v2952 = vand.u32 %v437, 4294901760
        %v2953 = vsub.f32 %v437, %v2952
        %2954 = vmatmul.mubr.f32.gmra.mxu0 %v2953
        %v2955 = vpop.f32.mrf.mxu0
        %v2956 = vadd.f32 %v2861, %v2955
        %v2957 = vpop.f32.mrf.mxu0
        %2958 = vdwg.mxu0
        %2959 = vmatprep.subr.mxu0 0.0
        %2960 = vmatpush1.msra.mxu0 0.0
        %2961 = vmatprep.subr.mxu0 0.0
        %2962 = vmatpush1.msra.mxu0 0.0
        %2963 = vmatprep.subr.mxu0 0.0
        %2964 = vmatpush1.msra.mxu0 0.0
        %2965 = vmatprep.subr.mxu0 0.0
        %2966 = vmatpush1.msra.mxu0 0.0
        %2967 = vmatprep.subr.mxu0 0.0
        %2968 = vmatpush1.msra.mxu0 0.0
        %2969 = vmatprep.subr.mxu0 0.0
        %2970 = vmatpush1.msra.mxu0 0.0
        %2971 = vmatprep.subr.mxu0 0.0
        %2972 = vmatpush1.msra.mxu0 0.0
        %2973 = vmatprep.subr.mxu0 0.0
        %2974 = vmatpush1.msra.mxu0 0.0
        %2975 = vmatprep.subr.mxu0 0.0
        %v2976 = vand.u32 %v2648, 4294901760
        %2977 = vmatpush1.msra.mxu0 %v2976
        %2978 = vmatprep.subr.mxu0 0.0
        %v2979 = vand.u32 %v2647, 4294901760
        %2980 = vmatpush1.msra.mxu0 %v2979
        %2981 = vmatprep.subr.mxu0 0.0
        %v2982 = vand.u32 %v2646, 4294901760
        %2983 = vmatpush1.msra.mxu0 %v2982
        %2984 = vmatprep.subr.mxu0 0.0
        %v2985 = vand.u32 %v2645, 4294901760
        %2986 = vmatpush1.msra.mxu0 %v2985
        %2987 = vmatprep.subr.mxu0 0.0
        %v2988 = vand.u32 %v2644, 4294901760
        %2989 = vmatpush1.msra.mxu0 %v2988
        %2990 = vmatprep.subr.mxu0 0.0
        %v2991 = vand.u32 %v2643, 4294901760
        %2992 = vmatpush1.msra.mxu0 %v2991
        %2993 = vmatprep.subr.mxu0 0.0
        %v2994 = vand.u32 %v2642, 4294901760
        %2995 = vmatpush1.msra.mxu0 %v2994
        %2996 = vmatprep.subr.mxu0 0.0
        %v2997 = vand.u32 %v2641, 4294901760
        %2998 = vmatpush1.msra.mxu0 %v2997
        %2999 = vmatprep.subr.mxu0 0.0
        %3000 = vmatpush2.msra.mxu0 0.0
        %3001 = vmatprep.subr.mxu0 0.0
        %3002 = vmatpush2.msra.mxu0 0.0
        %3003 = vmatprep.subr.mxu0 0.0
        %3004 = vmatpush2.msra.mxu0 0.0
        %3005 = vmatprep.subr.mxu0 0.0
        %3006 = vmatpush2.msra.mxu0 0.0
        %3007 = vmatprep.subr.mxu0 0.0
        %3008 = vmatpush2.msra.mxu0 0.0
        %3009 = vmatprep.subr.mxu0 0.0
        %3010 = vmatpush2.msra.mxu0 0.0
        %3011 = vmatprep.subr.mxu0 0.0
        %3012 = vmatpush2.msra.mxu0 0.0
        %3013 = vmatprep.subr.mxu0 0.0
        %3014 = vmatpush2.msra.mxu0 0.0
        %3015 = vmatprep.subr.mxu0 0.0
        %3016 = vmatpush2.msra.mxu0 0.0
        %3017 = vmatprep.subr.mxu0 0.0
        %3018 = vmatpush2.msra.mxu0 0.0
        %3019 = vmatprep.subr.mxu0 0.0
        %3020 = vmatpush2.msra.mxu0 0.0
        %3021 = vmatprep.subr.mxu0 0.0
        %3022 = vmatpush2.msra.mxu0 0.0
        %3023 = vmatprep.subr.mxu0 0.0
        %3024 = vmatpush2.msra.mxu0 0.0
        %3025 = vmatprep.subr.mxu0 0.0
        %3026 = vmatpush2.msra.mxu0 0.0
        %3027 = vmatprep.subr.mxu0 0.0
        %3028 = vmatpush2.msra.mxu0 0.0
        %3029 = vmatprep.subr.mxu0 0.0
        %3030 = vmatpush2.msra.mxu0 0.0
        %3031 = vmatprep.mubr.f32.mxu0 0.0
        %v3032 = vand.u32 %v434, 4294901760
        %v3033 = vsub.f32 %v434, %v3032
        %v3034 = vand.u32 %v3033, 4294901760
        %3035 = vmatmul.mubr.f32.gmra.mxu0 %v3034
        %v3036 = vpop.f32.mrf.mxu0
        %v3037 = vadd.f32 %v2949, %v3036
        %v3038 = vpop.f32.mrf.mxu0
        %3039 = vmatprep.mubr.f32.mxu0 0.0
        %v3040 = vand.u32 %v437, 4294901760
        %v3041 = vsub.f32 %v437, %v3040
        %v3042 = vand.u32 %v3041, 4294901760
        %3043 = vmatmul.mubr.f32.gmra.mxu0 %v3042
        %v3044 = vpop.f32.mrf.mxu0
        %v3045 = vadd.f32 %v2956, %v3044
        %v3046 = vpop.f32.mrf.mxu0
        %3047 = vdwg.mxu0
        %3048 = vmatprep.subr.mxu0 0.0
        %3049 = vmatpush1.msra.mxu0 0.0
        %3050 = vmatprep.subr.mxu0 0.0
        %3051 = vmatpush1.msra.mxu0 0.0
        %3052 = vmatprep.subr.mxu0 0.0
        %3053 = vmatpush1.msra.mxu0 0.0
        %3054 = vmatprep.subr.mxu0 0.0
        %3055 = vmatpush1.msra.mxu0 0.0
        %3056 = vmatprep.subr.mxu0 0.0
        %3057 = vmatpush1.msra.mxu0 0.0
        %3058 = vmatprep.subr.mxu0 0.0
        %3059 = vmatpush1.msra.mxu0 0.0
        %3060 = vmatprep.subr.mxu0 0.0
        %3061 = vmatpush1.msra.mxu0 0.0
        %3062 = vmatprep.subr.mxu0 0.0
        %3063 = vmatpush1.msra.mxu0 0.0
        %3064 = vmatprep.subr.mxu0 0.0
        %v3065 = vand.u32 %v2648, 4294901760
        %v3066 = vsub.f32 %v2648, %v3065
        %v3067 = vand.u32 %v3066, 4294901760
        %3068 = vmatpush1.msra.mxu0 %v3067
        %3069 = vmatprep.subr.mxu0 0.0
        %v3070 = vand.u32 %v2647, 4294901760
        %v3071 = vsub.f32 %v2647, %v3070
        %v3072 = vand.u32 %v3071, 4294901760
        %3073 = vmatpush1.msra.mxu0 %v3072
        %3074 = vmatprep.subr.mxu0 0.0
        %v3075 = vand.u32 %v2646, 4294901760
        %v3076 = vsub.f32 %v2646, %v3075
        %v3077 = vand.u32 %v3076, 4294901760
        %3078 = vmatpush1.msra.mxu0 %v3077
        %3079 = vmatprep.subr.mxu0 0.0
        %v3080 = vand.u32 %v2645, 4294901760
        %v3081 = vsub.f32 %v2645, %v3080
        %v3082 = vand.u32 %v3081, 4294901760
        %3083 = vmatpush1.msra.mxu0 %v3082
        %3084 = vmatprep.subr.mxu0 0.0
        %v3085 = vand.u32 %v2644, 4294901760
        %v3086 = vsub.f32 %v2644, %v3085
        %v3087 = vand.u32 %v3086, 4294901760
        %3088 = vmatpush1.msra.mxu0 %v3087
        %3089 = vmatprep.subr.mxu0 0.0
        %v3090 = vand.u32 %v2643, 4294901760
        %v3091 = vsub.f32 %v2643, %v3090
        %v3092 = vand.u32 %v3091, 4294901760
        %3093 = vmatpush1.msra.mxu0 %v3092
        %3094 = vmatprep.subr.mxu0 0.0
        %v3095 = vand.u32 %v2642, 4294901760
        %v3096 = vsub.f32 %v2642, %v3095
        %v3097 = vand.u32 %v3096, 4294901760
        %3098 = vmatpush1.msra.mxu0 %v3097
        %3099 = vmatprep.subr.mxu0 0.0
        %v3100 = vand.u32 %v2641, 4294901760
        %v3101 = vsub.f32 %v2641, %v3100
        %v3102 = vand.u32 %v3101, 4294901760
        %3103 = vmatpush1.msra.mxu0 %v3102
        %3104 = vmatprep.subr.mxu0 0.0
        %3105 = vmatpush2.msra.mxu0 0.0
        %3106 = vmatprep.subr.mxu0 0.0
        %3107 = vmatpush2.msra.mxu0 0.0
        %3108 = vmatprep.subr.mxu0 0.0
        %3109 = vmatpush2.msra.mxu0 0.0
        %3110 = vmatprep.subr.mxu0 0.0
        %3111 = vmatpush2.msra.mxu0 0.0
        %3112 = vmatprep.subr.mxu0 0.0
        %3113 = vmatpush2.msra.mxu0 0.0
        %3114 = vmatprep.subr.mxu0 0.0
        %3115 = vmatpush2.msra.mxu0 0.0
        %3116 = vmatprep.subr.mxu0 0.0
        %3117 = vmatpush2.msra.mxu0 0.0
        %3118 = vmatprep.subr.mxu0 0.0
        %3119 = vmatpush2.msra.mxu0 0.0
        %3120 = vmatprep.subr.mxu0 0.0
        %3121 = vmatpush2.msra.mxu0 0.0
        %3122 = vmatprep.subr.mxu0 0.0
        %3123 = vmatpush2.msra.mxu0 0.0
        %3124 = vmatprep.subr.mxu0 0.0
        %3125 = vmatpush2.msra.mxu0 0.0
        %3126 = vmatprep.subr.mxu0 0.0
        %3127 = vmatpush2.msra.mxu0 0.0
        %3128 = vmatprep.subr.mxu0 0.0
        %3129 = vmatpush2.msra.mxu0 0.0
        %3130 = vmatprep.subr.mxu0 0.0
        %3131 = vmatpush2.msra.mxu0 0.0
        %3132 = vmatprep.subr.mxu0 0.0
        %3133 = vmatpush2.msra.mxu0 0.0
        %3134 = vmatprep.subr.mxu0 0.0
        %3135 = vmatpush2.msra.mxu0 0.0
        %3136 = vmatprep.mubr.f32.mxu0 0.0
        %v3137 = vand.u32 %v434, 4294901760
        %3138 = vmatmul.mubr.f32.gmra.mxu0 %v3137
        %v3139 = vpop.f32.mrf.mxu0
        %v3140 = vadd.f32 %v3037, %v3139
        %v3141 = vpop.f32.mrf.mxu0
        %3142 = vmatprep.mubr.f32.mxu0 0.0
        %v3143 = vand.u32 %v437, 4294901760
        %3144 = vmatmul.mubr.f32.gmra.mxu0 %v3143
        %v3145 = vpop.f32.mrf.mxu0
        %v3146 = vadd.f32 %v3045, %v3145
        %v3147 = vpop.f32.mrf.mxu0
        %3148 = vdwg.mxu0
        %3149 = vmatprep.subr.mxu0 0.0
        %3150 = vmatpush1.msra.mxu0 0.0
        %3151 = vmatprep.subr.mxu0 0.0
        %3152 = vmatpush1.msra.mxu0 0.0
        %3153 = vmatprep.subr.mxu0 0.0
        %3154 = vmatpush1.msra.mxu0 0.0
        %3155 = vmatprep.subr.mxu0 0.0
        %3156 = vmatpush1.msra.mxu0 0.0
        %3157 = vmatprep.subr.mxu0 0.0
        %3158 = vmatpush1.msra.mxu0 0.0
        %3159 = vmatprep.subr.mxu0 0.0
        %3160 = vmatpush1.msra.mxu0 0.0
        %3161 = vmatprep.subr.mxu0 0.0
        %3162 = vmatpush1.msra.mxu0 0.0
        %3163 = vmatprep.subr.mxu0 0.0
        %3164 = vmatpush1.msra.mxu0 0.0
        %3165 = vmatprep.subr.mxu0 0.0
        %v3166 = vand.u32 %v2648, 4294901760
        %3167 = vmatpush1.msra.mxu0 %v3166
        %3168 = vmatprep.subr.mxu0 0.0
        %v3169 = vand.u32 %v2647, 4294901760
        %3170 = vmatpush1.msra.mxu0 %v3169
        %3171 = vmatprep.subr.mxu0 0.0
        %v3172 = vand.u32 %v2646, 4294901760
        %3173 = vmatpush1.msra.mxu0 %v3172
        %3174 = vmatprep.subr.mxu0 0.0
        %v3175 = vand.u32 %v2645, 4294901760
        %3176 = vmatpush1.msra.mxu0 %v3175
        %3177 = vmatprep.subr.mxu0 0.0
        %v3178 = vand.u32 %v2644, 4294901760
        %3179 = vmatpush1.msra.mxu0 %v3178
        %3180 = vmatprep.subr.mxu0 0.0
        %v3181 = vand.u32 %v2643, 4294901760
        %3182 = vmatpush1.msra.mxu0 %v3181
        %3183 = vmatprep.subr.mxu0 0.0
        %v3184 = vand.u32 %v2642, 4294901760
        %3185 = vmatpush1.msra.mxu0 %v3184
        %3186 = vmatprep.subr.mxu0 0.0
        %v3187 = vand.u32 %v2641, 4294901760
        %3188 = vmatpush1.msra.mxu0 %v3187
        %3189 = vmatprep.subr.mxu0 0.0
        %3190 = vmatpush2.msra.mxu0 0.0
        %3191 = vmatprep.subr.mxu0 0.0
        %3192 = vmatpush2.msra.mxu0 0.0
        %3193 = vmatprep.subr.mxu0 0.0
        %3194 = vmatpush2.msra.mxu0 0.0
        %3195 = vmatprep.subr.mxu0 0.0
        %3196 = vmatpush2.msra.mxu0 0.0
        %3197 = vmatprep.subr.mxu0 0.0
        %3198 = vmatpush2.msra.mxu0 0.0
        %3199 = vmatprep.subr.mxu0 0.0
        %3200 = vmatpush2.msra.mxu0 0.0
        %3201 = vmatprep.subr.mxu0 0.0
        %3202 = vmatpush2.msra.mxu0 0.0
        %3203 = vmatprep.subr.mxu0 0.0
        %3204 = vmatpush2.msra.mxu0 0.0
        %3205 = vmatprep.subr.mxu0 0.0
        %3206 = vmatpush2.msra.mxu0 0.0
        %3207 = vmatprep.subr.mxu0 0.0
        %3208 = vmatpush2.msra.mxu0 0.0
        %3209 = vmatprep.subr.mxu0 0.0
        %3210 = vmatpush2.msra.mxu0 0.0
        %3211 = vmatprep.subr.mxu0 0.0
        %3212 = vmatpush2.msra.mxu0 0.0
        %3213 = vmatprep.subr.mxu0 0.0
        %3214 = vmatpush2.msra.mxu0 0.0
        %3215 = vmatprep.subr.mxu0 0.0
        %3216 = vmatpush2.msra.mxu0 0.0
        %3217 = vmatprep.subr.mxu0 0.0
        %3218 = vmatpush2.msra.mxu0 0.0
        %3219 = vmatprep.subr.mxu0 0.0
        %3220 = vmatpush2.msra.mxu0 0.0
        %3221 = vmatprep.mubr.f32.mxu0 0.0
        %v3222 = vand.u32 %v434, 4294901760
        %3223 = vmatmul.mubr.f32.gmra.mxu0 %v3222
        %v3224 = vpop.f32.mrf.mxu0
        %v3225 = vadd.f32 %v3140, %v3224
        %v3226 = vpop.f32.mrf.mxu0
        %3227 = vmatprep.mubr.f32.mxu0 0.0
        %v3228 = vand.u32 %v437, 4294901760
        %3229 = vmatmul.mubr.f32.gmra.mxu0 %v3228
        %v3230 = vpop.f32.mrf.mxu0
        %v3231 = vadd.f32 %v3146, %v3230
        %v3232 = vpop.f32.mrf.mxu0
        %3233 = vdwg.mxu0
        %v3234 = vadd.f32 %v2639, %v3225
        %v3235 = vadd.f32 %v2640, %v3231
        %v3236 = vmax.f32 %v3234, 0.0
        %v3237 = vmax.f32 %v3235, 0.0
        %3238 = vst [vmem:[%s410] sm:$0xff] %v3236
        %3239 = vst [vmem:[%s410 + $0x8] sm:$0xff] %v3237
        %s3240 = sand.u32 %s209, 1
        %s3241 = scalar_lea.sflag [#allocation4], %s3240
        %s3242 = sand.u32 %s209, 1
        %s3243 = smul.addr %s3242, 16
        %s3244 = scalar_lea.vmem [#allocation14], %s3243
        // Predicated region
        $region81: #{tpu_custom_call.1} parent=51 // pred_check
          %p3245 = pneg %p219
        $region82: #{tpu_custom_call.1} parent=51 // pred_check_branch
          %3247 = sbr.rel (%p3245) target = $region84
        $region83: #{tpu_custom_call.1} parent=51 // pred_region
          %s3249 = ssub.s32 256, 256
          %3250 = vsyncadd %s3241, %s3249
          %s3251 = smul.addr %s28, 2
          %s3252 = smul.addr %s3251, 128
          %s3253 = scalar_lea.hbm %s8, %s3252
          %s3254 = sshll.u32 %s3244, 4
          %s3255 = int_to_ptr.vmem [resolvable:$true] %s3254
          %3260 = dma.vmem_to_hbm [thread:$0]  %s3255, 256, %s3253, %s3241, 128, 128, 8
        $region84: #{tpu_custom_call.1} parent=51 // pred_fallthru
          _
      $region52: #{tpu_custom_call.1} parent=5 // pred_fallthru
        _
      %p3261 = scmp.le.s32.totalorder 2, %s23
      // Predicated region
      $region85: #{tpu_custom_call.1} parent=5 // pred_check
        %p3262 = pneg %p3261
      $region86: #{tpu_custom_call.1} parent=5 // pred_check_branch
        %3264 = sbr.rel (%p3262) target = $region88
      $region87: #{tpu_custom_call.1} parent=5 // pred_region
        %s3265 = ssub.s32 %s23, 2
        // Predicated region
        $region89: #{tpu_custom_call.1} parent=87 // pred_check
          %p3266 = pneg %p225
        $region90: #{tpu_custom_call.1} parent=87 // pred_check_branch
          %3268 = sbr.rel (%p3266) target = $region92
        $region91: #{tpu_custom_call.1} parent=87 // pred_region
          %s3269 = sand.u32 %s210, 1
          %s3270 = scalar_lea.sflag [#allocation4], %s3269
          %s3271 = sand.u32 %s210, 1
          %s3272 = smul.addr %s3271, 16
          %s3273 = scalar_lea.vmem [#allocation14], %s3272
          %3274 = dma.done %s3270, 256
        $region92: #{tpu_custom_call.1} parent=87 // pred_fallthru
          _
      $region88: #{tpu_custom_call.1} parent=5 // pred_fallthru
        _
    $region6: #{tpu_custom_call.1} parent=1 // loop_footer
      %s27 = sadd.s32 1, %s23
    $region7: #{tpu_custom_call.1} parent=1 // loop_footer_branch
      %22 = sbr.rel target = $region3
    $region8: #{tpu_custom_call.1} parent=1 // loop_exit
      _
    %3275 = vsyncpa [#allocation3], 1
    %s3276 = scalar_lea.sflag [#allocation3], 1
    %3277 = vsyncpa %s3276, 1
    %3278 = vsyncpa [#allocation6], 1
    %3279 = vsyncpa [#allocation9], 1
    %3280 = vsyncpa [#allocation12], 1
    %3281 = vsyncpa [#allocation4], 1
    %s3282 = scalar_lea.sflag [#allocation4], 1
    %3283 = vsyncpa %s3282, 1

</llo_original>
